<compile_context>
chip_gen: v7x
topology: tpu7x:2x2x1
jax: 0.10.0
libtpu: 0.0.40
codegen_flags: <defaults>
</compile_context>

<pallas_src>
import numpy as np
import jax
import jax.numpy as jnp
from jax import lax
from jax.experimental import pallas as pl
from jax.experimental.pallas import tpu as pltpu

LOG_STD_MIN_MAX = (-20.0, 2.0)
OUT_LANES = 128          # lane-dense packed output width


def actor_kernel(x_ref, wih_ref, whh_ref, b_ref,
                 w1_ref, b1_ref, w2_ref, b2_ref,
                 w3m_ref, b3m_ref, w3s_ref, b3s_ref,
                 eps_ref, out_ref):
    T, B, D = x_ref.shape
    H = whh_ref.shape[0]
    A = eps_ref.shape[1]
    bf16 = jnp.bfloat16
    f32 = jnp.float32

    # --- hoisted input projection: one (T*B, D) @ (D, 4H) MXU matmul ---------
    x2d = x_ref[...].reshape(T * B, D)                                   # bf16
    xproj = (jnp.dot(x2d, wih_ref[...], preferred_element_type=f32)
             + b_ref[...]).reshape(T, B, 4 * H)                          # f32

    whh = whh_ref[...]                                                   # bf16 (H, 4H)

    # --- LSTM recurrence, statically unrolled (PyTorch gate order i, f, g, o) ---
    h = jnp.zeros((B, H), f32)
    c = jnp.zeros((B, H), f32)
    for t in range(T):                       # T is static: full unroll, static slices
        gates = xproj[t] + jnp.dot(h.astype(bf16), whh, preferred_element_type=f32)
        ig = jax.nn.sigmoid(gates[:, 0 * H:1 * H])
        fg = jax.nn.sigmoid(gates[:, 1 * H:2 * H])
        gg = jnp.tanh(gates[:, 2 * H:3 * H])
        og = jax.nn.sigmoid(gates[:, 3 * H:4 * H])
        c = fg * c + ig * gg
        h = og * jnp.tanh(c)

    # --- MLP head: Linear-ReLU-Linear-ReLU-Linear (lane-aligned mean/log_std split) ---
    h1 = jnp.maximum(
        jnp.dot(h.astype(bf16), w1_ref[...], preferred_element_type=f32) + b1_ref[...], 0.0)
    h2 = jnp.maximum(
        jnp.dot(h1.astype(bf16), w2_ref[...], preferred_element_type=f32) + b2_ref[...], 0.0)
    h2b = h2.astype(bf16)
    mean = jnp.dot(h2b, w3m_ref[...], preferred_element_type=f32) + b3m_ref[...]
    log_std = jnp.clip(
        jnp.dot(h2b, w3s_ref[...], preferred_element_type=f32) + b3s_ref[...],
        LOG_STD_MIN_MAX[0], LOG_STD_MIN_MAX[1])

    # --- TanhNormal rsample + log_prob ---------------------------------------
    std = jnp.exp(log_std)
    eps = eps_ref[...]
    pre_tanh = mean + std * eps
    action = jnp.tanh(pre_tanh)

    # (pre_tanh - mean)/std == eps exactly -> no division needed.
    normal_lp = -0.5 * eps * eps - log_std - 0.5 * jnp.log(2.0 * jnp.pi)
    # 2*log2 + logsigmoid(2x) + logsigmoid(-2x) == 2*(log2 - x - softplus(-2x))
    log_det = 2.0 * (jnp.log(2.0) - pre_tanh - jax.nn.softplus(-2.0 * pre_tanh))
    lp = jnp.sum(normal_lp - log_det, axis=1, keepdims=True)

    # --- lane-dense packed store: [action | log_prob | zeros] -> (B, 128) -----
    pad = jnp.zeros((B, out_ref.shape[1] - (A + 1)), f32)
    out_ref[...] = jnp.concatenate([action, lp, pad], axis=1)


def _prepare_params(params, action_dim):
    """Kernel-ready params: bf16 matmul operands, f32 biases, split output head."""
    A = action_dim
    bf16, f32 = jnp.bfloat16, jnp.float32
    return {
        "wih": params["wih"].astype(bf16),
        "whh": params["whh"].astype(bf16),
        "b":   params["b"].astype(f32),
        "w1":  params["w1"].astype(bf16),
        "b1":  params["b1"].astype(f32),
        "w2":  params["w2"].astype(bf16),
        "b2":  params["b2"].astype(f32),
        "w3m": params["w3"][:, :A].astype(bf16),
        "b3m": params["b3"][:, :A].astype(f32),
        "w3s": params["w3"][:, A:].astype(bf16),
        "b3s": params["b3"][:, A:].astype(f32),
    }


def actor_forward(obs, params, eps, *, batch_tile=8):
    """obs: (B, T, D) batch-first (as in PyTorch). Returns (action (B, A), log_prob (B, 1))."""
    B, T, D = obs.shape
    A = eps.shape[1]
    B_pad = ((max(B, batch_tile) + batch_tile - 1) // batch_tile) * batch_tile

    # Time-major + batch padded to a sublane multiple of 8. The transpose/pad fuse
    # into the single staging copy for the kernel input (negligible at these sizes).
    x = jnp.zeros((T, B_pad, D), jnp.bfloat16)
    x = x.at[:, :B, :].set(jnp.transpose(obs, (1, 0, 2)).astype(jnp.bfloat16))
    eps_p = jnp.zeros((B_pad, A), jnp.float32).at[:B, :].set(eps.astype(jnp.float32))

    p = _prepare_params(params, A)

    def full(arr):   # whole-array block, constant block index
        return pl.BlockSpec(arr.shape, lambda i, _n=arr.ndim: (0,) * _n)

    out = pl.pallas_call(
        actor_kernel,
        out_shape=jax.ShapeDtypeStruct((B_pad, OUT_LANES), jnp.float32),
        grid=(B_pad // batch_tile,),
        in_specs=[
            pl.BlockSpec((T, batch_tile, D), lambda i: (0, i, 0)),   # x (time-major)
            full(p["wih"]), full(p["whh"]), full(p["b"]),
            full(p["w1"]), full(p["b1"]), full(p["w2"]), full(p["b2"]),
            full(p["w3m"]), full(p["b3m"]), full(p["w3s"]), full(p["b3s"]),
            pl.BlockSpec((batch_tile, A), lambda i: (i, 0)),         # eps
        ],
        out_specs=pl.BlockSpec((batch_tile, OUT_LANES), lambda i: (i, 0)),
        compiler_params=pltpu.CompilerParams(dimension_semantics=("parallel",)),
    )(x, p["wih"], p["whh"], p["b"], p["w1"], p["b1"], p["w2"], p["b2"],
      p["w3m"], p["b3m"], p["w3s"], p["b3s"], eps_p)

    action = out[:B, :A]
    log_prob = out[:B, A:A + 1]
    return action, log_prob


def init_params(key, state_dim, action_dim, hidden=256):
    """Deterministic synthetic init (PyTorch-style uniform(-1/sqrt(fan_in), 1/sqrt(fan_in)))."""
    ks = jax.random.split(key, 10)

    def uni(k, shape, bound):
        return jax.random.uniform(k, shape, jnp.float32, -bound, bound)

    kl = 1.0 / np.sqrt(hidden)     # LSTM bound = 1/sqrt(hidden)
    k1 = 1.0 / np.sqrt(hidden)     # Linear(hidden -> 256)
    k2 = 1.0 / np.sqrt(256.0)      # Linear(256 -> 256)
    k3 = 1.0 / np.sqrt(256.0)      # Linear(256 -> 2*A)
    return {
        "wih": uni(ks[0], (state_dim, 4 * hidden), kl),
        "whh": uni(ks[1], (hidden, 4 * hidden), kl),
        "b":   uni(ks[2], (1, 4 * hidden), kl) + uni(ks[3], (1, 4 * hidden), kl),
        "w1":  uni(ks[4], (hidden, 256), k1),
        "b1":  uni(ks[5], (1, 256), k1),
        "w2":  uni(ks[6], (256, 256), k2),
        "b2":  uni(ks[7], (1, 256), k2),
        "w3":  uni(ks[8], (256, 2 * action_dim), k3),
        "b3":  uni(ks[9], (1, 2 * action_dim), k3),
    }


def actor_reference(obs, params, eps):
    """Pure-JAX f32 reference for correctness checking."""
    x = obs.astype(jnp.float32)
    H = params["whh"].shape[0]
    B = x.shape[0]
    A = eps.shape[1]

    def step(carry, xt):
        h, c = carry
        gates = xt @ params["wih"] + h @ params["whh"] + params["b"]
        i = jax.nn.sigmoid(gates[:, :H])
        f = jax.nn.sigmoid(gates[:, H:2 * H])
        g = jnp.tanh(gates[:, 2 * H:3 * H])
        o = jax.nn.sigmoid(gates[:, 3 * H:])
        c = f * c + i * g
        h = o * jnp.tanh(c)
        return (h, c), None

    (h, _), _ = lax.scan(step,
                         (jnp.zeros((B, H), jnp.float32), jnp.zeros((B, H), jnp.float32)),
                         jnp.transpose(x, (1, 0, 2)))
    h1 = jax.nn.relu(h @ params["w1"] + params["b1"])
    h2 = jax.nn.relu(h1 @ params["w2"] + params["b2"])
    out = h2 @ params["w3"] + params["b3"]
    mean, log_std = out[:, :A], jnp.clip(out[:, A:], *LOG_STD_MIN_MAX)
    std = jnp.exp(log_std)
    pre_tanh = mean + std * eps
    action = jnp.tanh(pre_tanh)
    normal_lp = -0.5 * ((pre_tanh - mean) / std) ** 2 - log_std - 0.5 * jnp.log(2.0 * jnp.pi)
    log_det = (2.0 * jnp.log(2.0)
               + jax.nn.log_sigmoid(2.0 * pre_tanh)
               + jax.nn.log_sigmoid(-2.0 * pre_tanh))
    log_prob = jnp.sum(normal_lp - log_det, axis=1, keepdims=True)
    return action, log_prob


if __name__ == "__main__":
    key = jax.random.PRNGKey(0)
    B, T, D, A = 2, 8, 16, 4          # batch, seq, state_dim, action_dim
    kp, kx, ke = jax.random.split(key, 3)
    params = init_params(kp, state_dim=D, action_dim=A)
    obs = jax.random.normal(kx, (B, T, D), jnp.float32)
    eps = jax.random.normal(ke, (B, A), jnp.float32)   # standard-normal sample for rsample()

    action, log_prob = actor_forward(obs, params, eps)
    jax.block_until_ready((action, log_prob))

    a_ref, lp_ref = actor_reference(obs, params, eps)
    # Tolerances slightly looser than the f32-only version: MXU operands are bf16
    # (f32 accumulation), per the perf review; elementwise math remains f32.
    np.testing.assert_allclose(np.asarray(action), np.asarray(a_ref), rtol=2e-2, atol=2e-2)
    np.testing.assert_allclose(np.asarray(log_prob), np.asarray(lp_ref), rtol=2e-2, atol=5e-2)

    print("KERNEL_OK")
</pallas_src>

<mosaic_0001>
module attributes {stable_mosaic.version = 11 : i64} {
  func.func @actor_kernel(%arg0: i32, %arg1: memref<8x8x16xbf16, #tpu.memory_space<vmem>>, %arg2: memref<16x1024xbf16, #tpu.memory_space<vmem>>, %arg3: memref<256x1024xbf16, #tpu.memory_space<vmem>>, %arg4: memref<1x1024xf32, #tpu.memory_space<vmem>>, %arg5: memref<256x256xbf16, #tpu.memory_space<vmem>>, %arg6: memref<1x256xf32, #tpu.memory_space<vmem>>, %arg7: memref<256x256xbf16, #tpu.memory_space<vmem>>, %arg8: memref<1x256xf32, #tpu.memory_space<vmem>>, %arg9: memref<256x4xbf16, #tpu.memory_space<vmem>>, %arg10: memref<1x4xf32, #tpu.memory_space<vmem>>, %arg11: memref<256x4xbf16, #tpu.memory_space<vmem>>, %arg12: memref<1x4xf32, #tpu.memory_space<vmem>>, %arg13: memref<8x4xf32, #tpu.memory_space<vmem>>, %arg14: memref<8x128xf32, #tpu.memory_space<vmem>>) attributes {dimension_semantics = [#tpu.dimension_semantics<parallel>], iteration_bounds = array<i64: 1>, scalar_prefetch = 0 : i64, scratch_operands = 0 : i64, tpu.core_type = #tpu.core_type<tc>, window_params = [{transform_indices = @transform_0, window_bounds = array<i64: 8, 8, 16>}, {pipeline_mode = #tpu.pipeline_mode<synchronous>, transform_indices = @transform_1, window_bounds = array<i64: 16, 1024>}, {pipeline_mode = #tpu.pipeline_mode<synchronous>, transform_indices = @transform_2, window_bounds = array<i64: 256, 1024>}, {pipeline_mode = #tpu.pipeline_mode<synchronous>, transform_indices = @transform_3, window_bounds = array<i64: 1, 1024>}, {pipeline_mode = #tpu.pipeline_mode<synchronous>, transform_indices = @transform_4, window_bounds = array<i64: 256, 256>}, {pipeline_mode = #tpu.pipeline_mode<synchronous>, transform_indices = @transform_5, window_bounds = array<i64: 1, 256>}, {pipeline_mode = #tpu.pipeline_mode<synchronous>, transform_indices = @transform_6, window_bounds = array<i64: 256, 256>}, {pipeline_mode = #tpu.pipeline_mode<synchronous>, transform_indices = @transform_7, window_bounds = array<i64: 1, 256>}, {pipeline_mode = #tpu.pipeline_mode<synchronous>, transform_indices = @transform_8, window_bounds = array<i64: 256, 4>}, {pipeline_mode = #tpu.pipeline_mode<synchronous>, transform_indices = @transform_9, window_bounds = array<i64: 1, 4>}, {pipeline_mode = #tpu.pipeline_mode<synchronous>, transform_indices = @transform_10, window_bounds = array<i64: 256, 4>}, {pipeline_mode = #tpu.pipeline_mode<synchronous>, transform_indices = @transform_11, window_bounds = array<i64: 1, 4>}, {transform_indices = @transform_12, window_bounds = array<i64: 8, 4>}, {transform_indices = @transform_13, window_bounds = array<i64: 8, 128>}]} {
    %c0 = arith.constant 0 : index
    %c0_0 = arith.constant 0 : index
    %c0_1 = arith.constant 0 : index
    %0 = vector.load %arg1[%c0, %c0_0, %c0_1] : memref<8x8x16xbf16, #tpu.memory_space<vmem>>, vector<8x8x16xbf16>
    %1 = vector.shape_cast %0 : vector<8x8x16xbf16> to vector<64x16xbf16>
    %c0_2 = arith.constant 0 : index
    %c0_3 = arith.constant 0 : index
    %2 = vector.load %arg2[%c0_2, %c0_3] : memref<16x1024xbf16, #tpu.memory_space<vmem>>, vector<16x1024xbf16>
    %cst = arith.constant dense<0.000000e+00> : vector<64x1024xf32>
    %3 = tpu.matmul %1, %2, %cst {dimension_numbers = #tpu.dot_dimension_numbers<[1], [0], [0], [1], [0, 0, 1, 1], [], []>} : vector<64x16xbf16>, vector<16x1024xbf16>, vector<64x1024xf32> -> vector<64x1024xf32>
    %c0_4 = arith.constant 0 : index
    %c0_5 = arith.constant 0 : index
    %4 = vector.load %arg4[%c0_4, %c0_5] : memref<1x1024xf32, #tpu.memory_space<vmem>>, vector<1x1024xf32>
    %5 = vector.broadcast %4 : vector<1x1024xf32> to vector<64x1024xf32>
    %6 = arith.addf %3, %5 : vector<64x1024xf32>
    %7 = vector.shape_cast %6 : vector<64x1024xf32> to vector<8x8x1024xf32>
    %c0_6 = arith.constant 0 : index
    %c0_7 = arith.constant 0 : index
    %8 = vector.load %arg3[%c0_6, %c0_7] : memref<256x1024xbf16, #tpu.memory_space<vmem>>, vector<256x1024xbf16>
    %cst_8 = arith.constant 0.000000e+00 : f32
    %9 = vector.broadcast %cst_8 : f32 to vector<8x256xf32>
    %cst_9 = arith.constant 0.000000e+00 : f32
    %10 = vector.broadcast %cst_9 : f32 to vector<8x256xf32>
    %11 = vector.extract_strided_slice %7 {offsets = [0, 0, 0], sizes = [1, 8, 1024], strides = [1, 1, 1]} : vector<8x8x1024xf32> to vector<1x8x1024xf32>
    %12 = vector.shape_cast %11 : vector<1x8x1024xf32> to vector<8x1024xf32>
    %13 = arith.truncf %9 : vector<8x256xf32> to vector<8x256xbf16>
    %cst_10 = arith.constant dense<0.000000e+00> : vector<8x1024xf32>
    %14 = tpu.matmul %13, %8, %cst_10 {dimension_numbers = #tpu.dot_dimension_numbers<[1], [0], [0], [1], [0, 0, 1, 1], [], []>} : vector<8x256xbf16>, vector<256x1024xbf16>, vector<8x1024xf32> -> vector<8x1024xf32>
    %15 = arith.addf %12, %14 : vector<8x1024xf32>
    %16 = vector.extract_strided_slice %15 {offsets = [0, 0], sizes = [8, 256], strides = [1, 1]} : vector<8x1024xf32> to vector<8x256xf32>
    %17 = arith.negf %16 : vector<8x256xf32>
    %18 = math.exp %17 : vector<8x256xf32>
    %cst_11 = arith.constant 1.000000e+00 : f32
    %19 = vector.broadcast %cst_11 : f32 to vector<8x256xf32>
    %20 = arith.addf %19, %18 : vector<8x256xf32>
    %21 = arith.divf %19, %20 : vector<8x256xf32>
    %22 = vector.extract_strided_slice %15 {offsets = [0, 256], sizes = [8, 256], strides = [1, 1]} : vector<8x1024xf32> to vector<8x256xf32>
    %23 = arith.negf %22 : vector<8x256xf32>
    %24 = math.exp %23 : vector<8x256xf32>
    %cst_12 = arith.constant 1.000000e+00 : f32
    %25 = vector.broadcast %cst_12 : f32 to vector<8x256xf32>
    %26 = arith.addf %25, %24 : vector<8x256xf32>
    %27 = arith.divf %25, %26 : vector<8x256xf32>
    %28 = vector.extract_strided_slice %15 {offsets = [0, 512], sizes = [8, 256], strides = [1, 1]} : vector<8x1024xf32> to vector<8x256xf32>
    %29 = math.tanh %28 : vector<8x256xf32>
    %30 = vector.extract_strided_slice %15 {offsets = [0, 768], sizes = [8, 256], strides = [1, 1]} : vector<8x1024xf32> to vector<8x256xf32>
    %31 = arith.negf %30 : vector<8x256xf32>
    %32 = math.exp %31 : vector<8x256xf32>
    %cst_13 = arith.constant 1.000000e+00 : f32
    %33 = vector.broadcast %cst_13 : f32 to vector<8x256xf32>
    %34 = arith.addf %33, %32 : vector<8x256xf32>
    %35 = arith.divf %33, %34 : vector<8x256xf32>
    %36 = arith.mulf %27, %10 : vector<8x256xf32>
    %37 = arith.mulf %21, %29 : vector<8x256xf32>
    %38 = arith.addf %36, %37 : vector<8x256xf32>
    %39 = math.tanh %38 : vector<8x256xf32>
    %40 = arith.mulf %35, %39 : vector<8x256xf32>
    %41 = vector.extract_strided_slice %7 {offsets = [1, 0, 0], sizes = [1, 8, 1024], strides = [1, 1, 1]} : vector<8x8x1024xf32> to vector<1x8x1024xf32>
    %42 = vector.shape_cast %41 : vector<1x8x1024xf32> to vector<8x1024xf32>
    %43 = arith.truncf %40 : vector<8x256xf32> to vector<8x256xbf16>
    %cst_14 = arith.constant dense<0.000000e+00> : vector<8x1024xf32>
    %44 = tpu.matmul %43, %8, %cst_14 {dimension_numbers = #tpu.dot_dimension_numbers<[1], [0], [0], [1], [0, 0, 1, 1], [], []>} : vector<8x256xbf16>, vector<256x1024xbf16>, vector<8x1024xf32> -> vector<8x1024xf32>
    %45 = arith.addf %42, %44 : vector<8x1024xf32>
    %46 = vector.extract_strided_slice %45 {offsets = [0, 0], sizes = [8, 256], strides = [1, 1]} : vector<8x1024xf32> to vector<8x256xf32>
    %47 = arith.negf %46 : vector<8x256xf32>
    %48 = math.exp %47 : vector<8x256xf32>
    %cst_15 = arith.constant 1.000000e+00 : f32
    %49 = vector.broadcast %cst_15 : f32 to vector<8x256xf32>
    %50 = arith.addf %49, %48 : vector<8x256xf32>
    %51 = arith.divf %49, %50 : vector<8x256xf32>
    %52 = vector.extract_strided_slice %45 {offsets = [0, 256], sizes = [8, 256], strides = [1, 1]} : vector<8x1024xf32> to vector<8x256xf32>
    %53 = arith.negf %52 : vector<8x256xf32>
    %54 = math.exp %53 : vector<8x256xf32>
    %cst_16 = arith.constant 1.000000e+00 : f32
    %55 = vector.broadcast %cst_16 : f32 to vector<8x256xf32>
    %56 = arith.addf %55, %54 : vector<8x256xf32>
    %57 = arith.divf %55, %56 : vector<8x256xf32>
    %58 = vector.extract_strided_slice %45 {offsets = [0, 512], sizes = [8, 256], strides = [1, 1]} : vector<8x1024xf32> to vector<8x256xf32>
    %59 = math.tanh %58 : vector<8x256xf32>
    %60 = vector.extract_strided_slice %45 {offsets = [0, 768], sizes = [8, 256], strides = [1, 1]} : vector<8x1024xf32> to vector<8x256xf32>
    %61 = arith.negf %60 : vector<8x256xf32>
    %62 = math.exp %61 : vector<8x256xf32>
    %cst_17 = arith.constant 1.000000e+00 : f32
    %63 = vector.broadcast %cst_17 : f32 to vector<8x256xf32>
    %64 = arith.addf %63, %62 : vector<8x256xf32>
    %65 = arith.divf %63, %64 : vector<8x256xf32>
    %66 = arith.mulf %57, %38 : vector<8x256xf32>
    %67 = arith.mulf %51, %59 : vector<8x256xf32>
    %68 = arith.addf %66, %67 : vector<8x256xf32>
    %69 = math.tanh %68 : vector<8x256xf32>
    %70 = arith.mulf %65, %69 : vector<8x256xf32>
    %71 = vector.extract_strided_slice %7 {offsets = [2, 0, 0], sizes = [1, 8, 1024], strides = [1, 1, 1]} : vector<8x8x1024xf32> to vector<1x8x1024xf32>
    %72 = vector.shape_cast %71 : vector<1x8x1024xf32> to vector<8x1024xf32>
    %73 = arith.truncf %70 : vector<8x256xf32> to vector<8x256xbf16>
    %cst_18 = arith.constant dense<0.000000e+00> : vector<8x1024xf32>
    %74 = tpu.matmul %73, %8, %cst_18 {dimension_numbers = #tpu.dot_dimension_numbers<[1], [0], [0], [1], [0, 0, 1, 1], [], []>} : vector<8x256xbf16>, vector<256x1024xbf16>, vector<8x1024xf32> -> vector<8x1024xf32>
    %75 = arith.addf %72, %74 : vector<8x1024xf32>
    %76 = vector.extract_strided_slice %75 {offsets = [0, 0], sizes = [8, 256], strides = [1, 1]} : vector<8x1024xf32> to vector<8x256xf32>
    %77 = arith.negf %76 : vector<8x256xf32>
    %78 = math.exp %77 : vector<8x256xf32>
    %cst_19 = arith.constant 1.000000e+00 : f32
    %79 = vector.broadcast %cst_19 : f32 to vector<8x256xf32>
    %80 = arith.addf %79, %78 : vector<8x256xf32>
    %81 = arith.divf %79, %80 : vector<8x256xf32>
    %82 = vector.extract_strided_slice %75 {offsets = [0, 256], sizes = [8, 256], strides = [1, 1]} : vector<8x1024xf32> to vector<8x256xf32>
    %83 = arith.negf %82 : vector<8x256xf32>
    %84 = math.exp %83 : vector<8x256xf32>
    %cst_20 = arith.constant 1.000000e+00 : f32
    %85 = vector.broadcast %cst_20 : f32 to vector<8x256xf32>
    %86 = arith.addf %85, %84 : vector<8x256xf32>
    %87 = arith.divf %85, %86 : vector<8x256xf32>
    %88 = vector.extract_strided_slice %75 {offsets = [0, 512], sizes = [8, 256], strides = [1, 1]} : vector<8x1024xf32> to vector<8x256xf32>
    %89 = math.tanh %88 : vector<8x256xf32>
    %90 = vector.extract_strided_slice %75 {offsets = [0, 768], sizes = [8, 256], strides = [1, 1]} : vector<8x1024xf32> to vector<8x256xf32>
    %91 = arith.negf %90 : vector<8x256xf32>
    %92 = math.exp %91 : vector<8x256xf32>
    %cst_21 = arith.constant 1.000000e+00 : f32
    %93 = vector.broadcast %cst_21 : f32 to vector<8x256xf32>
    %94 = arith.addf %93, %92 : vector<8x256xf32>
    %95 = arith.divf %93, %94 : vector<8x256xf32>
    %96 = arith.mulf %87, %68 : vector<8x256xf32>
    %97 = arith.mulf %81, %89 : vector<8x256xf32>
    %98 = arith.addf %96, %97 : vector<8x256xf32>
    %99 = math.tanh %98 : vector<8x256xf32>
    %100 = arith.mulf %95, %99 : vector<8x256xf32>
    %101 = vector.extract_strided_slice %7 {offsets = [3, 0, 0], sizes = [1, 8, 1024], strides = [1, 1, 1]} : vector<8x8x1024xf32> to vector<1x8x1024xf32>
    %102 = vector.shape_cast %101 : vector<1x8x1024xf32> to vector<8x1024xf32>
    %103 = arith.truncf %100 : vector<8x256xf32> to vector<8x256xbf16>
    %cst_22 = arith.constant dense<0.000000e+00> : vector<8x1024xf32>
    %104 = tpu.matmul %103, %8, %cst_22 {dimension_numbers = #tpu.dot_dimension_numbers<[1], [0], [0], [1], [0, 0, 1, 1], [], []>} : vector<8x256xbf16>, vector<256x1024xbf16>, vector<8x1024xf32> -> vector<8x1024xf32>
    %105 = arith.addf %102, %104 : vector<8x1024xf32>
    %106 = vector.extract_strided_slice %105 {offsets = [0, 0], sizes = [8, 256], strides = [1, 1]} : vector<8x1024xf32> to vector<8x256xf32>
    %107 = arith.negf %106 : vector<8x256xf32>
    %108 = math.exp %107 : vector<8x256xf32>
    %cst_23 = arith.constant 1.000000e+00 : f32
    %109 = vector.broadcast %cst_23 : f32 to vector<8x256xf32>
    %110 = arith.addf %109, %108 : vector<8x256xf32>
    %111 = arith.divf %109, %110 : vector<8x256xf32>
    %112 = vector.extract_strided_slice %105 {offsets = [0, 256], sizes = [8, 256], strides = [1, 1]} : vector<8x1024xf32> to vector<8x256xf32>
    %113 = arith.negf %112 : vector<8x256xf32>
    %114 = math.exp %113 : vector<8x256xf32>
    %cst_24 = arith.constant 1.000000e+00 : f32
    %115 = vector.broadcast %cst_24 : f32 to vector<8x256xf32>
    %116 = arith.addf %115, %114 : vector<8x256xf32>
    %117 = arith.divf %115, %116 : vector<8x256xf32>
    %118 = vector.extract_strided_slice %105 {offsets = [0, 512], sizes = [8, 256], strides = [1, 1]} : vector<8x1024xf32> to vector<8x256xf32>
    %119 = math.tanh %118 : vector<8x256xf32>
    %120 = vector.extract_strided_slice %105 {offsets = [0, 768], sizes = [8, 256], strides = [1, 1]} : vector<8x1024xf32> to vector<8x256xf32>
    %121 = arith.negf %120 : vector<8x256xf32>
    %122 = math.exp %121 : vector<8x256xf32>
    %cst_25 = arith.constant 1.000000e+00 : f32
    %123 = vector.broadcast %cst_25 : f32 to vector<8x256xf32>
    %124 = arith.addf %123, %122 : vector<8x256xf32>
    %125 = arith.divf %123, %124 : vector<8x256xf32>
    %126 = arith.mulf %117, %98 : vector<8x256xf32>
    %127 = arith.mulf %111, %119 : vector<8x256xf32>
    %128 = arith.addf %126, %127 : vector<8x256xf32>
    %129 = math.tanh %128 : vector<8x256xf32>
    %130 = arith.mulf %125, %129 : vector<8x256xf32>
    %131 = vector.extract_strided_slice %7 {offsets = [4, 0, 0], sizes = [1, 8, 1024], strides = [1, 1, 1]} : vector<8x8x1024xf32> to vector<1x8x1024xf32>
    %132 = vector.shape_cast %131 : vector<1x8x1024xf32> to vector<8x1024xf32>
    %133 = arith.truncf %130 : vector<8x256xf32> to vector<8x256xbf16>
    %cst_26 = arith.constant dense<0.000000e+00> : vector<8x1024xf32>
    %134 = tpu.matmul %133, %8, %cst_26 {dimension_numbers = #tpu.dot_dimension_numbers<[1], [0], [0], [1], [0, 0, 1, 1], [], []>} : vector<8x256xbf16>, vector<256x1024xbf16>, vector<8x1024xf32> -> vector<8x1024xf32>
    %135 = arith.addf %132, %134 : vector<8x1024xf32>
    %136 = vector.extract_strided_slice %135 {offsets = [0, 0], sizes = [8, 256], strides = [1, 1]} : vector<8x1024xf32> to vector<8x256xf32>
    %137 = arith.negf %136 : vector<8x256xf32>
    %138 = math.exp %137 : vector<8x256xf32>
    %cst_27 = arith.constant 1.000000e+00 : f32
    %139 = vector.broadcast %cst_27 : f32 to vector<8x256xf32>
    %140 = arith.addf %139, %138 : vector<8x256xf32>
    %141 = arith.divf %139, %140 : vector<8x256xf32>
    %142 = vector.extract_strided_slice %135 {offsets = [0, 256], sizes = [8, 256], strides = [1, 1]} : vector<8x1024xf32> to vector<8x256xf32>
    %143 = arith.negf %142 : vector<8x256xf32>
    %144 = math.exp %143 : vector<8x256xf32>
    %cst_28 = arith.constant 1.000000e+00 : f32
    %145 = vector.broadcast %cst_28 : f32 to vector<8x256xf32>
    %146 = arith.addf %145, %144 : vector<8x256xf32>
    %147 = arith.divf %145, %146 : vector<8x256xf32>
    %148 = vector.extract_strided_slice %135 {offsets = [0, 512], sizes = [8, 256], strides = [1, 1]} : vector<8x1024xf32> to vector<8x256xf32>
    %149 = math.tanh %148 : vector<8x256xf32>
    %150 = vector.extract_strided_slice %135 {offsets = [0, 768], sizes = [8, 256], strides = [1, 1]} : vector<8x1024xf32> to vector<8x256xf32>
    %151 = arith.negf %150 : vector<8x256xf32>
    %152 = math.exp %151 : vector<8x256xf32>
    %cst_29 = arith.constant 1.000000e+00 : f32
    %153 = vector.broadcast %cst_29 : f32 to vector<8x256xf32>
    %154 = arith.addf %153, %152 : vector<8x256xf32>
    %155 = arith.divf %153, %154 : vector<8x256xf32>
    %156 = arith.mulf %147, %128 : vector<8x256xf32>
    %157 = arith.mulf %141, %149 : vector<8x256xf32>
    %158 = arith.addf %156, %157 : vector<8x256xf32>
    %159 = math.tanh %158 : vector<8x256xf32>
    %160 = arith.mulf %155, %159 : vector<8x256xf32>
    %161 = vector.extract_strided_slice %7 {offsets = [5, 0, 0], sizes = [1, 8, 1024], strides = [1, 1, 1]} : vector<8x8x1024xf32> to vector<1x8x1024xf32>
    %162 = vector.shape_cast %161 : vector<1x8x1024xf32> to vector<8x1024xf32>
    %163 = arith.truncf %160 : vector<8x256xf32> to vector<8x256xbf16>
    %cst_30 = arith.constant dense<0.000000e+00> : vector<8x1024xf32>
    %164 = tpu.matmul %163, %8, %cst_30 {dimension_numbers = #tpu.dot_dimension_numbers<[1], [0], [0], [1], [0, 0, 1, 1], [], []>} : vector<8x256xbf16>, vector<256x1024xbf16>, vector<8x1024xf32> -> vector<8x1024xf32>
    %165 = arith.addf %162, %164 : vector<8x1024xf32>
    %166 = vector.extract_strided_slice %165 {offsets = [0, 0], sizes = [8, 256], strides = [1, 1]} : vector<8x1024xf32> to vector<8x256xf32>
    %167 = arith.negf %166 : vector<8x256xf32>
    %168 = math.exp %167 : vector<8x256xf32>
    %cst_31 = arith.constant 1.000000e+00 : f32
    %169 = vector.broadcast %cst_31 : f32 to vector<8x256xf32>
    %170 = arith.addf %169, %168 : vector<8x256xf32>
    %171 = arith.divf %169, %170 : vector<8x256xf32>
    %172 = vector.extract_strided_slice %165 {offsets = [0, 256], sizes = [8, 256], strides = [1, 1]} : vector<8x1024xf32> to vector<8x256xf32>
    %173 = arith.negf %172 : vector<8x256xf32>
    %174 = math.exp %173 : vector<8x256xf32>
    %cst_32 = arith.constant 1.000000e+00 : f32
    %175 = vector.broadcast %cst_32 : f32 to vector<8x256xf32>
    %176 = arith.addf %175, %174 : vector<8x256xf32>
    %177 = arith.divf %175, %176 : vector<8x256xf32>
    %178 = vector.extract_strided_slice %165 {offsets = [0, 512], sizes = [8, 256], strides = [1, 1]} : vector<8x1024xf32> to vector<8x256xf32>
    %179 = math.tanh %178 : vector<8x256xf32>
    %180 = vector.extract_strided_slice %165 {offsets = [0, 768], sizes = [8, 256], strides = [1, 1]} : vector<8x1024xf32> to vector<8x256xf32>
    %181 = arith.negf %180 : vector<8x256xf32>
    %182 = math.exp %181 : vector<8x256xf32>
    %cst_33 = arith.constant 1.000000e+00 : f32
    %183 = vector.broadcast %cst_33 : f32 to vector<8x256xf32>
    %184 = arith.addf %183, %182 : vector<8x256xf32>
    %185 = arith.divf %183, %184 : vector<8x256xf32>
    %186 = arith.mulf %177, %158 : vector<8x256xf32>
    %187 = arith.mulf %171, %179 : vector<8x256xf32>
    %188 = arith.addf %186, %187 : vector<8x256xf32>
    %189 = math.tanh %188 : vector<8x256xf32>
    %190 = arith.mulf %185, %189 : vector<8x256xf32>
    %191 = vector.extract_strided_slice %7 {offsets = [6, 0, 0], sizes = [1, 8, 1024], strides = [1, 1, 1]} : vector<8x8x1024xf32> to vector<1x8x1024xf32>
    %192 = vector.shape_cast %191 : vector<1x8x1024xf32> to vector<8x1024xf32>
    %193 = arith.truncf %190 : vector<8x256xf32> to vector<8x256xbf16>
    %cst_34 = arith.constant dense<0.000000e+00> : vector<8x1024xf32>
    %194 = tpu.matmul %193, %8, %cst_34 {dimension_numbers = #tpu.dot_dimension_numbers<[1], [0], [0], [1], [0, 0, 1, 1], [], []>} : vector<8x256xbf16>, vector<256x1024xbf16>, vector<8x1024xf32> -> vector<8x1024xf32>
    %195 = arith.addf %192, %194 : vector<8x1024xf32>
    %196 = vector.extract_strided_slice %195 {offsets = [0, 0], sizes = [8, 256], strides = [1, 1]} : vector<8x1024xf32> to vector<8x256xf32>
    %197 = arith.negf %196 : vector<8x256xf32>
    %198 = math.exp %197 : vector<8x256xf32>
    %cst_35 = arith.constant 1.000000e+00 : f32
    %199 = vector.broadcast %cst_35 : f32 to vector<8x256xf32>
    %200 = arith.addf %199, %198 : vector<8x256xf32>
    %201 = arith.divf %199, %200 : vector<8x256xf32>
    %202 = vector.extract_strided_slice %195 {offsets = [0, 256], sizes = [8, 256], strides = [1, 1]} : vector<8x1024xf32> to vector<8x256xf32>
    %203 = arith.negf %202 : vector<8x256xf32>
    %204 = math.exp %203 : vector<8x256xf32>
    %cst_36 = arith.constant 1.000000e+00 : f32
    %205 = vector.broadcast %cst_36 : f32 to vector<8x256xf32>
    %206 = arith.addf %205, %204 : vector<8x256xf32>
    %207 = arith.divf %205, %206 : vector<8x256xf32>
    %208 = vector.extract_strided_slice %195 {offsets = [0, 512], sizes = [8, 256], strides = [1, 1]} : vector<8x1024xf32> to vector<8x256xf32>
    %209 = math.tanh %208 : vector<8x256xf32>
    %210 = vector.extract_strided_slice %195 {offsets = [0, 768], sizes = [8, 256], strides = [1, 1]} : vector<8x1024xf32> to vector<8x256xf32>
    %211 = arith.negf %210 : vector<8x256xf32>
    %212 = math.exp %211 : vector<8x256xf32>
    %cst_37 = arith.constant 1.000000e+00 : f32
    %213 = vector.broadcast %cst_37 : f32 to vector<8x256xf32>
    %214 = arith.addf %213, %212 : vector<8x256xf32>
    %215 = arith.divf %213, %214 : vector<8x256xf32>
    %216 = arith.mulf %207, %188 : vector<8x256xf32>
    %217 = arith.mulf %201, %209 : vector<8x256xf32>
    %218 = arith.addf %216, %217 : vector<8x256xf32>
    %219 = math.tanh %218 : vector<8x256xf32>
    %220 = arith.mulf %215, %219 : vector<8x256xf32>
    %221 = vector.extract_strided_slice %7 {offsets = [7, 0, 0], sizes = [1, 8, 1024], strides = [1, 1, 1]} : vector<8x8x1024xf32> to vector<1x8x1024xf32>
    %222 = vector.shape_cast %221 : vector<1x8x1024xf32> to vector<8x1024xf32>
    %223 = arith.truncf %220 : vector<8x256xf32> to vector<8x256xbf16>
    %cst_38 = arith.constant dense<0.000000e+00> : vector<8x1024xf32>
    %224 = tpu.matmul %223, %8, %cst_38 {dimension_numbers = #tpu.dot_dimension_numbers<[1], [0], [0], [1], [0, 0, 1, 1], [], []>} : vector<8x256xbf16>, vector<256x1024xbf16>, vector<8x1024xf32> -> vector<8x1024xf32>
    %225 = arith.addf %222, %224 : vector<8x1024xf32>
    %226 = vector.extract_strided_slice %225 {offsets = [0, 0], sizes = [8, 256], strides = [1, 1]} : vector<8x1024xf32> to vector<8x256xf32>
    %227 = arith.negf %226 : vector<8x256xf32>
    %228 = math.exp %227 : vector<8x256xf32>
    %cst_39 = arith.constant 1.000000e+00 : f32
    %229 = vector.broadcast %cst_39 : f32 to vector<8x256xf32>
    %230 = arith.addf %229, %228 : vector<8x256xf32>
    %231 = arith.divf %229, %230 : vector<8x256xf32>
    %232 = vector.extract_strided_slice %225 {offsets = [0, 256], sizes = [8, 256], strides = [1, 1]} : vector<8x1024xf32> to vector<8x256xf32>
    %233 = arith.negf %232 : vector<8x256xf32>
    %234 = math.exp %233 : vector<8x256xf32>
    %cst_40 = arith.constant 1.000000e+00 : f32
    %235 = vector.broadcast %cst_40 : f32 to vector<8x256xf32>
    %236 = arith.addf %235, %234 : vector<8x256xf32>
    %237 = arith.divf %235, %236 : vector<8x256xf32>
    %238 = vector.extract_strided_slice %225 {offsets = [0, 512], sizes = [8, 256], strides = [1, 1]} : vector<8x1024xf32> to vector<8x256xf32>
    %239 = math.tanh %238 : vector<8x256xf32>
    %240 = vector.extract_strided_slice %225 {offsets = [0, 768], sizes = [8, 256], strides = [1, 1]} : vector<8x1024xf32> to vector<8x256xf32>
    %241 = arith.negf %240 : vector<8x256xf32>
    %242 = math.exp %241 : vector<8x256xf32>
    %cst_41 = arith.constant 1.000000e+00 : f32
    %243 = vector.broadcast %cst_41 : f32 to vector<8x256xf32>
    %244 = arith.addf %243, %242 : vector<8x256xf32>
    %245 = arith.divf %243, %244 : vector<8x256xf32>
    %246 = arith.mulf %237, %218 : vector<8x256xf32>
    %247 = arith.mulf %231, %239 : vector<8x256xf32>
    %248 = arith.addf %246, %247 : vector<8x256xf32>
    %249 = math.tanh %248 : vector<8x256xf32>
    %250 = arith.mulf %245, %249 : vector<8x256xf32>
    %251 = arith.truncf %250 : vector<8x256xf32> to vector<8x256xbf16>
    %c0_42 = arith.constant 0 : index
    %c0_43 = arith.constant 0 : index
    %252 = vector.load %arg5[%c0_42, %c0_43] : memref<256x256xbf16, #tpu.memory_space<vmem>>, vector<256x256xbf16>
    %cst_44 = arith.constant dense<0.000000e+00> : vector<8x256xf32>
    %253 = tpu.matmul %251, %252, %cst_44 {dimension_numbers = #tpu.dot_dimension_numbers<[1], [0], [0], [1], [0, 0, 1, 1], [], []>} : vector<8x256xbf16>, vector<256x256xbf16>, vector<8x256xf32> -> vector<8x256xf32>
    %c0_45 = arith.constant 0 : index
    %c0_46 = arith.constant 0 : index
    %254 = vector.load %arg6[%c0_45, %c0_46] : memref<1x256xf32, #tpu.memory_space<vmem>>, vector<1x256xf32>
    %255 = vector.broadcast %254 : vector<1x256xf32> to vector<8x256xf32>
    %256 = arith.addf %253, %255 : vector<8x256xf32>
    %cst_47 = arith.constant 0.000000e+00 : f32
    %257 = vector.broadcast %cst_47 : f32 to vector<8x256xf32>
    %258 = arith.maximumf %256, %257 : vector<8x256xf32>
    %259 = arith.truncf %258 : vector<8x256xf32> to vector<8x256xbf16>
    %c0_48 = arith.constant 0 : index
    %c0_49 = arith.constant 0 : index
    %260 = vector.load %arg7[%c0_48, %c0_49] : memref<256x256xbf16, #tpu.memory_space<vmem>>, vector<256x256xbf16>
    %cst_50 = arith.constant dense<0.000000e+00> : vector<8x256xf32>
    %261 = tpu.matmul %259, %260, %cst_50 {dimension_numbers = #tpu.dot_dimension_numbers<[1], [0], [0], [1], [0, 0, 1, 1], [], []>} : vector<8x256xbf16>, vector<256x256xbf16>, vector<8x256xf32> -> vector<8x256xf32>
    %c0_51 = arith.constant 0 : index
    %c0_52 = arith.constant 0 : index
    %262 = vector.load %arg8[%c0_51, %c0_52] : memref<1x256xf32, #tpu.memory_space<vmem>>, vector<1x256xf32>
    %263 = vector.broadcast %262 : vector<1x256xf32> to vector<8x256xf32>
    %264 = arith.addf %261, %263 : vector<8x256xf32>
    %cst_53 = arith.constant 0.000000e+00 : f32
    %265 = vector.broadcast %cst_53 : f32 to vector<8x256xf32>
    %266 = arith.maximumf %264, %265 : vector<8x256xf32>
    %267 = arith.truncf %266 : vector<8x256xf32> to vector<8x256xbf16>
    %c0_54 = arith.constant 0 : index
    %c0_55 = arith.constant 0 : index
    %268 = vector.load %arg9[%c0_54, %c0_55] : memref<256x4xbf16, #tpu.memory_space<vmem>>, vector<256x4xbf16>
    %cst_56 = arith.constant dense<0.000000e+00> : vector<8x4xf32>
    %269 = tpu.matmul %267, %268, %cst_56 {dimension_numbers = #tpu.dot_dimension_numbers<[1], [0], [0], [1], [0, 0, 1, 1], [], []>} : vector<8x256xbf16>, vector<256x4xbf16>, vector<8x4xf32> -> vector<8x4xf32>
    %c0_57 = arith.constant 0 : index
    %c0_58 = arith.constant 0 : index
    %270 = vector.load %arg10[%c0_57, %c0_58] : memref<1x4xf32, #tpu.memory_space<vmem>>, vector<1x4xf32>
    %271 = vector.broadcast %270 : vector<1x4xf32> to vector<8x4xf32>
    %272 = arith.addf %269, %271 : vector<8x4xf32>
    %c0_59 = arith.constant 0 : index
    %c0_60 = arith.constant 0 : index
    %273 = vector.load %arg11[%c0_59, %c0_60] : memref<256x4xbf16, #tpu.memory_space<vmem>>, vector<256x4xbf16>
    %cst_61 = arith.constant dense<0.000000e+00> : vector<8x4xf32>
    %274 = tpu.matmul %267, %273, %cst_61 {dimension_numbers = #tpu.dot_dimension_numbers<[1], [0], [0], [1], [0, 0, 1, 1], [], []>} : vector<8x256xbf16>, vector<256x4xbf16>, vector<8x4xf32> -> vector<8x4xf32>
    %c0_62 = arith.constant 0 : index
    %c0_63 = arith.constant 0 : index
    %275 = vector.load %arg12[%c0_62, %c0_63] : memref<1x4xf32, #tpu.memory_space<vmem>>, vector<1x4xf32>
    %276 = vector.broadcast %275 : vector<1x4xf32> to vector<8x4xf32>
    %277 = arith.addf %274, %276 : vector<8x4xf32>
    %cst_64 = arith.constant -2.000000e+01 : f32
    %cst_65 = arith.constant 2.000000e+00 : f32
    %278 = vector.broadcast %cst_64 : f32 to vector<8x4xf32>
    %279 = arith.maximumf %278, %277 : vector<8x4xf32>
    %280 = vector.broadcast %cst_65 : f32 to vector<8x4xf32>
    %281 = arith.minimumf %280, %279 : vector<8x4xf32>
    %282 = math.exp %281 : vector<8x4xf32>
    %c0_66 = arith.constant 0 : index
    %c0_67 = arith.constant 0 : index
    %283 = vector.load %arg13[%c0_66, %c0_67] : memref<8x4xf32, #tpu.memory_space<vmem>>, vector<8x4xf32>
    %284 = arith.mulf %282, %283 : vector<8x4xf32>
    %285 = arith.addf %272, %284 : vector<8x4xf32>
    %286 = math.tanh %285 : vector<8x4xf32>
    %cst_68 = arith.constant -5.000000e-01 : f32
    %287 = vector.broadcast %cst_68 : f32 to vector<8x4xf32>
    %288 = arith.mulf %287, %283 : vector<8x4xf32>
    %289 = arith.mulf %288, %283 : vector<8x4xf32>
    %290 = arith.subf %289, %281 : vector<8x4xf32>
    %cst_69 = arith.constant 6.28318548 : f32
    %291 = math.log %cst_69 : f32
    %cst_70 = arith.constant 5.000000e-01 : f32
    %292 = arith.mulf %cst_70, %291 : f32
    %293 = vector.broadcast %292 : f32 to vector<8x4xf32>
    %294 = arith.subf %290, %293 : vector<8x4xf32>
    %cst_71 = arith.constant 2.000000e+00 : f32
    %295 = math.log %cst_71 : f32
    %296 = vector.broadcast %295 : f32 to vector<8x4xf32>
    %297 = arith.subf %296, %285 : vector<8x4xf32>
    %cst_72 = arith.constant -2.000000e+00 : f32
    %298 = vector.broadcast %cst_72 : f32 to vector<8x4xf32>
    %299 = arith.mulf %298, %285 : vector<8x4xf32>
    %cst_73 = arith.constant 0.000000e+00 : f32
    %300 = vector.broadcast %cst_73 : f32 to vector<8x4xf32>
    %301 = arith.maximumf %299, %300 : vector<8x4xf32>
    %302 = vector.broadcast %cst_73 : f32 to vector<8x4xf32>
    %303 = arith.subf %299, %302 : vector<8x4xf32>
    %304 = arith.cmpf one, %303, %303 : vector<8x4xf32>
    %305 = vector.broadcast %cst_73 : f32 to vector<8x4xf32>
    %306 = arith.addf %299, %305 : vector<8x4xf32>
    %307 = math.absf %303 : vector<8x4xf32>
    %cst_74 = arith.constant 0.000000e+00 : f32
    %308 = vector.broadcast %cst_74 : f32 to vector<8x4xf32>
    %309 = arith.subf %308, %307 : vector<8x4xf32>
    %310 = math.exp %309 : vector<8x4xf32>
    %311 = math.log1p %310 : vector<8x4xf32>
    %312 = arith.addf %301, %311 : vector<8x4xf32>
    %313 = arith.select %304, %306, %312 : vector<8x4xi1>, vector<8x4xf32>
    %314 = arith.subf %297, %313 : vector<8x4xf32>
    %cst_75 = arith.constant 2.000000e+00 : f32
    %315 = vector.broadcast %cst_75 : f32 to vector<8x4xf32>
    %316 = arith.mulf %315, %314 : vector<8x4xf32>
    %317 = arith.subf %294, %316 : vector<8x4xf32>
    %cst_76 = arith.constant dense<0.000000e+00> : vector<8xf32>
    %318 = vector.multi_reduction <add>, %317, %cst_76 [1] : vector<8x4xf32> to vector<8xf32>
    %319 = vector.shape_cast %318 : vector<8xf32> to vector<8x1xf32>
    %cst_77 = arith.constant 0.000000e+00 : f32
    %320 = vector.broadcast %cst_77 : f32 to vector<8x123xf32>
    %321 = tpu.concatenate %286, %319, %320 in 1 : vector<8x4xf32>, vector<8x1xf32>, vector<8x123xf32> -> vector<8x128xf32>
    %c0_78 = arith.constant 0 : index
    %c0_79 = arith.constant 0 : index
    %322 = vector.load %arg14[%c0_78, %c0_79] : memref<8x128xf32, #tpu.memory_space<vmem>>, vector<8x128xf32>
    tpu.vector_store %arg14[%c0_78, %c0_79], %321 {strides = array<i32>} : memref<8x128xf32, #tpu.memory_space<vmem>>, vector<8x128xf32>,
    return
  }
  func.func @transform_0(%arg0: i32) -> (i32, i32, i32) {
    %c0_i32 = arith.constant 0 : i32
    %c0_i32_0 = arith.constant 0 : i32
    %c0_i32_1 = arith.constant 0 : i32
    return %c0_i32, %arg0, %c0_i32_0 : i32, i32, i32
  }
  func.func @transform_1(%arg0: i32) -> (i32, i32) {
    %c0_i32 = arith.constant 0 : i32
    %c0_i32_0 = arith.constant 0 : i32
    %c0_i32_1 = arith.constant 0 : i32
    return %c0_i32, %c0_i32_0 : i32, i32
  }
  func.func @transform_2(%arg0: i32) -> (i32, i32) {
    %c0_i32 = arith.constant 0 : i32
    %c0_i32_0 = arith.constant 0 : i32
    %c0_i32_1 = arith.constant 0 : i32
    return %c0_i32, %c0_i32_0 : i32, i32
  }
  func.func @transform_3(%arg0: i32) -> (i32, i32) {
    %c0_i32 = arith.constant 0 : i32
    %c0_i32_0 = arith.constant 0 : i32
    %c0_i32_1 = arith.constant 0 : i32
    return %c0_i32, %c0_i32_0 : i32, i32
  }
  func.func @transform_4(%arg0: i32) -> (i32, i32) {
    %c0_i32 = arith.constant 0 : i32
    %c0_i32_0 = arith.constant 0 : i32
    %c0_i32_1 = arith.constant 0 : i32
    return %c0_i32, %c0_i32_0 : i32, i32
  }
  func.func @transform_5(%arg0: i32) -> (i32, i32) {
    %c0_i32 = arith.constant 0 : i32
    %c0_i32_0 = arith.constant 0 : i32
    %c0_i32_1 = arith.constant 0 : i32
    return %c0_i32, %c0_i32_0 : i32, i32
  }
  func.func @transform_6(%arg0: i32) -> (i32, i32) {
    %c0_i32 = arith.constant 0 : i32
    %c0_i32_0 = arith.constant 0 : i32
    %c0_i32_1 = arith.constant 0 : i32
    return %c0_i32, %c0_i32_0 : i32, i32
  }
  func.func @transform_7(%arg0: i32) -> (i32, i32) {
    %c0_i32 = arith.constant 0 : i32
    %c0_i32_0 = arith.constant 0 : i32
    %c0_i32_1 = arith.constant 0 : i32
    return %c0_i32, %c0_i32_0 : i32, i32
  }
  func.func @transform_8(%arg0: i32) -> (i32, i32) {
    %c0_i32 = arith.constant 0 : i32
    %c0_i32_0 = arith.constant 0 : i32
    %c0_i32_1 = arith.constant 0 : i32
    return %c0_i32, %c0_i32_0 : i32, i32
  }
  func.func @transform_9(%arg0: i32) -> (i32, i32) {
    %c0_i32 = arith.constant 0 : i32
    %c0_i32_0 = arith.constant 0 : i32
    %c0_i32_1 = arith.constant 0 : i32
    return %c0_i32, %c0_i32_0 : i32, i32
  }
  func.func @transform_10(%arg0: i32) -> (i32, i32) {
    %c0_i32 = arith.constant 0 : i32
    %c0_i32_0 = arith.constant 0 : i32
    %c0_i32_1 = arith.constant 0 : i32
    return %c0_i32, %c0_i32_0 : i32, i32
  }
  func.func @transform_11(%arg0: i32) -> (i32, i32) {
    %c0_i32 = arith.constant 0 : i32
    %c0_i32_0 = arith.constant 0 : i32
    %c0_i32_1 = arith.constant 0 : i32
    return %c0_i32, %c0_i32_0 : i32, i32
  }
  func.func @transform_12(%arg0: i32) -> (i32, i32) {
    %c0_i32 = arith.constant 0 : i32
    %c0_i32_0 = arith.constant 0 : i32
    return %arg0, %c0_i32 : i32, i32
  }
  func.func @transform_13(%arg0: i32) -> (i32, i32) {
    %c0_i32 = arith.constant 0 : i32
    %c0_i32_0 = arith.constant 0 : i32
    return %arg0, %c0_i32 : i32, i32
  }
}

</mosaic_0001>

<llo_original>
// kernel: tpu_custom_call.1
$region0: #{tpu_custom_call.1}
  #allocation0 [shape = 'u32[]', space=smem, size = 0x4, offset = 0x4, fixed_abs, tag = 'smem constant byte address 0x4 - core index']
  #allocation1 [shape = 'u32[144,128]{1,0:T(1,128)}', space=vmem, size = 0x12000, scoped, tag = 'internal scratch']
  %s0 = inlined_call_operand.vmem [shape: bf16[8,8,16], index: 0, kind: input, shape index: {}]
  %s1 = inlined_call_operand.hbm [shape: bf16[16,1024], index: 1, kind: input, shape index: {}]
  %s2 = inlined_call_operand.hbm [shape: bf16[256,1024], index: 2, kind: input, shape index: {}]
  %s3 = inlined_call_operand.hbm [shape: f32[1,1024], index: 3, kind: input, shape index: {}]
  %s4 = inlined_call_operand.vmem [shape: bf16[256,256], index: 4, kind: input, shape index: {}]
  %s5 = inlined_call_operand.vmem [shape: f32[1,256], index: 5, kind: input, shape index: {}]
  %s6 = inlined_call_operand.hbm [shape: bf16[256,256], index: 6, kind: input, shape index: {}]
  %s7 = inlined_call_operand.hbm [shape: f32[1,256], index: 7, kind: input, shape index: {}]
  %s8 = inlined_call_operand.vmem [shape: bf16[256,4], index: 8, kind: input, shape index: {}]
  %s9 = inlined_call_operand.vmem [shape: f32[1,4], index: 9, kind: input, shape index: {}]
  %s10 = inlined_call_operand.vmem [shape: bf16[256,4], index: 10, kind: input, shape index: {}]
  %s11 = inlined_call_operand.vmem [shape: f32[1,4], index: 11, kind: input, shape index: {}]
  %s12 = inlined_call_operand.vmem [shape: f32[8,4], index: 12, kind: input, shape index: {}]
  %s13 = inlined_call_operand.hbm [shape: f32[8,128], index: 13, kind: output, shape index: {}]
  %s14 = sld [smem:[#allocation0]]
  $region82: #{tpu_custom_call.1} parent=0
    _
  %s16 = ssub.s32 1, %s14
  %s17 = scalar_select 0, %s16, %s14
  $region1: #{tpu_custom_call.1} parent=0
    #allocation2 [shape = 'u8[32768]{0}', space=vmem, size = 0x8000, scoped, tag = 'input window, operand 1, single buffered']
    #allocation3 [shape = 's32[1]{0}', space=sflag, size = 0x4, scoped, tag = 'scoped memory for tpu_custom_call.1']
    #allocation4 [shape = 's32[1]{0}', space=sflag, size = 0x4, scoped, tag = 'scoped memory for tpu_custom_call.1']
    #allocation5 [shape = 'u8[524288]{0}', space=vmem, size = 0x80000, scoped, tag = 'input window, operand 2, single buffered']
    #allocation6 [shape = 's32[1]{0}', space=sflag, size = 0x4, scoped, tag = 'scoped memory for tpu_custom_call.1']
    #allocation7 [shape = 'u8[4096]{0}', space=vmem, size = 0x1000, scoped, tag = 'input window, operand 3, single buffered']
    #allocation8 [shape = 'u8[131072]{0}', space=vmem, size = 0x20000, scoped, tag = 'input window, operand 6, single buffered']
    #allocation9 [shape = 's32[1]{0}', space=sflag, size = 0x4, scoped, tag = 'scoped memory for tpu_custom_call.1']
    #allocation10 [shape = 'u8[1024]{0}', space=vmem, size = 0x400, scoped, tag = 'input window, operand 7, single buffered']
    #allocation11 [shape = 'u8[4096]{0}', space=vmem, size = 0x1000, scoped, tag = 'output window, operand 0, single buffered']
    %18 = vsyncpa [#allocation3], 0
    %19 = vsyncpa [#allocation6], 0
    %20 = vsyncpa [#allocation9], 0
    %21 = vsyncpa [#allocation4], 0
    // Predicated region
    $region2: #{tpu_custom_call.1} parent=1 // pred_check
      _
    $region3: #{tpu_custom_call.1} parent=1 // pred_check_branch
      %23 = sbr.rel (0) target = $region5
    $region4: #{tpu_custom_call.1} parent=1 // pred_region
      _
    $region5: #{tpu_custom_call.1} parent=1 // pred_fallthru
      _
    // Predicated region
    $region6: #{tpu_custom_call.1} parent=1 // pred_check
      _
    $region7: #{tpu_custom_call.1} parent=1 // pred_check_branch
      %25 = sbr.rel (0) target = $region9
    $region8: #{tpu_custom_call.1} parent=1 // pred_region
      %s27 = ssub.s32 1024, 1024
      %28 = vsyncadd [#allocation3], %s27
      %s29 = sshll.u32 [#allocation2], 4
      %s30 = int_to_ptr.vmem [resolvable:$true] %s29
      %35 = dma.hbm_to_vmem [thread:$0]  %s1, 1024, %s30, [#allocation3], 512, 512, 32
    $region9: #{tpu_custom_call.1} parent=1 // pred_fallthru
      _
    // Predicated region
    $region10: #{tpu_custom_call.1} parent=1 // pred_check
      _
    $region11: #{tpu_custom_call.1} parent=1 // pred_check_branch
      %37 = sbr.rel (0) target = $region13
    $region12: #{tpu_custom_call.1} parent=1 // pred_region
      %s39 = ssub.s32 16384, 16384
      %40 = vsyncadd [#allocation6], %s39
      %s41 = sshll.u32 [#allocation5], 4
      %s42 = int_to_ptr.vmem [resolvable:$true] %s41
      %47 = dma.hbm_to_vmem [thread:$0]  %s2, 16384, %s42, [#allocation6], 512, 512, 32
    $region13: #{tpu_custom_call.1} parent=1 // pred_fallthru
      _
    // Predicated region
    $region14: #{tpu_custom_call.1} parent=1 // pred_check
      _
    $region15: #{tpu_custom_call.1} parent=1 // pred_check_branch
      %49 = sbr.rel (0) target = $region17
    $region16: #{tpu_custom_call.1} parent=1 // pred_region
      %s51 = ssub.s32 128, 128
      %52 = vsyncadd [#allocation6], %s51
      %s54 = sshll.u32 [#allocation7], 4
      %s55 = int_to_ptr.vmem [resolvable:$true] %s54
      %57 = dma.hbm_to_vmem [thread:$0]  %s3, 128, %s55, [#allocation6]
    $region17: #{tpu_custom_call.1} parent=1 // pred_fallthru
      _
    // Predicated region
    $region18: #{tpu_custom_call.1} parent=1 // pred_check
      _
    $region19: #{tpu_custom_call.1} parent=1 // pred_check_branch
      %59 = sbr.rel (0) target = $region21
    $region20: #{tpu_custom_call.1} parent=1 // pred_region
      _
    $region21: #{tpu_custom_call.1} parent=1 // pred_fallthru
      _
    // Predicated region
    $region22: #{tpu_custom_call.1} parent=1 // pred_check
      _
    $region23: #{tpu_custom_call.1} parent=1 // pred_check_branch
      %61 = sbr.rel (0) target = $region25
    $region24: #{tpu_custom_call.1} parent=1 // pred_region
      _
    $region25: #{tpu_custom_call.1} parent=1 // pred_fallthru
      _
    // Predicated region
    $region26: #{tpu_custom_call.1} parent=1 // pred_check
      _
    $region27: #{tpu_custom_call.1} parent=1 // pred_check_branch
      %63 = sbr.rel (0) target = $region29
    $region28: #{tpu_custom_call.1} parent=1 // pred_region
      %s65 = ssub.s32 4096, 4096
      %66 = vsyncadd [#allocation9], %s65
      %s67 = sshll.u32 [#allocation8], 4
      %s68 = int_to_ptr.vmem [resolvable:$true] %s67
      %73 = dma.hbm_to_vmem [thread:$0]  %s6, 4096, %s68, [#allocation9], 128, 128, 8
    $region29: #{tpu_custom_call.1} parent=1 // pred_fallthru
      _
    // Predicated region
    $region30: #{tpu_custom_call.1} parent=1 // pred_check
      _
    $region31: #{tpu_custom_call.1} parent=1 // pred_check_branch
      %75 = sbr.rel (0) target = $region33
    $region32: #{tpu_custom_call.1} parent=1 // pred_region
      %s77 = ssub.s32 32, 32
      %78 = vsyncadd [#allocation9], %s77
      %s80 = sshll.u32 [#allocation10], 4
      %s81 = int_to_ptr.vmem [resolvable:$true] %s80
      %83 = dma.hbm_to_vmem [thread:$0]  %s7, 32, %s81, [#allocation9]
    $region33: #{tpu_custom_call.1} parent=1 // pred_fallthru
      _
    // Predicated region
    $region34: #{tpu_custom_call.1} parent=1 // pred_check
      _
    $region35: #{tpu_custom_call.1} parent=1 // pred_check_branch
      %85 = sbr.rel (0) target = $region37
    $region36: #{tpu_custom_call.1} parent=1 // pred_region
      _
    $region37: #{tpu_custom_call.1} parent=1 // pred_fallthru
      _
    // Predicated region
    $region38: #{tpu_custom_call.1} parent=1 // pred_check
      _
    $region39: #{tpu_custom_call.1} parent=1 // pred_check_branch
      %87 = sbr.rel (0) target = $region41
    $region40: #{tpu_custom_call.1} parent=1 // pred_region
      _
    $region41: #{tpu_custom_call.1} parent=1 // pred_fallthru
      _
    // Predicated region
    $region42: #{tpu_custom_call.1} parent=1 // pred_check
      _
    $region43: #{tpu_custom_call.1} parent=1 // pred_check_branch
      %89 = sbr.rel (0) target = $region45
    $region44: #{tpu_custom_call.1} parent=1 // pred_region
      _
    $region45: #{tpu_custom_call.1} parent=1 // pred_fallthru
      _
    // Predicated region
    $region46: #{tpu_custom_call.1} parent=1 // pred_check
      _
    $region47: #{tpu_custom_call.1} parent=1 // pred_check_branch
      %91 = sbr.rel (0) target = $region49
    $region48: #{tpu_custom_call.1} parent=1 // pred_region
      _
    $region49: #{tpu_custom_call.1} parent=1 // pred_fallthru
      _
    // Predicated region
    $region50: #{tpu_custom_call.1} parent=1 // pred_check
      _
    $region51: #{tpu_custom_call.1} parent=1 // pred_check_branch
      %93 = sbr.rel (0) target = $region53
    $region52: #{tpu_custom_call.1} parent=1 // pred_region
      _
    $region53: #{tpu_custom_call.1} parent=1 // pred_fallthru
      _
    // Predicated region
    $region54: #{tpu_custom_call.1} parent=1 // pred_check
      _
    $region55: #{tpu_custom_call.1} parent=1 // pred_check_branch
      %95 = sbr.rel (0) target = $region57
    $region56: #{tpu_custom_call.1} parent=1 // pred_region
      %96 = dma.done [#allocation3], 1024
    $region57: #{tpu_custom_call.1} parent=1 // pred_fallthru
      _
    // Predicated region
    $region58: #{tpu_custom_call.1} parent=1 // pred_check
      _
    $region59: #{tpu_custom_call.1} parent=1 // pred_check_branch
      %98 = sbr.rel (0) target = $region61
    $region60: #{tpu_custom_call.1} parent=1 // pred_region
      %99 = dma.done [#allocation6], 16384
    $region61: #{tpu_custom_call.1} parent=1 // pred_fallthru
      _
    // Predicated region
    $region62: #{tpu_custom_call.1} parent=1 // pred_check
      _
    $region63: #{tpu_custom_call.1} parent=1 // pred_check_branch
      %101 = sbr.rel (0) target = $region65
    $region64: #{tpu_custom_call.1} parent=1 // pred_region
      %102 = dma.done [#allocation6], 128
    $region65: #{tpu_custom_call.1} parent=1 // pred_fallthru
      _
    // Predicated region
    $region66: #{tpu_custom_call.1} parent=1 // pred_check
      _
    $region67: #{tpu_custom_call.1} parent=1 // pred_check_branch
      %104 = sbr.rel (0) target = $region69
    $region68: #{tpu_custom_call.1} parent=1 // pred_region
      %105 = dma.done [#allocation9], 4096
    $region69: #{tpu_custom_call.1} parent=1 // pred_fallthru
      _
    // Predicated region
    $region70: #{tpu_custom_call.1} parent=1 // pred_check
      _
    $region71: #{tpu_custom_call.1} parent=1 // pred_check_branch
      %107 = sbr.rel (0) target = $region73
    $region72: #{tpu_custom_call.1} parent=1 // pred_region
      %108 = dma.done [#allocation9], 32
    $region73: #{tpu_custom_call.1} parent=1 // pred_fallthru
      _
    %v110 = vld [vmem:[%s0] sm:$0xf]
    %v111 = vld [vmem:[%s0 + $0x4] sm:$0xf]
    %v112 = vld [vmem:[%s0 + $0x8] sm:$0xf]
    %v113 = vld [vmem:[%s0 + $0xc] sm:$0xf]
    %v114 = vld [vmem:[%s0 + $0x10] sm:$0xf]
    %v115 = vld [vmem:[%s0 + $0x14] sm:$0xf]
    %v116 = vld [vmem:[%s0 + $0x18] sm:$0xf]
    %v117 = vld [vmem:[%s0 + $0x1c] sm:$0xf]
    %v118 = vld [vmem:[#allocation2] sm:$0xff]
    %v119 = vld [vmem:[#allocation2 + $0x8] sm:$0xff]
    %v120 = vld [vmem:[#allocation2 + $0x10] sm:$0xff]
    %v121 = vld [vmem:[#allocation2 + $0x18] sm:$0xff]
    %v122 = vld [vmem:[#allocation2 + $0x20] sm:$0xff]
    %v123 = vld [vmem:[#allocation2 + $0x28] sm:$0xff]
    %v124 = vld [vmem:[#allocation2 + $0x30] sm:$0xff]
    %v125 = vld [vmem:[#allocation2 + $0x38] sm:$0xff]
    %v126 = vld [vmem:[#allocation7] sm:$0xff]
    %v128 = vlaneseq
    %v129 = vshrl.u32 %v128, 7
    %v130 = vsub.s32 0, %v129
    %v131 = vrot.slane %v126, %v130
    %v132 = vlaneseq
    %v133 = vshrl.u32 %v132, 7
    %v134 = vsub.s32 1, %v133
    %v135 = vrot.slane %v126, %v134
    %v136 = vlaneseq
    %v137 = vshrl.u32 %v136, 7
    %v138 = vsub.s32 2, %v137
    %v139 = vrot.slane %v126, %v138
    %v140 = vlaneseq
    %v141 = vshrl.u32 %v140, 7
    %v142 = vsub.s32 3, %v141
    %v143 = vrot.slane %v126, %v142
    %v144 = vlaneseq
    %v145 = vshrl.u32 %v144, 7
    %v146 = vsub.s32 4, %v145
    %v147 = vrot.slane %v126, %v146
    %v148 = vlaneseq
    %v149 = vshrl.u32 %v148, 7
    %v150 = vsub.s32 5, %v149
    %v151 = vrot.slane %v126, %v150
    %v152 = vlaneseq
    %v153 = vshrl.u32 %v152, 7
    %v154 = vsub.s32 6, %v153
    %v155 = vrot.slane %v126, %v154
    %v156 = vlaneseq
    %v157 = vshrl.u32 %v156, 7
    %v158 = vsub.s32 7, %v157
    %v159 = vrot.slane %v126, %v158
    %v176 = vunpack.c.l.b16 %v110
    %v177 = vunpack.c.l.b16 %v111
    %v178 = vunpack.c.l.b16 %v112
    %v179 = vunpack.c.l.b16 %v113
    %v180 = vunpack.c.l.b16 %v114
    %v181 = vunpack.c.l.b16 %v115
    %v182 = vunpack.c.l.b16 %v116
    %v183 = vunpack.c.l.b16 %v117
    %v184 = vpack.c.b16 %v177, %v176
    %v185 = vpack.c.b16 %v179, %v178
    %v186 = vpack.c.b16 %v181, %v180
    %v187 = vpack.c.b16 %v183, %v182
    %v196 = vunpack.c.l.b16 %v118
    %v197 = vunpack.c.h.b16 %v118
    %v198 = vunpack.c.l.b16 %v119
    %v199 = vunpack.c.h.b16 %v119
    %v200 = vunpack.c.l.b16 %v120
    %v201 = vunpack.c.h.b16 %v120
    %v202 = vunpack.c.l.b16 %v121
    %v203 = vunpack.c.h.b16 %v121
    %v204 = vunpack.c.l.b16 %v122
    %v205 = vunpack.c.h.b16 %v122
    %v206 = vunpack.c.l.b16 %v123
    %v207 = vunpack.c.h.b16 %v123
    %v208 = vunpack.c.l.b16 %v124
    %v209 = vunpack.c.h.b16 %v124
    %v210 = vunpack.c.l.b16 %v125
    %v211 = vunpack.c.h.b16 %v125
    %v212 = vpack.c.b16 %v204, %v196
    %v213 = vpack.c.b16 %v205, %v197
    %v214 = vpack.c.b16 %v206, %v198
    %v215 = vpack.c.b16 %v207, %v199
    %v216 = vpack.c.b16 %v208, %v200
    %v217 = vpack.c.b16 %v209, %v201
    %v218 = vpack.c.b16 %v210, %v202
    %v219 = vpack.c.b16 %v211, %v203
    %vm228 = vcmask 130048
    %v230 = vsel %vm228, %v184, 0
    %v233 = vsel %vm228, %v185, 0
    %v236 = vsel %vm228, %v186, 0
    %v239 = vsel %vm228, %v187, 0
    %241 = vmatprep.subr.bf16.mxu0 %v213
    %242 = vmatpush1.bf16.msra.mxu0 %v212
    %243 = vmatprep.subr.bf16.mxu0 0
    %244 = vmatpush1.bf16.msra.mxu0 0
    %245 = vmatprep.subr.bf16.mxu0 0
    %246 = vmatpush1.bf16.msra.mxu0 0
    %247 = vmatprep.subr.bf16.mxu0 0
    %248 = vmatpush1.bf16.msra.mxu0 0
    %249 = vmatprep.subr.bf16.mxu0 0
    %250 = vmatpush1.bf16.msra.mxu0 0
    %251 = vmatprep.subr.bf16.mxu0 0
    %252 = vmatpush1.bf16.msra.mxu0 0
    %253 = vmatprep.subr.bf16.mxu0 0
    %254 = vmatpush1.bf16.msra.mxu0 0
    %255 = vmatprep.subr.bf16.mxu0 0
    %256 = vmatpush1.bf16.msra.mxu0 0
    %257 = vmatprep.subr.bf16.mxu0 0
    %258 = vmatpush1.bf16.msra.mxu0 0
    %259 = vmatprep.subr.bf16.mxu0 0
    %260 = vmatpush1.bf16.msra.mxu0 0
    %261 = vmatprep.subr.bf16.mxu0 0
    %262 = vmatpush1.bf16.msra.mxu0 0
    %263 = vmatprep.subr.bf16.mxu0 0
    %264 = vmatpush1.bf16.msra.mxu0 0
    %265 = vmatprep.subr.bf16.mxu0 0
    %266 = vmatpush1.bf16.msra.mxu0 0
    %267 = vmatprep.subr.bf16.mxu0 0
    %268 = vmatpush1.bf16.msra.mxu0 0
    %269 = vmatprep.subr.bf16.mxu0 0
    %270 = vmatpush1.bf16.msra.mxu0 0
    %271 = vmatprep.subr.bf16.mxu0 0
    %272 = vmatpush1.bf16.msra.mxu0 0
    %273 = vmatprep.mubr.bf16.mxu0 0
    %274 = vmatmul.mubr.bf16.gmra.mrb[0].mxu0 %v230
    %v275 = vpop.f32.mrb[0].mxu0
    %v276 = vadd.f32 %v131, %v275
    %v277 = vpop.f32.mrb[0].mxu0
    %v278 = vadd.f32 %v135, %v277
    %v279 = vpop.f32.mrb[0].mxu0
    %v280 = vadd.f32 %v131, %v279
    %v281 = vpop.f32.mrb[0].mxu0
    %v282 = vadd.f32 %v135, %v281
    %283 = vmatprep.mubr.bf16.mxu0 0
    %284 = vmatmul.mubr.bf16.gmra.mrb[0].mxu0 %v233
    %v285 = vpop.f32.mrb[0].mxu0
    %v286 = vadd.f32 %v131, %v285
    %v287 = vpop.f32.mrb[0].mxu0
    %v288 = vadd.f32 %v135, %v287
    %v289 = vpop.f32.mrb[0].mxu0
    %v290 = vadd.f32 %v131, %v289
    %v291 = vpop.f32.mrb[0].mxu0
    %v292 = vadd.f32 %v135, %v291
    %293 = vmatprep.mubr.bf16.mxu0 0
    %294 = vmatmul.mubr.bf16.gmra.mrb[0].mxu0 %v236
    %v295 = vpop.f32.mrb[0].mxu0
    %v296 = vadd.f32 %v131, %v295
    %v297 = vpop.f32.mrb[0].mxu0
    %v298 = vadd.f32 %v135, %v297
    %v299 = vpop.f32.mrb[0].mxu0
    %v300 = vadd.f32 %v131, %v299
    %v301 = vpop.f32.mrb[0].mxu0
    %v302 = vadd.f32 %v135, %v301
    %303 = vmatprep.mubr.bf16.mxu0 0
    %304 = vmatmul.mubr.bf16.gmra.mrb[0].mxu0 %v239
    %v305 = vpop.f32.mrb[0].mxu0
    %v306 = vadd.f32 %v131, %v305
    %v307 = vpop.f32.mrb[0].mxu0
    %v308 = vadd.f32 %v135, %v307
    %v309 = vpop.f32.mrb[0].mxu0
    %v310 = vadd.f32 %v131, %v309
    %v311 = vpop.f32.mrb[0].mxu0
    %v312 = vadd.f32 %v135, %v311
    %313 = vdwg.mxu0
    %314 = vmatprep.subr.bf16.mxu0 %v215
    %315 = vmatpush1.bf16.msra.mxu0 %v214
    %316 = vmatprep.subr.bf16.mxu0 0
    %317 = vmatpush1.bf16.msra.mxu0 0
    %318 = vmatprep.subr.bf16.mxu0 0
    %319 = vmatpush1.bf16.msra.mxu0 0
    %320 = vmatprep.subr.bf16.mxu0 0
    %321 = vmatpush1.bf16.msra.mxu0 0
    %322 = vmatprep.subr.bf16.mxu0 0
    %323 = vmatpush1.bf16.msra.mxu0 0
    %324 = vmatprep.subr.bf16.mxu0 0
    %325 = vmatpush1.bf16.msra.mxu0 0
    %326 = vmatprep.subr.bf16.mxu0 0
    %327 = vmatpush1.bf16.msra.mxu0 0
    %328 = vmatprep.subr.bf16.mxu0 0
    %329 = vmatpush1.bf16.msra.mxu0 0
    %330 = vmatprep.subr.bf16.mxu0 0
    %331 = vmatpush1.bf16.msra.mxu0 0
    %332 = vmatprep.subr.bf16.mxu0 0
    %333 = vmatpush1.bf16.msra.mxu0 0
    %334 = vmatprep.subr.bf16.mxu0 0
    %335 = vmatpush1.bf16.msra.mxu0 0
    %336 = vmatprep.subr.bf16.mxu0 0
    %337 = vmatpush1.bf16.msra.mxu0 0
    %338 = vmatprep.subr.bf16.mxu0 0
    %339 = vmatpush1.bf16.msra.mxu0 0
    %340 = vmatprep.subr.bf16.mxu0 0
    %341 = vmatpush1.bf16.msra.mxu0 0
    %342 = vmatprep.subr.bf16.mxu0 0
    %343 = vmatpush1.bf16.msra.mxu0 0
    %344 = vmatprep.subr.bf16.mxu0 0
    %345 = vmatpush1.bf16.msra.mxu0 0
    %346 = vmatprep.mubr.bf16.mxu0 0
    %347 = vmatmul.mubr.bf16.gmra.mrb[0].mxu0 %v230
    %v348 = vpop.f32.mrb[0].mxu0
    %v349 = vadd.f32 %v139, %v348
    %v350 = vpop.f32.mrb[0].mxu0
    %v351 = vadd.f32 %v143, %v350
    %v352 = vpop.f32.mrb[0].mxu0
    %v353 = vadd.f32 %v139, %v352
    %v354 = vpop.f32.mrb[0].mxu0
    %v355 = vadd.f32 %v143, %v354
    %356 = vmatprep.mubr.bf16.mxu0 0
    %357 = vmatmul.mubr.bf16.gmra.mrb[0].mxu0 %v233
    %v358 = vpop.f32.mrb[0].mxu0
    %v359 = vadd.f32 %v139, %v358
    %v360 = vpop.f32.mrb[0].mxu0
    %v361 = vadd.f32 %v143, %v360
    %v362 = vpop.f32.mrb[0].mxu0
    %v363 = vadd.f32 %v139, %v362
    %v364 = vpop.f32.mrb[0].mxu0
    %v365 = vadd.f32 %v143, %v364
    %366 = vmatprep.mubr.bf16.mxu0 0
    %367 = vmatmul.mubr.bf16.gmra.mrb[0].mxu0 %v236
    %v368 = vpop.f32.mrb[0].mxu0
    %v369 = vadd.f32 %v139, %v368
    %v370 = vpop.f32.mrb[0].mxu0
    %v371 = vadd.f32 %v143, %v370
    %v372 = vpop.f32.mrb[0].mxu0
    %v373 = vadd.f32 %v139, %v372
    %v374 = vpop.f32.mrb[0].mxu0
    %v375 = vadd.f32 %v143, %v374
    %376 = vmatprep.mubr.bf16.mxu0 0
    %377 = vmatmul.mubr.bf16.gmra.mrb[0].mxu0 %v239
    %v378 = vpop.f32.mrb[0].mxu0
    %v379 = vadd.f32 %v139, %v378
    %v380 = vpop.f32.mrb[0].mxu0
    %v381 = vadd.f32 %v143, %v380
    %v382 = vpop.f32.mrb[0].mxu0
    %v383 = vadd.f32 %v139, %v382
    %v384 = vpop.f32.mrb[0].mxu0
    %v385 = vadd.f32 %v143, %v384
    %386 = vdwg.mxu0
    %387 = vmatprep.subr.bf16.mxu0 %v217
    %388 = vmatpush1.bf16.msra.mxu0 %v216
    %389 = vmatprep.subr.bf16.mxu0 0
    %390 = vmatpush1.bf16.msra.mxu0 0
    %391 = vmatprep.subr.bf16.mxu0 0
    %392 = vmatpush1.bf16.msra.mxu0 0
    %393 = vmatprep.subr.bf16.mxu0 0
    %394 = vmatpush1.bf16.msra.mxu0 0
    %395 = vmatprep.subr.bf16.mxu0 0
    %396 = vmatpush1.bf16.msra.mxu0 0
    %397 = vmatprep.subr.bf16.mxu0 0
    %398 = vmatpush1.bf16.msra.mxu0 0
    %399 = vmatprep.subr.bf16.mxu0 0
    %400 = vmatpush1.bf16.msra.mxu0 0
    %401 = vmatprep.subr.bf16.mxu0 0
    %402 = vmatpush1.bf16.msra.mxu0 0
    %403 = vmatprep.subr.bf16.mxu0 0
    %404 = vmatpush1.bf16.msra.mxu0 0
    %405 = vmatprep.subr.bf16.mxu0 0
    %406 = vmatpush1.bf16.msra.mxu0 0
    %407 = vmatprep.subr.bf16.mxu0 0
    %408 = vmatpush1.bf16.msra.mxu0 0
    %409 = vmatprep.subr.bf16.mxu0 0
    %410 = vmatpush1.bf16.msra.mxu0 0
    %411 = vmatprep.subr.bf16.mxu0 0
    %412 = vmatpush1.bf16.msra.mxu0 0
    %413 = vmatprep.subr.bf16.mxu0 0
    %414 = vmatpush1.bf16.msra.mxu0 0
    %415 = vmatprep.subr.bf16.mxu0 0
    %416 = vmatpush1.bf16.msra.mxu0 0
    %417 = vmatprep.subr.bf16.mxu0 0
    %418 = vmatpush1.bf16.msra.mxu0 0
    %419 = vmatprep.mubr.bf16.mxu0 0
    %420 = vmatmul.mubr.bf16.gmra.mrb[0].mxu0 %v230
    %v421 = vpop.f32.mrb[0].mxu0
    %v422 = vadd.f32 %v147, %v421
    %v423 = vpop.f32.mrb[0].mxu0
    %v424 = vadd.f32 %v151, %v423
    %v425 = vpop.f32.mrb[0].mxu0
    %v426 = vadd.f32 %v147, %v425
    %v427 = vpop.f32.mrb[0].mxu0
    %v428 = vadd.f32 %v151, %v427
    %429 = vmatprep.mubr.bf16.mxu0 0
    %430 = vmatmul.mubr.bf16.gmra.mrb[0].mxu0 %v233
    %v431 = vpop.f32.mrb[0].mxu0
    %v432 = vadd.f32 %v147, %v431
    %v433 = vpop.f32.mrb[0].mxu0
    %v434 = vadd.f32 %v151, %v433
    %v435 = vpop.f32.mrb[0].mxu0
    %v436 = vadd.f32 %v147, %v435
    %v437 = vpop.f32.mrb[0].mxu0
    %v438 = vadd.f32 %v151, %v437
    %439 = vmatprep.mubr.bf16.mxu0 0
    %440 = vmatmul.mubr.bf16.gmra.mrb[0].mxu0 %v236
    %v441 = vpop.f32.mrb[0].mxu0
    %v442 = vadd.f32 %v147, %v441
    %v443 = vpop.f32.mrb[0].mxu0
    %v444 = vadd.f32 %v151, %v443
    %v445 = vpop.f32.mrb[0].mxu0
    %v446 = vadd.f32 %v147, %v445
    %v447 = vpop.f32.mrb[0].mxu0
    %v448 = vadd.f32 %v151, %v447
    %449 = vmatprep.mubr.bf16.mxu0 0
    %450 = vmatmul.mubr.bf16.gmra.mrb[0].mxu0 %v239
    %v451 = vpop.f32.mrb[0].mxu0
    %v452 = vadd.f32 %v147, %v451
    %v453 = vpop.f32.mrb[0].mxu0
    %v454 = vadd.f32 %v151, %v453
    %v455 = vpop.f32.mrb[0].mxu0
    %v456 = vadd.f32 %v147, %v455
    %v457 = vpop.f32.mrb[0].mxu0
    %v458 = vadd.f32 %v151, %v457
    %459 = vdwg.mxu0
    %460 = vmatprep.subr.bf16.mxu0 %v219
    %461 = vmatpush1.bf16.msra.mxu0 %v218
    %462 = vmatprep.subr.bf16.mxu0 0
    %463 = vmatpush1.bf16.msra.mxu0 0
    %464 = vmatprep.subr.bf16.mxu0 0
    %465 = vmatpush1.bf16.msra.mxu0 0
    %466 = vmatprep.subr.bf16.mxu0 0
    %467 = vmatpush1.bf16.msra.mxu0 0
    %468 = vmatprep.subr.bf16.mxu0 0
    %469 = vmatpush1.bf16.msra.mxu0 0
    %470 = vmatprep.subr.bf16.mxu0 0
    %471 = vmatpush1.bf16.msra.mxu0 0
    %472 = vmatprep.subr.bf16.mxu0 0
    %473 = vmatpush1.bf16.msra.mxu0 0
    %474 = vmatprep.subr.bf16.mxu0 0
    %475 = vmatpush1.bf16.msra.mxu0 0
    %476 = vmatprep.subr.bf16.mxu0 0
    %477 = vmatpush1.bf16.msra.mxu0 0
    %478 = vmatprep.subr.bf16.mxu0 0
    %479 = vmatpush1.bf16.msra.mxu0 0
    %480 = vmatprep.subr.bf16.mxu0 0
    %481 = vmatpush1.bf16.msra.mxu0 0
    %482 = vmatprep.subr.bf16.mxu0 0
    %483 = vmatpush1.bf16.msra.mxu0 0
    %484 = vmatprep.subr.bf16.mxu0 0
    %485 = vmatpush1.bf16.msra.mxu0 0
    %486 = vmatprep.subr.bf16.mxu0 0
    %487 = vmatpush1.bf16.msra.mxu0 0
    %488 = vmatprep.subr.bf16.mxu0 0
    %489 = vmatpush1.bf16.msra.mxu0 0
    %490 = vmatprep.subr.bf16.mxu0 0
    %491 = vmatpush1.bf16.msra.mxu0 0
    %492 = vmatprep.mubr.bf16.mxu0 0
    %493 = vmatmul.mubr.bf16.gmra.mrb[0].mxu0 %v230
    %v494 = vpop.f32.mrb[0].mxu0
    %v495 = vadd.f32 %v155, %v494
    %v496 = vpop.f32.mrb[0].mxu0
    %v497 = vadd.f32 %v159, %v496
    %v498 = vpop.f32.mrb[0].mxu0
    %v499 = vadd.f32 %v155, %v498
    %v500 = vpop.f32.mrb[0].mxu0
    %v501 = vadd.f32 %v159, %v500
    %502 = vmatprep.mubr.bf16.mxu0 0
    %503 = vmatmul.mubr.bf16.gmra.mrb[0].mxu0 %v233
    %v504 = vpop.f32.mrb[0].mxu0
    %v505 = vadd.f32 %v155, %v504
    %v506 = vpop.f32.mrb[0].mxu0
    %v507 = vadd.f32 %v159, %v506
    %v508 = vpop.f32.mrb[0].mxu0
    %v509 = vadd.f32 %v155, %v508
    %v510 = vpop.f32.mrb[0].mxu0
    %v511 = vadd.f32 %v159, %v510
    %512 = vmatprep.mubr.bf16.mxu0 0
    %513 = vmatmul.mubr.bf16.gmra.mrb[0].mxu0 %v236
    %v514 = vpop.f32.mrb[0].mxu0
    %v515 = vadd.f32 %v155, %v514
    %v516 = vpop.f32.mrb[0].mxu0
    %v517 = vadd.f32 %v159, %v516
    %v518 = vpop.f32.mrb[0].mxu0
    %v519 = vadd.f32 %v155, %v518
    %v520 = vpop.f32.mrb[0].mxu0
    %v521 = vadd.f32 %v159, %v520
    %522 = vmatprep.mubr.bf16.mxu0 0
    %523 = vmatmul.mubr.bf16.gmra.mrb[0].mxu0 %v239
    %v524 = vpop.f32.mrb[0].mxu0
    %v525 = vadd.f32 %v155, %v524
    %v526 = vpop.f32.mrb[0].mxu0
    %v527 = vadd.f32 %v159, %v526
    %v528 = vpop.f32.mrb[0].mxu0
    %v529 = vadd.f32 %v155, %v528
    %v530 = vpop.f32.mrb[0].mxu0
    %v531 = vadd.f32 %v159, %v530
    %532 = vdwg.mxu0
    %v533 = vld [vmem:[#allocation5] sm:$0xff]
    %v534 = vld [vmem:[#allocation5 + $0x8] sm:$0xff]
    %v535 = vld [vmem:[#allocation5 + $0x10] sm:$0xff]
    %v536 = vld [vmem:[#allocation5 + $0x18] sm:$0xff]
    %v537 = vld [vmem:[#allocation5 + $0x20] sm:$0xff]
    %v538 = vld [vmem:[#allocation5 + $0x28] sm:$0xff]
    %v539 = vld [vmem:[#allocation5 + $0x30] sm:$0xff]
    %v540 = vld [vmem:[#allocation5 + $0x38] sm:$0xff]
    %v541 = vld [vmem:[#allocation5 + $0x40] sm:$0xff]
    %v542 = vld [vmem:[#allocation5 + $0x48] sm:$0xff]
    %v543 = vld [vmem:[#allocation5 + $0x50] sm:$0xff]
    %v544 = vld [vmem:[#allocation5 + $0x58] sm:$0xff]
    %v545 = vld [vmem:[#allocation5 + $0x60] sm:$0xff]
    %v546 = vld [vmem:[#allocation5 + $0x68] sm:$0xff]
    %v547 = vld [vmem:[#allocation5 + $0x70] sm:$0xff]
    %v548 = vld [vmem:[#allocation5 + $0x78] sm:$0xff]
    %v549 = vld [vmem:[#allocation5 + $0x80] sm:$0xff]
    %v550 = vld [vmem:[#allocation5 + $0x88] sm:$0xff]
    %v551 = vld [vmem:[#allocation5 + $0x90] sm:$0xff]
    %v552 = vld [vmem:[#allocation5 + $0x98] sm:$0xff]
    %v553 = vld [vmem:[#allocation5 + $0xa0] sm:$0xff]
    %v554 = vld [vmem:[#allocation5 + $0xa8] sm:$0xff]
    %v555 = vld [vmem:[#allocation5 + $0xb0] sm:$0xff]
    %v556 = vld [vmem:[#allocation5 + $0xb8] sm:$0xff]
    %v557 = vld [vmem:[#allocation5 + $0xc0] sm:$0xff]
    %v558 = vld [vmem:[#allocation5 + $0xc8] sm:$0xff]
    %v559 = vld [vmem:[#allocation5 + $0xd0] sm:$0xff]
    %v560 = vld [vmem:[#allocation5 + $0xd8] sm:$0xff]
    %v561 = vld [vmem:[#allocation5 + $0xe0] sm:$0xff]
    %v562 = vld [vmem:[#allocation5 + $0xe8] sm:$0xff]
    %v563 = vld [vmem:[#allocation5 + $0xf0] sm:$0xff]
    %v564 = vld [vmem:[#allocation5 + $0xf8] sm:$0xff]
    %v565 = vld [vmem:[#allocation5 + $0x100] sm:$0xff]
    %v566 = vld [vmem:[#allocation5 + $0x108] sm:$0xff]
    %v567 = vld [vmem:[#allocation5 + $0x110] sm:$0xff]
    %v568 = vld [vmem:[#allocation5 + $0x118] sm:$0xff]
    %v569 = vld [vmem:[#allocation5 + $0x120] sm:$0xff]
    %v570 = vld [vmem:[#allocation5 + $0x128] sm:$0xff]
    %v571 = vld [vmem:[#allocation5 + $0x130] sm:$0xff]
    %v572 = vld [vmem:[#allocation5 + $0x138] sm:$0xff]
    %v573 = vld [vmem:[#allocation5 + $0x140] sm:$0xff]
    %v574 = vld [vmem:[#allocation5 + $0x148] sm:$0xff]
    %v575 = vld [vmem:[#allocation5 + $0x150] sm:$0xff]
    %v576 = vld [vmem:[#allocation5 + $0x158] sm:$0xff]
    %v577 = vld [vmem:[#allocation5 + $0x160] sm:$0xff]
    %v578 = vld [vmem:[#allocation5 + $0x168] sm:$0xff]
    %v579 = vld [vmem:[#allocation5 + $0x170] sm:$0xff]
    %v580 = vld [vmem:[#allocation5 + $0x178] sm:$0xff]
    %v581 = vld [vmem:[#allocation5 + $0x180] sm:$0xff]
    %v582 = vld [vmem:[#allocation5 + $0x188] sm:$0xff]
    %v583 = vld [vmem:[#allocation5 + $0x190] sm:$0xff]
    %v584 = vld [vmem:[#allocation5 + $0x198] sm:$0xff]
    %v585 = vld [vmem:[#allocation5 + $0x1a0] sm:$0xff]
    %v586 = vld [vmem:[#allocation5 + $0x1a8] sm:$0xff]
    %v587 = vld [vmem:[#allocation5 + $0x1b0] sm:$0xff]
    %v588 = vld [vmem:[#allocation5 + $0x1b8] sm:$0xff]
    %v589 = vld [vmem:[#allocation5 + $0x1c0] sm:$0xff]
    %v590 = vld [vmem:[#allocation5 + $0x1c8] sm:$0xff]
    %v591 = vld [vmem:[#allocation5 + $0x1d0] sm:$0xff]
    %v592 = vld [vmem:[#allocation5 + $0x1d8] sm:$0xff]
    %v593 = vld [vmem:[#allocation5 + $0x1e0] sm:$0xff]
    %v594 = vld [vmem:[#allocation5 + $0x1e8] sm:$0xff]
    %v595 = vld [vmem:[#allocation5 + $0x1f0] sm:$0xff]
    %v596 = vld [vmem:[#allocation5 + $0x1f8] sm:$0xff]
    %v597 = vld [vmem:[#allocation5 + $0x200] sm:$0xff]
    %v598 = vld [vmem:[#allocation5 + $0x208] sm:$0xff]
    %v599 = vld [vmem:[#allocation5 + $0x210] sm:$0xff]
    %v600 = vld [vmem:[#allocation5 + $0x218] sm:$0xff]
    %v601 = vld [vmem:[#allocation5 + $0x220] sm:$0xff]
    %v602 = vld [vmem:[#allocation5 + $0x228] sm:$0xff]
    %v603 = vld [vmem:[#allocation5 + $0x230] sm:$0xff]
    %v604 = vld [vmem:[#allocation5 + $0x238] sm:$0xff]
    %v605 = vld [vmem:[#allocation5 + $0x240] sm:$0xff]
    %v606 = vld [vmem:[#allocation5 + $0x248] sm:$0xff]
    %v607 = vld [vmem:[#allocation5 + $0x250] sm:$0xff]
    %v608 = vld [vmem:[#allocation5 + $0x258] sm:$0xff]
    %v609 = vld [vmem:[#allocation5 + $0x260] sm:$0xff]
    %v610 = vld [vmem:[#allocation5 + $0x268] sm:$0xff]
    %v611 = vld [vmem:[#allocation5 + $0x270] sm:$0xff]
    %v612 = vld [vmem:[#allocation5 + $0x278] sm:$0xff]
    %v613 = vld [vmem:[#allocation5 + $0x280] sm:$0xff]
    %v614 = vld [vmem:[#allocation5 + $0x288] sm:$0xff]
    %v615 = vld [vmem:[#allocation5 + $0x290] sm:$0xff]
    %v616 = vld [vmem:[#allocation5 + $0x298] sm:$0xff]
    %v617 = vld [vmem:[#allocation5 + $0x2a0] sm:$0xff]
    %v618 = vld [vmem:[#allocation5 + $0x2a8] sm:$0xff]
    %v619 = vld [vmem:[#allocation5 + $0x2b0] sm:$0xff]
    %v620 = vld [vmem:[#allocation5 + $0x2b8] sm:$0xff]
    %v621 = vld [vmem:[#allocation5 + $0x2c0] sm:$0xff]
    %v622 = vld [vmem:[#allocation5 + $0x2c8] sm:$0xff]
    %v623 = vld [vmem:[#allocation5 + $0x2d0] sm:$0xff]
    %v624 = vld [vmem:[#allocation5 + $0x2d8] sm:$0xff]
    %v625 = vld [vmem:[#allocation5 + $0x2e0] sm:$0xff]
    %v626 = vld [vmem:[#allocation5 + $0x2e8] sm:$0xff]
    %v627 = vld [vmem:[#allocation5 + $0x2f0] sm:$0xff]
    %v628 = vld [vmem:[#allocation5 + $0x2f8] sm:$0xff]
    %v629 = vld [vmem:[#allocation5 + $0x300] sm:$0xff]
    %v630 = vld [vmem:[#allocation5 + $0x308] sm:$0xff]
    %v631 = vld [vmem:[#allocation5 + $0x310] sm:$0xff]
    %v632 = vld [vmem:[#allocation5 + $0x318] sm:$0xff]
    %v633 = vld [vmem:[#allocation5 + $0x320] sm:$0xff]
    %v634 = vld [vmem:[#allocation5 + $0x328] sm:$0xff]
    %v635 = vld [vmem:[#allocation5 + $0x330] sm:$0xff]
    %v636 = vld [vmem:[#allocation5 + $0x338] sm:$0xff]
    %v637 = vld [vmem:[#allocation5 + $0x340] sm:$0xff]
    %v638 = vld [vmem:[#allocation5 + $0x348] sm:$0xff]
    %v639 = vld [vmem:[#allocation5 + $0x350] sm:$0xff]
    %v640 = vld [vmem:[#allocation5 + $0x358] sm:$0xff]
    %v641 = vld [vmem:[#allocation5 + $0x360] sm:$0xff]
    %v642 = vld [vmem:[#allocation5 + $0x368] sm:$0xff]
    %v643 = vld [vmem:[#allocation5 + $0x370] sm:$0xff]
    %v644 = vld [vmem:[#allocation5 + $0x378] sm:$0xff]
    %v645 = vld [vmem:[#allocation5 + $0x380] sm:$0xff]
    %v646 = vld [vmem:[#allocation5 + $0x388] sm:$0xff]
    %v647 = vld [vmem:[#allocation5 + $0x390] sm:$0xff]
    %v648 = vld [vmem:[#allocation5 + $0x398] sm:$0xff]
    %v649 = vld [vmem:[#allocation5 + $0x3a0] sm:$0xff]
    %v650 = vld [vmem:[#allocation5 + $0x3a8] sm:$0xff]
    %v651 = vld [vmem:[#allocation5 + $0x3b0] sm:$0xff]
    %v652 = vld [vmem:[#allocation5 + $0x3b8] sm:$0xff]
    %v653 = vld [vmem:[#allocation5 + $0x3c0] sm:$0xff]
    %v654 = vld [vmem:[#allocation5 + $0x3c8] sm:$0xff]
    %v655 = vld [vmem:[#allocation5 + $0x3d0] sm:$0xff]
    %v656 = vld [vmem:[#allocation5 + $0x3d8] sm:$0xff]
    %v657 = vld [vmem:[#allocation5 + $0x3e0] sm:$0xff]
    %v658 = vld [vmem:[#allocation5 + $0x3e8] sm:$0xff]
    %v659 = vld [vmem:[#allocation5 + $0x3f0] sm:$0xff]
    %v660 = vld [vmem:[#allocation5 + $0x3f8] sm:$0xff]
    %v789 = vunpack.c.l.b16 %v533
    %v790 = vunpack.c.h.b16 %v533
    %v791 = vunpack.c.l.b16 %v534
    %v792 = vunpack.c.h.b16 %v534
    %v793 = vunpack.c.l.b16 %v535
    %v794 = vunpack.c.h.b16 %v535
    %v795 = vunpack.c.l.b16 %v536
    %v796 = vunpack.c.h.b16 %v536
    %v797 = vunpack.c.l.b16 %v537
    %v798 = vunpack.c.h.b16 %v537
    %v799 = vunpack.c.l.b16 %v538
    %v800 = vunpack.c.h.b16 %v538
    %v801 = vunpack.c.l.b16 %v539
    %v802 = vunpack.c.h.b16 %v539
    %v803 = vunpack.c.l.b16 %v540
    %v804 = vunpack.c.h.b16 %v540
    %v805 = vunpack.c.l.b16 %v541
    %v806 = vunpack.c.h.b16 %v541
    %v807 = vunpack.c.l.b16 %v542
    %v808 = vunpack.c.h.b16 %v542
    %v809 = vunpack.c.l.b16 %v543
    %v810 = vunpack.c.h.b16 %v543
    %v811 = vunpack.c.l.b16 %v544
    %v812 = vunpack.c.h.b16 %v544
    %v813 = vunpack.c.l.b16 %v545
    %v814 = vunpack.c.h.b16 %v545
    %v815 = vunpack.c.l.b16 %v546
    %v816 = vunpack.c.h.b16 %v546
    %v817 = vunpack.c.l.b16 %v547
    %v818 = vunpack.c.h.b16 %v547
    %v819 = vunpack.c.l.b16 %v548
    %v820 = vunpack.c.h.b16 %v548
    %v821 = vunpack.c.l.b16 %v549
    %v822 = vunpack.c.h.b16 %v549
    %v823 = vunpack.c.l.b16 %v550
    %v824 = vunpack.c.h.b16 %v550
    %v825 = vunpack.c.l.b16 %v551
    %v826 = vunpack.c.h.b16 %v551
    %v827 = vunpack.c.l.b16 %v552
    %v828 = vunpack.c.h.b16 %v552
    %v829 = vunpack.c.l.b16 %v553
    %v830 = vunpack.c.h.b16 %v553
    %v831 = vunpack.c.l.b16 %v554
    %v832 = vunpack.c.h.b16 %v554
    %v833 = vunpack.c.l.b16 %v555
    %v834 = vunpack.c.h.b16 %v555
    %v835 = vunpack.c.l.b16 %v556
    %v836 = vunpack.c.h.b16 %v556
    %v837 = vunpack.c.l.b16 %v557
    %v838 = vunpack.c.h.b16 %v557
    %v839 = vunpack.c.l.b16 %v558
    %v840 = vunpack.c.h.b16 %v558
    %v841 = vunpack.c.l.b16 %v559
    %v842 = vunpack.c.h.b16 %v559
    %v843 = vunpack.c.l.b16 %v560
    %v844 = vunpack.c.h.b16 %v560
    %v845 = vunpack.c.l.b16 %v561
    %v846 = vunpack.c.h.b16 %v561
    %v847 = vunpack.c.l.b16 %v562
    %v848 = vunpack.c.h.b16 %v562
    %v849 = vunpack.c.l.b16 %v563
    %v850 = vunpack.c.h.b16 %v563
    %v851 = vunpack.c.l.b16 %v564
    %v852 = vunpack.c.h.b16 %v564
    %v853 = vunpack.c.l.b16 %v565
    %v854 = vunpack.c.h.b16 %v565
    %v855 = vunpack.c.l.b16 %v566
    %v856 = vunpack.c.h.b16 %v566
    %v857 = vunpack.c.l.b16 %v567
    %v858 = vunpack.c.h.b16 %v567
    %v859 = vunpack.c.l.b16 %v568
    %v860 = vunpack.c.h.b16 %v568
    %v861 = vunpack.c.l.b16 %v569
    %v862 = vunpack.c.h.b16 %v569
    %v863 = vunpack.c.l.b16 %v570
    %v864 = vunpack.c.h.b16 %v570
    %v865 = vunpack.c.l.b16 %v571
    %v866 = vunpack.c.h.b16 %v571
    %v867 = vunpack.c.l.b16 %v572
    %v868 = vunpack.c.h.b16 %v572
    %v869 = vunpack.c.l.b16 %v573
    %v870 = vunpack.c.h.b16 %v573
    %v871 = vunpack.c.l.b16 %v574
    %v872 = vunpack.c.h.b16 %v574
    %v873 = vunpack.c.l.b16 %v575
    %v874 = vunpack.c.h.b16 %v575
    %v875 = vunpack.c.l.b16 %v576
    %v876 = vunpack.c.h.b16 %v576
    %v877 = vunpack.c.l.b16 %v577
    %v878 = vunpack.c.h.b16 %v577
    %v879 = vunpack.c.l.b16 %v578
    %v880 = vunpack.c.h.b16 %v578
    %v881 = vunpack.c.l.b16 %v579
    %v882 = vunpack.c.h.b16 %v579
    %v883 = vunpack.c.l.b16 %v580
    %v884 = vunpack.c.h.b16 %v580
    %v885 = vunpack.c.l.b16 %v581
    %v886 = vunpack.c.h.b16 %v581
    %v887 = vunpack.c.l.b16 %v582
    %v888 = vunpack.c.h.b16 %v582
    %v889 = vunpack.c.l.b16 %v583
    %v890 = vunpack.c.h.b16 %v583
    %v891 = vunpack.c.l.b16 %v584
    %v892 = vunpack.c.h.b16 %v584
    %v893 = vunpack.c.l.b16 %v585
    %v894 = vunpack.c.h.b16 %v585
    %v895 = vunpack.c.l.b16 %v586
    %v896 = vunpack.c.h.b16 %v586
    %v897 = vunpack.c.l.b16 %v587
    %v898 = vunpack.c.h.b16 %v587
    %v899 = vunpack.c.l.b16 %v588
    %v900 = vunpack.c.h.b16 %v588
    %v901 = vunpack.c.l.b16 %v589
    %v902 = vunpack.c.h.b16 %v589
    %v903 = vunpack.c.l.b16 %v590
    %v904 = vunpack.c.h.b16 %v590
    %v905 = vunpack.c.l.b16 %v591
    %v906 = vunpack.c.h.b16 %v591
    %v907 = vunpack.c.l.b16 %v592
    %v908 = vunpack.c.h.b16 %v592
    %v909 = vunpack.c.l.b16 %v593
    %v910 = vunpack.c.h.b16 %v593
    %v911 = vunpack.c.l.b16 %v594
    %v912 = vunpack.c.h.b16 %v594
    %v913 = vunpack.c.l.b16 %v595
    %v914 = vunpack.c.h.b16 %v595
    %v915 = vunpack.c.l.b16 %v596
    %v916 = vunpack.c.h.b16 %v596
    %v917 = vunpack.c.l.b16 %v597
    %v918 = vunpack.c.h.b16 %v597
    %v919 = vunpack.c.l.b16 %v598
    %v920 = vunpack.c.h.b16 %v598
    %v921 = vunpack.c.l.b16 %v599
    %v922 = vunpack.c.h.b16 %v599
    %v923 = vunpack.c.l.b16 %v600
    %v924 = vunpack.c.h.b16 %v600
    %v925 = vunpack.c.l.b16 %v601
    %v926 = vunpack.c.h.b16 %v601
    %v927 = vunpack.c.l.b16 %v602
    %v928 = vunpack.c.h.b16 %v602
    %v929 = vunpack.c.l.b16 %v603
    %v930 = vunpack.c.h.b16 %v603
    %v931 = vunpack.c.l.b16 %v604
    %v932 = vunpack.c.h.b16 %v604
    %v933 = vunpack.c.l.b16 %v605
    %v934 = vunpack.c.h.b16 %v605
    %v935 = vunpack.c.l.b16 %v606
    %v936 = vunpack.c.h.b16 %v606
    %v937 = vunpack.c.l.b16 %v607
    %v938 = vunpack.c.h.b16 %v607
    %v939 = vunpack.c.l.b16 %v608
    %v940 = vunpack.c.h.b16 %v608
    %v941 = vunpack.c.l.b16 %v609
    %v942 = vunpack.c.h.b16 %v609
    %v943 = vunpack.c.l.b16 %v610
    %v944 = vunpack.c.h.b16 %v610
    %v945 = vunpack.c.l.b16 %v611
    %v946 = vunpack.c.h.b16 %v611
    %v947 = vunpack.c.l.b16 %v612
    %v948 = vunpack.c.h.b16 %v612
    %v949 = vunpack.c.l.b16 %v613
    %v950 = vunpack.c.h.b16 %v613
    %v951 = vunpack.c.l.b16 %v614
    %v952 = vunpack.c.h.b16 %v614
    %v953 = vunpack.c.l.b16 %v615
    %v954 = vunpack.c.h.b16 %v615
    %v955 = vunpack.c.l.b16 %v616
    %v956 = vunpack.c.h.b16 %v616
    %v957 = vunpack.c.l.b16 %v617
    %v958 = vunpack.c.h.b16 %v617
    %v959 = vunpack.c.l.b16 %v618
    %v960 = vunpack.c.h.b16 %v618
    %v961 = vunpack.c.l.b16 %v619
    %v962 = vunpack.c.h.b16 %v619
    %v963 = vunpack.c.l.b16 %v620
    %v964 = vunpack.c.h.b16 %v620
    %v965 = vunpack.c.l.b16 %v621
    %v966 = vunpack.c.h.b16 %v621
    %v967 = vunpack.c.l.b16 %v622
    %v968 = vunpack.c.h.b16 %v622
    %v969 = vunpack.c.l.b16 %v623
    %v970 = vunpack.c.h.b16 %v623
    %v971 = vunpack.c.l.b16 %v624
    %v972 = vunpack.c.h.b16 %v624
    %v973 = vunpack.c.l.b16 %v625
    %v974 = vunpack.c.h.b16 %v625
    %v975 = vunpack.c.l.b16 %v626
    %v976 = vunpack.c.h.b16 %v626
    %v977 = vunpack.c.l.b16 %v627
    %v978 = vunpack.c.h.b16 %v627
    %v979 = vunpack.c.l.b16 %v628
    %v980 = vunpack.c.h.b16 %v628
    %v981 = vunpack.c.l.b16 %v629
    %v982 = vunpack.c.h.b16 %v629
    %v983 = vunpack.c.l.b16 %v630
    %v984 = vunpack.c.h.b16 %v630
    %v985 = vunpack.c.l.b16 %v631
    %v986 = vunpack.c.h.b16 %v631
    %v987 = vunpack.c.l.b16 %v632
    %v988 = vunpack.c.h.b16 %v632
    %v989 = vunpack.c.l.b16 %v633
    %v990 = vunpack.c.h.b16 %v633
    %v991 = vunpack.c.l.b16 %v634
    %v992 = vunpack.c.h.b16 %v634
    %v993 = vunpack.c.l.b16 %v635
    %v994 = vunpack.c.h.b16 %v635
    %v995 = vunpack.c.l.b16 %v636
    %v996 = vunpack.c.h.b16 %v636
    %v997 = vunpack.c.l.b16 %v637
    %v998 = vunpack.c.h.b16 %v637
    %v999 = vunpack.c.l.b16 %v638
    %v1000 = vunpack.c.h.b16 %v638
    %v1001 = vunpack.c.l.b16 %v639
    %v1002 = vunpack.c.h.b16 %v639
    %v1003 = vunpack.c.l.b16 %v640
    %v1004 = vunpack.c.h.b16 %v640
    %v1005 = vunpack.c.l.b16 %v641
    %v1006 = vunpack.c.h.b16 %v641
    %v1007 = vunpack.c.l.b16 %v642
    %v1008 = vunpack.c.h.b16 %v642
    %v1009 = vunpack.c.l.b16 %v643
    %v1010 = vunpack.c.h.b16 %v643
    %v1011 = vunpack.c.l.b16 %v644
    %v1012 = vunpack.c.h.b16 %v644
    %v1013 = vunpack.c.l.b16 %v645
    %v1014 = vunpack.c.h.b16 %v645
    %v1015 = vunpack.c.l.b16 %v646
    %v1016 = vunpack.c.h.b16 %v646
    %v1017 = vunpack.c.l.b16 %v647
    %v1018 = vunpack.c.h.b16 %v647
    %v1019 = vunpack.c.l.b16 %v648
    %v1020 = vunpack.c.h.b16 %v648
    %v1021 = vunpack.c.l.b16 %v649
    %v1022 = vunpack.c.h.b16 %v649
    %v1023 = vunpack.c.l.b16 %v650
    %v1024 = vunpack.c.h.b16 %v650
    %v1025 = vunpack.c.l.b16 %v651
    %v1026 = vunpack.c.h.b16 %v651
    %v1027 = vunpack.c.l.b16 %v652
    %v1028 = vunpack.c.h.b16 %v652
    %v1029 = vunpack.c.l.b16 %v653
    %v1030 = vunpack.c.h.b16 %v653
    %v1031 = vunpack.c.l.b16 %v654
    %v1032 = vunpack.c.h.b16 %v654
    %v1033 = vunpack.c.l.b16 %v655
    %v1034 = vunpack.c.h.b16 %v655
    %v1035 = vunpack.c.l.b16 %v656
    %v1036 = vunpack.c.h.b16 %v656
    %v1037 = vunpack.c.l.b16 %v657
    %v1038 = vunpack.c.h.b16 %v657
    %v1039 = vunpack.c.l.b16 %v658
    %v1040 = vunpack.c.h.b16 %v658
    %v1041 = vunpack.c.l.b16 %v659
    %v1042 = vunpack.c.h.b16 %v659
    %v1043 = vunpack.c.l.b16 %v660
    %v1044 = vunpack.c.h.b16 %v660
    %v1045 = vpack.c.b16 %v797, %v789
    %v1046 = vpack.c.b16 %v798, %v790
    %v1047 = vpack.c.b16 %v799, %v791
    %v1048 = vpack.c.b16 %v800, %v792
    %v1049 = vpack.c.b16 %v801, %v793
    %v1050 = vpack.c.b16 %v802, %v794
    %v1051 = vpack.c.b16 %v803, %v795
    %v1052 = vpack.c.b16 %v804, %v796
    %v1053 = vpack.c.b16 %v813, %v805
    %v1054 = vpack.c.b16 %v814, %v806
    %v1055 = vpack.c.b16 %v815, %v807
    %v1056 = vpack.c.b16 %v816, %v808
    %v1057 = vpack.c.b16 %v817, %v809
    %v1058 = vpack.c.b16 %v818, %v810
    %v1059 = vpack.c.b16 %v819, %v811
    %v1060 = vpack.c.b16 %v820, %v812
    %v1061 = vpack.c.b16 %v829, %v821
    %v1062 = vpack.c.b16 %v830, %v822
    %v1063 = vpack.c.b16 %v831, %v823
    %v1064 = vpack.c.b16 %v832, %v824
    %v1065 = vpack.c.b16 %v833, %v825
    %v1066 = vpack.c.b16 %v834, %v826
    %v1067 = vpack.c.b16 %v835, %v827
    %v1068 = vpack.c.b16 %v836, %v828
    %v1069 = vpack.c.b16 %v845, %v837
    %v1070 = vpack.c.b16 %v846, %v838
    %v1071 = vpack.c.b16 %v847, %v839
    %v1072 = vpack.c.b16 %v848, %v840
    %v1073 = vpack.c.b16 %v849, %v841
    %v1074 = vpack.c.b16 %v850, %v842
    %v1075 = vpack.c.b16 %v851, %v843
    %v1076 = vpack.c.b16 %v852, %v844
    %v1077 = vpack.c.b16 %v861, %v853
    %v1078 = vpack.c.b16 %v862, %v854
    %v1079 = vpack.c.b16 %v863, %v855
    %v1080 = vpack.c.b16 %v864, %v856
    %v1081 = vpack.c.b16 %v865, %v857
    %v1082 = vpack.c.b16 %v866, %v858
    %v1083 = vpack.c.b16 %v867, %v859
    %v1084 = vpack.c.b16 %v868, %v860
    %v1085 = vpack.c.b16 %v877, %v869
    %v1086 = vpack.c.b16 %v878, %v870
    %v1087 = vpack.c.b16 %v879, %v871
    %v1088 = vpack.c.b16 %v880, %v872
    %v1089 = vpack.c.b16 %v881, %v873
    %v1090 = vpack.c.b16 %v882, %v874
    %v1091 = vpack.c.b16 %v883, %v875
    %v1092 = vpack.c.b16 %v884, %v876
    %v1093 = vpack.c.b16 %v893, %v885
    %v1094 = vpack.c.b16 %v894, %v886
    %v1095 = vpack.c.b16 %v895, %v887
    %v1096 = vpack.c.b16 %v896, %v888
    %v1097 = vpack.c.b16 %v897, %v889
    %v1098 = vpack.c.b16 %v898, %v890
    %v1099 = vpack.c.b16 %v899, %v891
    %v1100 = vpack.c.b16 %v900, %v892
    %v1101 = vpack.c.b16 %v909, %v901
    %v1102 = vpack.c.b16 %v910, %v902
    %v1103 = vpack.c.b16 %v911, %v903
    %v1104 = vpack.c.b16 %v912, %v904
    %v1105 = vpack.c.b16 %v913, %v905
    %v1106 = vpack.c.b16 %v914, %v906
    %v1107 = vpack.c.b16 %v915, %v907
    %v1108 = vpack.c.b16 %v916, %v908
    %v1109 = vpack.c.b16 %v925, %v917
    %v1110 = vpack.c.b16 %v926, %v918
    %v1111 = vpack.c.b16 %v927, %v919
    %v1112 = vpack.c.b16 %v928, %v920
    %v1113 = vpack.c.b16 %v929, %v921
    %v1114 = vpack.c.b16 %v930, %v922
    %v1115 = vpack.c.b16 %v931, %v923
    %v1116 = vpack.c.b16 %v932, %v924
    %v1117 = vpack.c.b16 %v941, %v933
    %v1118 = vpack.c.b16 %v942, %v934
    %v1119 = vpack.c.b16 %v943, %v935
    %v1120 = vpack.c.b16 %v944, %v936
    %v1121 = vpack.c.b16 %v945, %v937
    %v1122 = vpack.c.b16 %v946, %v938
    %v1123 = vpack.c.b16 %v947, %v939
    %v1124 = vpack.c.b16 %v948, %v940
    %v1125 = vpack.c.b16 %v957, %v949
    %v1126 = vpack.c.b16 %v958, %v950
    %v1127 = vpack.c.b16 %v959, %v951
    %v1128 = vpack.c.b16 %v960, %v952
    %v1129 = vpack.c.b16 %v961, %v953
    %v1130 = vpack.c.b16 %v962, %v954
    %v1131 = vpack.c.b16 %v963, %v955
    %v1132 = vpack.c.b16 %v964, %v956
    %v1133 = vpack.c.b16 %v973, %v965
    %v1134 = vpack.c.b16 %v974, %v966
    %v1135 = vpack.c.b16 %v975, %v967
    %v1136 = vpack.c.b16 %v976, %v968
    %v1137 = vpack.c.b16 %v977, %v969
    %v1138 = vpack.c.b16 %v978, %v970
    %v1139 = vpack.c.b16 %v979, %v971
    %v1140 = vpack.c.b16 %v980, %v972
    %v1141 = vpack.c.b16 %v989, %v981
    %v1142 = vpack.c.b16 %v990, %v982
    %v1143 = vpack.c.b16 %v991, %v983
    %v1144 = vpack.c.b16 %v992, %v984
    %v1145 = vpack.c.b16 %v993, %v985
    %v1146 = vpack.c.b16 %v994, %v986
    %v1147 = vpack.c.b16 %v995, %v987
    %v1148 = vpack.c.b16 %v996, %v988
    %v1149 = vpack.c.b16 %v1005, %v997
    %v1150 = vpack.c.b16 %v1006, %v998
    %v1151 = vpack.c.b16 %v1007, %v999
    %v1152 = vpack.c.b16 %v1008, %v1000
    %v1153 = vpack.c.b16 %v1009, %v1001
    %v1154 = vpack.c.b16 %v1010, %v1002
    %v1155 = vpack.c.b16 %v1011, %v1003
    %v1156 = vpack.c.b16 %v1012, %v1004
    %v1157 = vpack.c.b16 %v1021, %v1013
    %v1158 = vpack.c.b16 %v1022, %v1014
    %v1159 = vpack.c.b16 %v1023, %v1015
    %v1160 = vpack.c.b16 %v1024, %v1016
    %v1161 = vpack.c.b16 %v1025, %v1017
    %v1162 = vpack.c.b16 %v1026, %v1018
    %v1163 = vpack.c.b16 %v1027, %v1019
    %v1164 = vpack.c.b16 %v1028, %v1020
    %v1165 = vpack.c.b16 %v1037, %v1029
    %v1166 = vpack.c.b16 %v1038, %v1030
    %v1167 = vpack.c.b16 %v1039, %v1031
    %v1168 = vpack.c.b16 %v1040, %v1032
    %v1169 = vpack.c.b16 %v1041, %v1033
    %v1170 = vpack.c.b16 %v1042, %v1034
    %v1171 = vpack.c.b16 %v1043, %v1035
    %v1172 = vpack.c.b16 %v1044, %v1036
    %1301 = vmatprep.subr.bf16.mxu0 %v1046
    %1302 = vmatpush1.bf16.msra.mxu0 %v1045
    %1303 = vmatprep.subr.bf16.mxu0 %v1054
    %1304 = vmatpush1.bf16.msra.mxu0 %v1053
    %1305 = vmatprep.subr.bf16.mxu0 %v1062
    %1306 = vmatpush1.bf16.msra.mxu0 %v1061
    %1307 = vmatprep.subr.bf16.mxu0 %v1070
    %1308 = vmatpush1.bf16.msra.mxu0 %v1069
    %1309 = vmatprep.subr.bf16.mxu0 %v1078
    %1310 = vmatpush1.bf16.msra.mxu0 %v1077
    %1311 = vmatprep.subr.bf16.mxu0 %v1086
    %1312 = vmatpush1.bf16.msra.mxu0 %v1085
    %1313 = vmatprep.subr.bf16.mxu0 %v1094
    %1314 = vmatpush1.bf16.msra.mxu0 %v1093
    %1315 = vmatprep.subr.bf16.mxu0 %v1102
    %1316 = vmatpush1.bf16.msra.mxu0 %v1101
    %1317 = vmatprep.subr.bf16.mxu0 %v1110
    %1318 = vmatpush1.bf16.msra.mxu0 %v1109
    %1319 = vmatprep.subr.bf16.mxu0 %v1118
    %1320 = vmatpush1.bf16.msra.mxu0 %v1117
    %1321 = vmatprep.subr.bf16.mxu0 %v1126
    %1322 = vmatpush1.bf16.msra.mxu0 %v1125
    %1323 = vmatprep.subr.bf16.mxu0 %v1134
    %1324 = vmatpush1.bf16.msra.mxu0 %v1133
    %1325 = vmatprep.subr.bf16.mxu0 %v1142
    %1326 = vmatpush1.bf16.msra.mxu0 %v1141
    %1327 = vmatprep.subr.bf16.mxu0 %v1150
    %1328 = vmatpush1.bf16.msra.mxu0 %v1149
    %1329 = vmatprep.subr.bf16.mxu0 %v1158
    %1330 = vmatpush1.bf16.msra.mxu0 %v1157
    %1331 = vmatprep.subr.bf16.mxu0 %v1166
    %1332 = vmatpush1.bf16.msra.mxu0 %v1165
    %1333 = vmatprep.mubr.bf16.mxu0 0
    %1334 = vmatmul.mubr.bf16.gmra.mrb[0].mxu0 0
    %v1335 = vpop.f32.mrb[0].mxu0
    %v1336 = vadd.f32 0.0, %v1335
    %v1337 = vpop.f32.mrb[0].mxu0
    %v1338 = vadd.f32 0.0, %v1337
    %v1339 = vpop.f32.mrb[0].mxu0
    %v1340 = vpop.f32.mrb[0].mxu0
    %1341 = vdwg.mxu0
    %1342 = vmatprep.subr.bf16.mxu0 %v1048
    %1343 = vmatpush1.bf16.msra.mxu0 %v1047
    %1344 = vmatprep.subr.bf16.mxu0 %v1056
    %1345 = vmatpush1.bf16.msra.mxu0 %v1055
    %1346 = vmatprep.subr.bf16.mxu0 %v1064
    %1347 = vmatpush1.bf16.msra.mxu0 %v1063
    %1348 = vmatprep.subr.bf16.mxu0 %v1072
    %1349 = vmatpush1.bf16.msra.mxu0 %v1071
    %1350 = vmatprep.subr.bf16.mxu0 %v1080
    %1351 = vmatpush1.bf16.msra.mxu0 %v1079
    %1352 = vmatprep.subr.bf16.mxu0 %v1088
    %1353 = vmatpush1.bf16.msra.mxu0 %v1087
    %1354 = vmatprep.subr.bf16.mxu0 %v1096
    %1355 = vmatpush1.bf16.msra.mxu0 %v1095
    %1356 = vmatprep.subr.bf16.mxu0 %v1104
    %1357 = vmatpush1.bf16.msra.mxu0 %v1103
    %1358 = vmatprep.subr.bf16.mxu0 %v1112
    %1359 = vmatpush1.bf16.msra.mxu0 %v1111
    %1360 = vmatprep.subr.bf16.mxu0 %v1120
    %1361 = vmatpush1.bf16.msra.mxu0 %v1119
    %1362 = vmatprep.subr.bf16.mxu0 %v1128
    %1363 = vmatpush1.bf16.msra.mxu0 %v1127
    %1364 = vmatprep.subr.bf16.mxu0 %v1136
    %1365 = vmatpush1.bf16.msra.mxu0 %v1135
    %1366 = vmatprep.subr.bf16.mxu0 %v1144
    %1367 = vmatpush1.bf16.msra.mxu0 %v1143
    %1368 = vmatprep.subr.bf16.mxu0 %v1152
    %1369 = vmatpush1.bf16.msra.mxu0 %v1151
    %1370 = vmatprep.subr.bf16.mxu0 %v1160
    %1371 = vmatpush1.bf16.msra.mxu0 %v1159
    %1372 = vmatprep.subr.bf16.mxu0 %v1168
    %1373 = vmatpush1.bf16.msra.mxu0 %v1167
    %1374 = vmatprep.mubr.bf16.mxu0 0
    %1375 = vmatmul.mubr.bf16.gmra.mrb[0].mxu0 0
    %v1376 = vpop.f32.mrb[0].mxu0
    %v1377 = vadd.f32 0.0, %v1376
    %v1378 = vpop.f32.mrb[0].mxu0
    %v1379 = vadd.f32 0.0, %v1378
    %v1380 = vpop.f32.mrb[0].mxu0
    %v1381 = vpop.f32.mrb[0].mxu0
    %1382 = vdwg.mxu0
    %1383 = vmatprep.subr.bf16.mxu0 %v1050
    %1384 = vmatpush1.bf16.msra.mxu0 %v1049
    %1385 = vmatprep.subr.bf16.mxu0 %v1058
    %1386 = vmatpush1.bf16.msra.mxu0 %v1057
    %1387 = vmatprep.subr.bf16.mxu0 %v1066
    %1388 = vmatpush1.bf16.msra.mxu0 %v1065
    %1389 = vmatprep.subr.bf16.mxu0 %v1074
    %1390 = vmatpush1.bf16.msra.mxu0 %v1073
    %1391 = vmatprep.subr.bf16.mxu0 %v1082
    %1392 = vmatpush1.bf16.msra.mxu0 %v1081
    %1393 = vmatprep.subr.bf16.mxu0 %v1090
    %1394 = vmatpush1.bf16.msra.mxu0 %v1089
    %1395 = vmatprep.subr.bf16.mxu0 %v1098
    %1396 = vmatpush1.bf16.msra.mxu0 %v1097
    %1397 = vmatprep.subr.bf16.mxu0 %v1106
    %1398 = vmatpush1.bf16.msra.mxu0 %v1105
    %1399 = vmatprep.subr.bf16.mxu0 %v1114
    %1400 = vmatpush1.bf16.msra.mxu0 %v1113
    %1401 = vmatprep.subr.bf16.mxu0 %v1122
    %1402 = vmatpush1.bf16.msra.mxu0 %v1121
    %1403 = vmatprep.subr.bf16.mxu0 %v1130
    %1404 = vmatpush1.bf16.msra.mxu0 %v1129
    %1405 = vmatprep.subr.bf16.mxu0 %v1138
    %1406 = vmatpush1.bf16.msra.mxu0 %v1137
    %1407 = vmatprep.subr.bf16.mxu0 %v1146
    %1408 = vmatpush1.bf16.msra.mxu0 %v1145
    %1409 = vmatprep.subr.bf16.mxu0 %v1154
    %1410 = vmatpush1.bf16.msra.mxu0 %v1153
    %1411 = vmatprep.subr.bf16.mxu0 %v1162
    %1412 = vmatpush1.bf16.msra.mxu0 %v1161
    %1413 = vmatprep.subr.bf16.mxu0 %v1170
    %1414 = vmatpush1.bf16.msra.mxu0 %v1169
    %1415 = vmatprep.mubr.bf16.mxu0 0
    %1416 = vmatmul.mubr.bf16.gmra.mrb[0].mxu0 0
    %v1417 = vpop.f32.mrb[0].mxu0
    %v1418 = vadd.f32 0.0, %v1417
    %v1419 = vpop.f32.mrb[0].mxu0
    %v1420 = vadd.f32 0.0, %v1419
    %v1421 = vpop.f32.mrb[0].mxu0
    %v1422 = vpop.f32.mrb[0].mxu0
    %1423 = vdwg.mxu0
    %1424 = vmatprep.subr.bf16.mxu0 %v1052
    %1425 = vmatpush1.bf16.msra.mxu0 %v1051
    %1426 = vmatprep.subr.bf16.mxu0 %v1060
    %1427 = vmatpush1.bf16.msra.mxu0 %v1059
    %1428 = vmatprep.subr.bf16.mxu0 %v1068
    %1429 = vmatpush1.bf16.msra.mxu0 %v1067
    %1430 = vmatprep.subr.bf16.mxu0 %v1076
    %1431 = vmatpush1.bf16.msra.mxu0 %v1075
    %1432 = vmatprep.subr.bf16.mxu0 %v1084
    %1433 = vmatpush1.bf16.msra.mxu0 %v1083
    %1434 = vmatprep.subr.bf16.mxu0 %v1092
    %1435 = vmatpush1.bf16.msra.mxu0 %v1091
    %1436 = vmatprep.subr.bf16.mxu0 %v1100
    %1437 = vmatpush1.bf16.msra.mxu0 %v1099
    %1438 = vmatprep.subr.bf16.mxu0 %v1108
    %1439 = vmatpush1.bf16.msra.mxu0 %v1107
    %1440 = vmatprep.subr.bf16.mxu0 %v1116
    %1441 = vmatpush1.bf16.msra.mxu0 %v1115
    %1442 = vmatprep.subr.bf16.mxu0 %v1124
    %1443 = vmatpush1.bf16.msra.mxu0 %v1123
    %1444 = vmatprep.subr.bf16.mxu0 %v1132
    %1445 = vmatpush1.bf16.msra.mxu0 %v1131
    %1446 = vmatprep.subr.bf16.mxu0 %v1140
    %1447 = vmatpush1.bf16.msra.mxu0 %v1139
    %1448 = vmatprep.subr.bf16.mxu0 %v1148
    %1449 = vmatpush1.bf16.msra.mxu0 %v1147
    %1450 = vmatprep.subr.bf16.mxu0 %v1156
    %1451 = vmatpush1.bf16.msra.mxu0 %v1155
    %1452 = vmatprep.subr.bf16.mxu0 %v1164
    %1453 = vmatpush1.bf16.msra.mxu0 %v1163
    %1454 = vmatprep.subr.bf16.mxu0 %v1172
    %1455 = vmatpush1.bf16.msra.mxu0 %v1171
    %1456 = vmatprep.mubr.bf16.mxu0 0
    %1457 = vmatmul.mubr.bf16.gmra.mrb[0].mxu0 0
    %v1458 = vpop.f32.mrb[0].mxu0
    %v1459 = vadd.f32 0.0, %v1458
    %v1460 = vpop.f32.mrb[0].mxu0
    %v1461 = vadd.f32 0.0, %v1460
    %v1462 = vpop.f32.mrb[0].mxu0
    %v1463 = vpop.f32.mrb[0].mxu0
    %1464 = vdwg.mxu0
    %v1465 = vadd.f32 %v276, %v1336
    %v1466 = vadd.f32 %v278, %v1338
    %v1467 = vadd.f32 %v349, %v1377
    %v1468 = vadd.f32 %v351, %v1379
    %v1469 = vadd.f32 %v422, %v1418
    %v1470 = vadd.f32 %v424, %v1420
    %v1471 = vadd.f32 %v495, %v1459
    %v1472 = vadd.f32 %v497, %v1461
    %v1473 = vxor.u32 %v1465, 2147483648
    %v1474 = vxor.u32 %v1466, 2147483648
    %v1475 = vmul.f32 %v1473, 1.442695
    %v1476 = vpow.pop %v1475
    %v1477 = vmul.f32 %v1474, 1.442695
    %v1478 = vpow.pop %v1477
    %v1479 = vadd.f32 %v1476, 1.0
    %v1480 = vadd.f32 %v1478, 1.0
    %v1481 = vrcp.pop %v1479
    %v1482 = vmul.f32 1.0, %v1481
    %v1483 = vrcp.pop %v1480
    %v1484 = vmul.f32 1.0, %v1483
    %v1485 = vxor.u32 %v1467, 2147483648
    %v1486 = vxor.u32 %v1468, 2147483648
    %v1487 = vmul.f32 %v1485, 1.442695
    %v1488 = vpow.pop %v1487
    %v1489 = vmul.f32 %v1486, 1.442695
    %v1490 = vpow.pop %v1489
    %v1491 = vadd.f32 %v1488, 1.0
    %v1492 = vadd.f32 %v1490, 1.0
    %v1493 = vrcp.pop %v1491
    %v1494 = vmul.f32 1.0, %v1493
    %v1495 = vrcp.pop %v1492
    %v1496 = vmul.f32 1.0, %v1495
    %v1497 = vtanh.pop %v1469
    %v1498 = vtanh.pop %v1470
    %v1499 = vxor.u32 %v1471, 2147483648
    %v1500 = vxor.u32 %v1472, 2147483648
    %v1501 = vmul.f32 %v1499, 1.442695
    %v1502 = vpow.pop %v1501
    %v1503 = vmul.f32 %v1500, 1.442695
    %v1504 = vpow.pop %v1503
    %v1505 = vadd.f32 %v1502, 1.0
    %v1506 = vadd.f32 %v1504, 1.0
    %v1507 = vrcp.pop %v1505
    %v1508 = vmul.f32 1.0, %v1507
    %v1509 = vrcp.pop %v1506
    %v1510 = vmul.f32 1.0, %v1509
    %v1511 = vmul.f32 %v1494, 0.0
    %v1512 = vmul.f32 %v1496, 0.0
    %v1513 = vmul.f32 %v1482, %v1497
    %v1514 = vmul.f32 %v1484, %v1498
    %v1515 = vadd.f32 %v1511, %v1513
    %v1516 = vadd.f32 %v1512, %v1514
    %v1517 = vtanh.pop %v1515
    %v1518 = vtanh.pop %v1516
    %v1519 = vmul.f32 %v1508, %v1517
    %v1520 = vmul.f32 %v1510, %v1518
    %v1521 = vpack.c.bf16 %v1519, %v1519
    %v1522 = vpack.c.bf16 %v1520, %v1520
    %1523 = vmatprep.subr.bf16.mxu0 %v1046
    %1524 = vmatpush1.bf16.msra.mxu0 %v1045
    %1525 = vmatprep.subr.bf16.mxu0 %v1054
    %1526 = vmatpush1.bf16.msra.mxu0 %v1053
    %1527 = vmatprep.subr.bf16.mxu0 %v1062
    %1528 = vmatpush1.bf16.msra.mxu0 %v1061
    %1529 = vmatprep.subr.bf16.mxu0 %v1070
    %1530 = vmatpush1.bf16.msra.mxu0 %v1069
    %1531 = vmatprep.subr.bf16.mxu0 %v1078
    %1532 = vmatpush1.bf16.msra.mxu0 %v1077
    %1533 = vmatprep.subr.bf16.mxu0 %v1086
    %1534 = vmatpush1.bf16.msra.mxu0 %v1085
    %1535 = vmatprep.subr.bf16.mxu0 %v1094
    %1536 = vmatpush1.bf16.msra.mxu0 %v1093
    %1537 = vmatprep.subr.bf16.mxu0 %v1102
    %1538 = vmatpush1.bf16.msra.mxu0 %v1101
    %1539 = vmatprep.subr.bf16.mxu0 %v1110
    %1540 = vmatpush1.bf16.msra.mxu0 %v1109
    %1541 = vmatprep.subr.bf16.mxu0 %v1118
    %1542 = vmatpush1.bf16.msra.mxu0 %v1117
    %1543 = vmatprep.subr.bf16.mxu0 %v1126
    %1544 = vmatpush1.bf16.msra.mxu0 %v1125
    %1545 = vmatprep.subr.bf16.mxu0 %v1134
    %1546 = vmatpush1.bf16.msra.mxu0 %v1133
    %1547 = vmatprep.subr.bf16.mxu0 %v1142
    %1548 = vmatpush1.bf16.msra.mxu0 %v1141
    %1549 = vmatprep.subr.bf16.mxu0 %v1150
    %1550 = vmatpush1.bf16.msra.mxu0 %v1149
    %1551 = vmatprep.subr.bf16.mxu0 %v1158
    %1552 = vmatpush1.bf16.msra.mxu0 %v1157
    %1553 = vmatprep.subr.bf16.mxu0 %v1166
    %1554 = vmatpush1.bf16.msra.mxu0 %v1165
    %1555 = vmatprep.mubr.bf16.mxu0 %v1522
    %1556 = vmatmul.mubr.bf16.gmra.mrb[0].mxu0 %v1521
    %v1557 = vpop.f32.mrb[0].mxu0
    %v1558 = vadd.f32 0.0, %v1557
    %v1559 = vpop.f32.mrb[0].mxu0
    %v1560 = vadd.f32 0.0, %v1559
    %v1561 = vpop.f32.mrb[0].mxu0
    %v1562 = vpop.f32.mrb[0].mxu0
    %1563 = vdwg.mxu0
    %1564 = vmatprep.subr.bf16.mxu0 %v1048
    %1565 = vmatpush1.bf16.msra.mxu0 %v1047
    %1566 = vmatprep.subr.bf16.mxu0 %v1056
    %1567 = vmatpush1.bf16.msra.mxu0 %v1055
    %1568 = vmatprep.subr.bf16.mxu0 %v1064
    %1569 = vmatpush1.bf16.msra.mxu0 %v1063
    %1570 = vmatprep.subr.bf16.mxu0 %v1072
    %1571 = vmatpush1.bf16.msra.mxu0 %v1071
    %1572 = vmatprep.subr.bf16.mxu0 %v1080
    %1573 = vmatpush1.bf16.msra.mxu0 %v1079
    %1574 = vmatprep.subr.bf16.mxu0 %v1088
    %1575 = vmatpush1.bf16.msra.mxu0 %v1087
    %1576 = vmatprep.subr.bf16.mxu0 %v1096
    %1577 = vmatpush1.bf16.msra.mxu0 %v1095
    %1578 = vmatprep.subr.bf16.mxu0 %v1104
    %1579 = vmatpush1.bf16.msra.mxu0 %v1103
    %1580 = vmatprep.subr.bf16.mxu0 %v1112
    %1581 = vmatpush1.bf16.msra.mxu0 %v1111
    %1582 = vmatprep.subr.bf16.mxu0 %v1120
    %1583 = vmatpush1.bf16.msra.mxu0 %v1119
    %1584 = vmatprep.subr.bf16.mxu0 %v1128
    %1585 = vmatpush1.bf16.msra.mxu0 %v1127
    %1586 = vmatprep.subr.bf16.mxu0 %v1136
    %1587 = vmatpush1.bf16.msra.mxu0 %v1135
    %1588 = vmatprep.subr.bf16.mxu0 %v1144
    %1589 = vmatpush1.bf16.msra.mxu0 %v1143
    %1590 = vmatprep.subr.bf16.mxu0 %v1152
    %1591 = vmatpush1.bf16.msra.mxu0 %v1151
    %1592 = vmatprep.subr.bf16.mxu0 %v1160
    %1593 = vmatpush1.bf16.msra.mxu0 %v1159
    %1594 = vmatprep.subr.bf16.mxu0 %v1168
    %1595 = vmatpush1.bf16.msra.mxu0 %v1167
    %1596 = vmatprep.mubr.bf16.mxu0 %v1522
    %1597 = vmatmul.mubr.bf16.gmra.mrb[0].mxu0 %v1521
    %v1598 = vpop.f32.mrb[0].mxu0
    %v1599 = vadd.f32 0.0, %v1598
    %v1600 = vpop.f32.mrb[0].mxu0
    %v1601 = vadd.f32 0.0, %v1600
    %v1602 = vpop.f32.mrb[0].mxu0
    %v1603 = vpop.f32.mrb[0].mxu0
    %1604 = vdwg.mxu0
    %1605 = vmatprep.subr.bf16.mxu0 %v1050
    %1606 = vmatpush1.bf16.msra.mxu0 %v1049
    %1607 = vmatprep.subr.bf16.mxu0 %v1058
    %1608 = vmatpush1.bf16.msra.mxu0 %v1057
    %1609 = vmatprep.subr.bf16.mxu0 %v1066
    %1610 = vmatpush1.bf16.msra.mxu0 %v1065
    %1611 = vmatprep.subr.bf16.mxu0 %v1074
    %1612 = vmatpush1.bf16.msra.mxu0 %v1073
    %1613 = vmatprep.subr.bf16.mxu0 %v1082
    %1614 = vmatpush1.bf16.msra.mxu0 %v1081
    %1615 = vmatprep.subr.bf16.mxu0 %v1090
    %1616 = vmatpush1.bf16.msra.mxu0 %v1089
    %1617 = vmatprep.subr.bf16.mxu0 %v1098
    %1618 = vmatpush1.bf16.msra.mxu0 %v1097
    %1619 = vmatprep.subr.bf16.mxu0 %v1106
    %1620 = vmatpush1.bf16.msra.mxu0 %v1105
    %1621 = vmatprep.subr.bf16.mxu0 %v1114
    %1622 = vmatpush1.bf16.msra.mxu0 %v1113
    %1623 = vmatprep.subr.bf16.mxu0 %v1122
    %1624 = vmatpush1.bf16.msra.mxu0 %v1121
    %1625 = vmatprep.subr.bf16.mxu0 %v1130
    %1626 = vmatpush1.bf16.msra.mxu0 %v1129
    %1627 = vmatprep.subr.bf16.mxu0 %v1138
    %1628 = vmatpush1.bf16.msra.mxu0 %v1137
    %1629 = vmatprep.subr.bf16.mxu0 %v1146
    %1630 = vmatpush1.bf16.msra.mxu0 %v1145
    %1631 = vmatprep.subr.bf16.mxu0 %v1154
    %1632 = vmatpush1.bf16.msra.mxu0 %v1153
    %1633 = vmatprep.subr.bf16.mxu0 %v1162
    %1634 = vmatpush1.bf16.msra.mxu0 %v1161
    %1635 = vmatprep.subr.bf16.mxu0 %v1170
    %1636 = vmatpush1.bf16.msra.mxu0 %v1169
    %1637 = vmatprep.mubr.bf16.mxu0 %v1522
    %1638 = vmatmul.mubr.bf16.gmra.mrb[0].mxu0 %v1521
    %v1639 = vpop.f32.mrb[0].mxu0
    %v1640 = vadd.f32 0.0, %v1639
    %v1641 = vpop.f32.mrb[0].mxu0
    %v1642 = vadd.f32 0.0, %v1641
    %v1643 = vpop.f32.mrb[0].mxu0
    %v1644 = vpop.f32.mrb[0].mxu0
    %1645 = vdwg.mxu0
    %1646 = vmatprep.subr.bf16.mxu0 %v1052
    %1647 = vmatpush1.bf16.msra.mxu0 %v1051
    %1648 = vmatprep.subr.bf16.mxu0 %v1060
    %1649 = vmatpush1.bf16.msra.mxu0 %v1059
    %1650 = vmatprep.subr.bf16.mxu0 %v1068
    %1651 = vmatpush1.bf16.msra.mxu0 %v1067
    %1652 = vmatprep.subr.bf16.mxu0 %v1076
    %1653 = vmatpush1.bf16.msra.mxu0 %v1075
    %1654 = vmatprep.subr.bf16.mxu0 %v1084
    %1655 = vmatpush1.bf16.msra.mxu0 %v1083
    %1656 = vmatprep.subr.bf16.mxu0 %v1092
    %1657 = vmatpush1.bf16.msra.mxu0 %v1091
    %1658 = vmatprep.subr.bf16.mxu0 %v1100
    %1659 = vmatpush1.bf16.msra.mxu0 %v1099
    %1660 = vmatprep.subr.bf16.mxu0 %v1108
    %1661 = vmatpush1.bf16.msra.mxu0 %v1107
    %1662 = vmatprep.subr.bf16.mxu0 %v1116
    %1663 = vmatpush1.bf16.msra.mxu0 %v1115
    %1664 = vmatprep.subr.bf16.mxu0 %v1124
    %1665 = vmatpush1.bf16.msra.mxu0 %v1123
    %1666 = vmatprep.subr.bf16.mxu0 %v1132
    %1667 = vmatpush1.bf16.msra.mxu0 %v1131
    %1668 = vmatprep.subr.bf16.mxu0 %v1140
    %1669 = vmatpush1.bf16.msra.mxu0 %v1139
    %1670 = vmatprep.subr.bf16.mxu0 %v1148
    %1671 = vmatpush1.bf16.msra.mxu0 %v1147
    %1672 = vmatprep.subr.bf16.mxu0 %v1156
    %1673 = vmatpush1.bf16.msra.mxu0 %v1155
    %1674 = vmatprep.subr.bf16.mxu0 %v1164
    %1675 = vmatpush1.bf16.msra.mxu0 %v1163
    %1676 = vmatprep.subr.bf16.mxu0 %v1172
    %1677 = vmatpush1.bf16.msra.mxu0 %v1171
    %1678 = vmatprep.mubr.bf16.mxu0 %v1522
    %1679 = vmatmul.mubr.bf16.gmra.mrb[0].mxu0 %v1521
    %v1680 = vpop.f32.mrb[0].mxu0
    %v1681 = vadd.f32 0.0, %v1680
    %v1682 = vpop.f32.mrb[0].mxu0
    %v1683 = vadd.f32 0.0, %v1682
    %v1684 = vpop.f32.mrb[0].mxu0
    %v1685 = vpop.f32.mrb[0].mxu0
    %1686 = vdwg.mxu0
    %v1687 = vadd.f32 %v280, %v1558
    %v1688 = vadd.f32 %v282, %v1560
    %v1689 = vadd.f32 %v353, %v1599
    %v1690 = vadd.f32 %v355, %v1601
    %v1691 = vadd.f32 %v426, %v1640
    %v1692 = vadd.f32 %v428, %v1642
    %v1693 = vadd.f32 %v499, %v1681
    %v1694 = vadd.f32 %v501, %v1683
    %v1695 = vxor.u32 %v1687, 2147483648
    %v1696 = vxor.u32 %v1688, 2147483648
    %v1697 = vmul.f32 %v1695, 1.442695
    %v1698 = vpow.pop %v1697
    %v1699 = vmul.f32 %v1696, 1.442695
    %v1700 = vpow.pop %v1699
    %v1701 = vadd.f32 %v1698, 1.0
    %v1702 = vadd.f32 %v1700, 1.0
    %v1703 = vrcp.pop %v1701
    %v1704 = vmul.f32 1.0, %v1703
    %v1705 = vrcp.pop %v1702
    %v1706 = vmul.f32 1.0, %v1705
    %v1707 = vxor.u32 %v1689, 2147483648
    %v1708 = vxor.u32 %v1690, 2147483648
    %v1709 = vmul.f32 %v1707, 1.442695
    %v1710 = vpow.pop %v1709
    %v1711 = vmul.f32 %v1708, 1.442695
    %v1712 = vpow.pop %v1711
    %v1713 = vadd.f32 %v1710, 1.0
    %v1714 = vadd.f32 %v1712, 1.0
    %v1715 = vrcp.pop %v1713
    %v1716 = vmul.f32 1.0, %v1715
    %v1717 = vrcp.pop %v1714
    %v1718 = vmul.f32 1.0, %v1717
    %v1719 = vtanh.pop %v1691
    %v1720 = vtanh.pop %v1692
    %v1721 = vxor.u32 %v1693, 2147483648
    %v1722 = vxor.u32 %v1694, 2147483648
    %v1723 = vmul.f32 %v1721, 1.442695
    %v1724 = vpow.pop %v1723
    %v1725 = vmul.f32 %v1722, 1.442695
    %v1726 = vpow.pop %v1725
    %v1727 = vadd.f32 %v1724, 1.0
    %v1728 = vadd.f32 %v1726, 1.0
    %v1729 = vrcp.pop %v1727
    %v1730 = vmul.f32 1.0, %v1729
    %v1731 = vrcp.pop %v1728
    %v1732 = vmul.f32 1.0, %v1731
    %v1733 = vmul.f32 %v1716, %v1515
    %v1734 = vmul.f32 %v1718, %v1516
    %v1735 = vmul.f32 %v1704, %v1719
    %v1736 = vmul.f32 %v1706, %v1720
    %v1737 = vadd.f32 %v1733, %v1735
    %v1738 = vadd.f32 %v1734, %v1736
    %v1739 = vtanh.pop %v1737
    %v1740 = vtanh.pop %v1738
    %v1741 = vmul.f32 %v1730, %v1739
    %v1742 = vmul.f32 %v1732, %v1740
    %v1743 = vpack.c.bf16 %v1741, %v1741
    %v1744 = vpack.c.bf16 %v1742, %v1742
    %1745 = vmatprep.subr.bf16.mxu0 %v1046
    %1746 = vmatpush1.bf16.msra.mxu0 %v1045
    %1747 = vmatprep.subr.bf16.mxu0 %v1054
    %1748 = vmatpush1.bf16.msra.mxu0 %v1053
    %1749 = vmatprep.subr.bf16.mxu0 %v1062
    %1750 = vmatpush1.bf16.msra.mxu0 %v1061
    %1751 = vmatprep.subr.bf16.mxu0 %v1070
    %1752 = vmatpush1.bf16.msra.mxu0 %v1069
    %1753 = vmatprep.subr.bf16.mxu0 %v1078
    %1754 = vmatpush1.bf16.msra.mxu0 %v1077
    %1755 = vmatprep.subr.bf16.mxu0 %v1086
    %1756 = vmatpush1.bf16.msra.mxu0 %v1085
    %1757 = vmatprep.subr.bf16.mxu0 %v1094
    %1758 = vmatpush1.bf16.msra.mxu0 %v1093
    %1759 = vmatprep.subr.bf16.mxu0 %v1102
    %1760 = vmatpush1.bf16.msra.mxu0 %v1101
    %1761 = vmatprep.subr.bf16.mxu0 %v1110
    %1762 = vmatpush1.bf16.msra.mxu0 %v1109
    %1763 = vmatprep.subr.bf16.mxu0 %v1118
    %1764 = vmatpush1.bf16.msra.mxu0 %v1117
    %1765 = vmatprep.subr.bf16.mxu0 %v1126
    %1766 = vmatpush1.bf16.msra.mxu0 %v1125
    %1767 = vmatprep.subr.bf16.mxu0 %v1134
    %1768 = vmatpush1.bf16.msra.mxu0 %v1133
    %1769 = vmatprep.subr.bf16.mxu0 %v1142
    %1770 = vmatpush1.bf16.msra.mxu0 %v1141
    %1771 = vmatprep.subr.bf16.mxu0 %v1150
    %1772 = vmatpush1.bf16.msra.mxu0 %v1149
    %1773 = vmatprep.subr.bf16.mxu0 %v1158
    %1774 = vmatpush1.bf16.msra.mxu0 %v1157
    %1775 = vmatprep.subr.bf16.mxu0 %v1166
    %1776 = vmatpush1.bf16.msra.mxu0 %v1165
    %1777 = vmatprep.mubr.bf16.mxu0 %v1744
    %1778 = vmatmul.mubr.bf16.gmra.mrb[0].mxu0 %v1743
    %v1779 = vpop.f32.mrb[0].mxu0
    %v1780 = vadd.f32 0.0, %v1779
    %v1781 = vpop.f32.mrb[0].mxu0
    %v1782 = vadd.f32 0.0, %v1781
    %v1783 = vpop.f32.mrb[0].mxu0
    %v1784 = vpop.f32.mrb[0].mxu0
    %1785 = vdwg.mxu0
    %1786 = vmatprep.subr.bf16.mxu0 %v1048
    %1787 = vmatpush1.bf16.msra.mxu0 %v1047
    %1788 = vmatprep.subr.bf16.mxu0 %v1056
    %1789 = vmatpush1.bf16.msra.mxu0 %v1055
    %1790 = vmatprep.subr.bf16.mxu0 %v1064
    %1791 = vmatpush1.bf16.msra.mxu0 %v1063
    %1792 = vmatprep.subr.bf16.mxu0 %v1072
    %1793 = vmatpush1.bf16.msra.mxu0 %v1071
    %1794 = vmatprep.subr.bf16.mxu0 %v1080
    %1795 = vmatpush1.bf16.msra.mxu0 %v1079
    %1796 = vmatprep.subr.bf16.mxu0 %v1088
    %1797 = vmatpush1.bf16.msra.mxu0 %v1087
    %1798 = vmatprep.subr.bf16.mxu0 %v1096
    %1799 = vmatpush1.bf16.msra.mxu0 %v1095
    %1800 = vmatprep.subr.bf16.mxu0 %v1104
    %1801 = vmatpush1.bf16.msra.mxu0 %v1103
    %1802 = vmatprep.subr.bf16.mxu0 %v1112
    %1803 = vmatpush1.bf16.msra.mxu0 %v1111
    %1804 = vmatprep.subr.bf16.mxu0 %v1120
    %1805 = vmatpush1.bf16.msra.mxu0 %v1119
    %1806 = vmatprep.subr.bf16.mxu0 %v1128
    %1807 = vmatpush1.bf16.msra.mxu0 %v1127
    %1808 = vmatprep.subr.bf16.mxu0 %v1136
    %1809 = vmatpush1.bf16.msra.mxu0 %v1135
    %1810 = vmatprep.subr.bf16.mxu0 %v1144
    %1811 = vmatpush1.bf16.msra.mxu0 %v1143
    %1812 = vmatprep.subr.bf16.mxu0 %v1152
    %1813 = vmatpush1.bf16.msra.mxu0 %v1151
    %1814 = vmatprep.subr.bf16.mxu0 %v1160
    %1815 = vmatpush1.bf16.msra.mxu0 %v1159
    %1816 = vmatprep.subr.bf16.mxu0 %v1168
    %1817 = vmatpush1.bf16.msra.mxu0 %v1167
    %1818 = vmatprep.mubr.bf16.mxu0 %v1744
    %1819 = vmatmul.mubr.bf16.gmra.mrb[0].mxu0 %v1743
    %v1820 = vpop.f32.mrb[0].mxu0
    %v1821 = vadd.f32 0.0, %v1820
    %v1822 = vpop.f32.mrb[0].mxu0
    %v1823 = vadd.f32 0.0, %v1822
    %v1824 = vpop.f32.mrb[0].mxu0
    %v1825 = vpop.f32.mrb[0].mxu0
    %1826 = vdwg.mxu0
    %1827 = vmatprep.subr.bf16.mxu0 %v1050
    %1828 = vmatpush1.bf16.msra.mxu0 %v1049
    %1829 = vmatprep.subr.bf16.mxu0 %v1058
    %1830 = vmatpush1.bf16.msra.mxu0 %v1057
    %1831 = vmatprep.subr.bf16.mxu0 %v1066
    %1832 = vmatpush1.bf16.msra.mxu0 %v1065
    %1833 = vmatprep.subr.bf16.mxu0 %v1074
    %1834 = vmatpush1.bf16.msra.mxu0 %v1073
    %1835 = vmatprep.subr.bf16.mxu0 %v1082
    %1836 = vmatpush1.bf16.msra.mxu0 %v1081
    %1837 = vmatprep.subr.bf16.mxu0 %v1090
    %1838 = vmatpush1.bf16.msra.mxu0 %v1089
    %1839 = vmatprep.subr.bf16.mxu0 %v1098
    %1840 = vmatpush1.bf16.msra.mxu0 %v1097
    %1841 = vmatprep.subr.bf16.mxu0 %v1106
    %1842 = vmatpush1.bf16.msra.mxu0 %v1105
    %1843 = vmatprep.subr.bf16.mxu0 %v1114
    %1844 = vmatpush1.bf16.msra.mxu0 %v1113
    %1845 = vmatprep.subr.bf16.mxu0 %v1122
    %1846 = vmatpush1.bf16.msra.mxu0 %v1121
    %1847 = vmatprep.subr.bf16.mxu0 %v1130
    %1848 = vmatpush1.bf16.msra.mxu0 %v1129
    %1849 = vmatprep.subr.bf16.mxu0 %v1138
    %1850 = vmatpush1.bf16.msra.mxu0 %v1137
    %1851 = vmatprep.subr.bf16.mxu0 %v1146
    %1852 = vmatpush1.bf16.msra.mxu0 %v1145
    %1853 = vmatprep.subr.bf16.mxu0 %v1154
    %1854 = vmatpush1.bf16.msra.mxu0 %v1153
    %1855 = vmatprep.subr.bf16.mxu0 %v1162
    %1856 = vmatpush1.bf16.msra.mxu0 %v1161
    %1857 = vmatprep.subr.bf16.mxu0 %v1170
    %1858 = vmatpush1.bf16.msra.mxu0 %v1169
    %1859 = vmatprep.mubr.bf16.mxu0 %v1744
    %1860 = vmatmul.mubr.bf16.gmra.mrb[0].mxu0 %v1743
    %v1861 = vpop.f32.mrb[0].mxu0
    %v1862 = vadd.f32 0.0, %v1861
    %v1863 = vpop.f32.mrb[0].mxu0
    %v1864 = vadd.f32 0.0, %v1863
    %v1865 = vpop.f32.mrb[0].mxu0
    %v1866 = vpop.f32.mrb[0].mxu0
    %1867 = vdwg.mxu0
    %1868 = vmatprep.subr.bf16.mxu0 %v1052
    %1869 = vmatpush1.bf16.msra.mxu0 %v1051
    %1870 = vmatprep.subr.bf16.mxu0 %v1060
    %1871 = vmatpush1.bf16.msra.mxu0 %v1059
    %1872 = vmatprep.subr.bf16.mxu0 %v1068
    %1873 = vmatpush1.bf16.msra.mxu0 %v1067
    %1874 = vmatprep.subr.bf16.mxu0 %v1076
    %1875 = vmatpush1.bf16.msra.mxu0 %v1075
    %1876 = vmatprep.subr.bf16.mxu0 %v1084
    %1877 = vmatpush1.bf16.msra.mxu0 %v1083
    %1878 = vmatprep.subr.bf16.mxu0 %v1092
    %1879 = vmatpush1.bf16.msra.mxu0 %v1091
    %1880 = vmatprep.subr.bf16.mxu0 %v1100
    %1881 = vmatpush1.bf16.msra.mxu0 %v1099
    %1882 = vmatprep.subr.bf16.mxu0 %v1108
    %1883 = vmatpush1.bf16.msra.mxu0 %v1107
    %1884 = vmatprep.subr.bf16.mxu0 %v1116
    %1885 = vmatpush1.bf16.msra.mxu0 %v1115
    %1886 = vmatprep.subr.bf16.mxu0 %v1124
    %1887 = vmatpush1.bf16.msra.mxu0 %v1123
    %1888 = vmatprep.subr.bf16.mxu0 %v1132
    %1889 = vmatpush1.bf16.msra.mxu0 %v1131
    %1890 = vmatprep.subr.bf16.mxu0 %v1140
    %1891 = vmatpush1.bf16.msra.mxu0 %v1139
    %1892 = vmatprep.subr.bf16.mxu0 %v1148
    %1893 = vmatpush1.bf16.msra.mxu0 %v1147
    %1894 = vmatprep.subr.bf16.mxu0 %v1156
    %1895 = vmatpush1.bf16.msra.mxu0 %v1155
    %1896 = vmatprep.subr.bf16.mxu0 %v1164
    %1897 = vmatpush1.bf16.msra.mxu0 %v1163
    %1898 = vmatprep.subr.bf16.mxu0 %v1172
    %1899 = vmatpush1.bf16.msra.mxu0 %v1171
    %1900 = vmatprep.mubr.bf16.mxu0 %v1744
    %1901 = vmatmul.mubr.bf16.gmra.mrb[0].mxu0 %v1743
    %v1902 = vpop.f32.mrb[0].mxu0
    %v1903 = vadd.f32 0.0, %v1902
    %v1904 = vpop.f32.mrb[0].mxu0
    %v1905 = vadd.f32 0.0, %v1904
    %v1906 = vpop.f32.mrb[0].mxu0
    %v1907 = vpop.f32.mrb[0].mxu0
    %1908 = vdwg.mxu0
    %v1909 = vadd.f32 %v286, %v1780
    %v1910 = vadd.f32 %v288, %v1782
    %v1911 = vadd.f32 %v359, %v1821
    %v1912 = vadd.f32 %v361, %v1823
    %v1913 = vadd.f32 %v432, %v1862
    %v1914 = vadd.f32 %v434, %v1864
    %v1915 = vadd.f32 %v505, %v1903
    %v1916 = vadd.f32 %v507, %v1905
    %v1917 = vxor.u32 %v1909, 2147483648
    %v1918 = vxor.u32 %v1910, 2147483648
    %v1919 = vmul.f32 %v1917, 1.442695
    %v1920 = vpow.pop %v1919
    %v1921 = vmul.f32 %v1918, 1.442695
    %v1922 = vpow.pop %v1921
    %v1923 = vadd.f32 %v1920, 1.0
    %v1924 = vadd.f32 %v1922, 1.0
    %v1925 = vrcp.pop %v1923
    %v1926 = vmul.f32 1.0, %v1925
    %v1927 = vrcp.pop %v1924
    %v1928 = vmul.f32 1.0, %v1927
    %v1929 = vxor.u32 %v1911, 2147483648
    %v1930 = vxor.u32 %v1912, 2147483648
    %v1931 = vmul.f32 %v1929, 1.442695
    %v1932 = vpow.pop %v1931
    %v1933 = vmul.f32 %v1930, 1.442695
    %v1934 = vpow.pop %v1933
    %v1935 = vadd.f32 %v1932, 1.0
    %v1936 = vadd.f32 %v1934, 1.0
    %v1937 = vrcp.pop %v1935
    %v1938 = vmul.f32 1.0, %v1937
    %v1939 = vrcp.pop %v1936
    %v1940 = vmul.f32 1.0, %v1939
    %v1941 = vtanh.pop %v1913
    %v1942 = vtanh.pop %v1914
    %v1943 = vxor.u32 %v1915, 2147483648
    %v1944 = vxor.u32 %v1916, 2147483648
    %v1945 = vmul.f32 %v1943, 1.442695
    %v1946 = vpow.pop %v1945
    %v1947 = vmul.f32 %v1944, 1.442695
    %v1948 = vpow.pop %v1947
    %v1949 = vadd.f32 %v1946, 1.0
    %v1950 = vadd.f32 %v1948, 1.0
    %v1951 = vrcp.pop %v1949
    %v1952 = vmul.f32 1.0, %v1951
    %v1953 = vrcp.pop %v1950
    %v1954 = vmul.f32 1.0, %v1953
    %v1955 = vmul.f32 %v1938, %v1737
    %v1956 = vmul.f32 %v1940, %v1738
    %v1957 = vmul.f32 %v1926, %v1941
    %v1958 = vmul.f32 %v1928, %v1942
    %v1959 = vadd.f32 %v1955, %v1957
    %v1960 = vadd.f32 %v1956, %v1958
    %v1961 = vtanh.pop %v1959
    %v1962 = vtanh.pop %v1960
    %v1963 = vmul.f32 %v1952, %v1961
    %v1964 = vmul.f32 %v1954, %v1962
    %v1965 = vpack.c.bf16 %v1963, %v1963
    %v1966 = vpack.c.bf16 %v1964, %v1964
    %1967 = vmatprep.subr.bf16.mxu0 %v1046
    %1968 = vmatpush1.bf16.msra.mxu0 %v1045
    %1969 = vmatprep.subr.bf16.mxu0 %v1054
    %1970 = vmatpush1.bf16.msra.mxu0 %v1053
    %1971 = vmatprep.subr.bf16.mxu0 %v1062
    %1972 = vmatpush1.bf16.msra.mxu0 %v1061
    %1973 = vmatprep.subr.bf16.mxu0 %v1070
    %1974 = vmatpush1.bf16.msra.mxu0 %v1069
    %1975 = vmatprep.subr.bf16.mxu0 %v1078
    %1976 = vmatpush1.bf16.msra.mxu0 %v1077
    %1977 = vmatprep.subr.bf16.mxu0 %v1086
    %1978 = vmatpush1.bf16.msra.mxu0 %v1085
    %1979 = vmatprep.subr.bf16.mxu0 %v1094
    %1980 = vmatpush1.bf16.msra.mxu0 %v1093
    %1981 = vmatprep.subr.bf16.mxu0 %v1102
    %1982 = vmatpush1.bf16.msra.mxu0 %v1101
    %1983 = vmatprep.subr.bf16.mxu0 %v1110
    %1984 = vmatpush1.bf16.msra.mxu0 %v1109
    %1985 = vmatprep.subr.bf16.mxu0 %v1118
    %1986 = vmatpush1.bf16.msra.mxu0 %v1117
    %1987 = vmatprep.subr.bf16.mxu0 %v1126
    %1988 = vmatpush1.bf16.msra.mxu0 %v1125
    %1989 = vmatprep.subr.bf16.mxu0 %v1134
    %1990 = vmatpush1.bf16.msra.mxu0 %v1133
    %1991 = vmatprep.subr.bf16.mxu0 %v1142
    %1992 = vmatpush1.bf16.msra.mxu0 %v1141
    %1993 = vmatprep.subr.bf16.mxu0 %v1150
    %1994 = vmatpush1.bf16.msra.mxu0 %v1149
    %1995 = vmatprep.subr.bf16.mxu0 %v1158
    %1996 = vmatpush1.bf16.msra.mxu0 %v1157
    %1997 = vmatprep.subr.bf16.mxu0 %v1166
    %1998 = vmatpush1.bf16.msra.mxu0 %v1165
    %1999 = vmatprep.mubr.bf16.mxu0 %v1966
    %2000 = vmatmul.mubr.bf16.gmra.mrb[0].mxu0 %v1965
    %v2001 = vpop.f32.mrb[0].mxu0
    %v2002 = vadd.f32 0.0, %v2001
    %v2003 = vpop.f32.mrb[0].mxu0
    %v2004 = vadd.f32 0.0, %v2003
    %v2005 = vpop.f32.mrb[0].mxu0
    %v2006 = vpop.f32.mrb[0].mxu0
    %2007 = vdwg.mxu0
    %2008 = vmatprep.subr.bf16.mxu0 %v1048
    %2009 = vmatpush1.bf16.msra.mxu0 %v1047
    %2010 = vmatprep.subr.bf16.mxu0 %v1056
    %2011 = vmatpush1.bf16.msra.mxu0 %v1055
    %2012 = vmatprep.subr.bf16.mxu0 %v1064
    %2013 = vmatpush1.bf16.msra.mxu0 %v1063
    %2014 = vmatprep.subr.bf16.mxu0 %v1072
    %2015 = vmatpush1.bf16.msra.mxu0 %v1071
    %2016 = vmatprep.subr.bf16.mxu0 %v1080
    %2017 = vmatpush1.bf16.msra.mxu0 %v1079
    %2018 = vmatprep.subr.bf16.mxu0 %v1088
    %2019 = vmatpush1.bf16.msra.mxu0 %v1087
    %2020 = vmatprep.subr.bf16.mxu0 %v1096
    %2021 = vmatpush1.bf16.msra.mxu0 %v1095
    %2022 = vmatprep.subr.bf16.mxu0 %v1104
    %2023 = vmatpush1.bf16.msra.mxu0 %v1103
    %2024 = vmatprep.subr.bf16.mxu0 %v1112
    %2025 = vmatpush1.bf16.msra.mxu0 %v1111
    %2026 = vmatprep.subr.bf16.mxu0 %v1120
    %2027 = vmatpush1.bf16.msra.mxu0 %v1119
    %2028 = vmatprep.subr.bf16.mxu0 %v1128
    %2029 = vmatpush1.bf16.msra.mxu0 %v1127
    %2030 = vmatprep.subr.bf16.mxu0 %v1136
    %2031 = vmatpush1.bf16.msra.mxu0 %v1135
    %2032 = vmatprep.subr.bf16.mxu0 %v1144
    %2033 = vmatpush1.bf16.msra.mxu0 %v1143
    %2034 = vmatprep.subr.bf16.mxu0 %v1152
    %2035 = vmatpush1.bf16.msra.mxu0 %v1151
    %2036 = vmatprep.subr.bf16.mxu0 %v1160
    %2037 = vmatpush1.bf16.msra.mxu0 %v1159
    %2038 = vmatprep.subr.bf16.mxu0 %v1168
    %2039 = vmatpush1.bf16.msra.mxu0 %v1167
    %2040 = vmatprep.mubr.bf16.mxu0 %v1966
    %2041 = vmatmul.mubr.bf16.gmra.mrb[0].mxu0 %v1965
    %v2042 = vpop.f32.mrb[0].mxu0
    %v2043 = vadd.f32 0.0, %v2042
    %v2044 = vpop.f32.mrb[0].mxu0
    %v2045 = vadd.f32 0.0, %v2044
    %v2046 = vpop.f32.mrb[0].mxu0
    %v2047 = vpop.f32.mrb[0].mxu0
    %2048 = vdwg.mxu0
    %2049 = vmatprep.subr.bf16.mxu0 %v1050
    %2050 = vmatpush1.bf16.msra.mxu0 %v1049
    %2051 = vmatprep.subr.bf16.mxu0 %v1058
    %2052 = vmatpush1.bf16.msra.mxu0 %v1057
    %2053 = vmatprep.subr.bf16.mxu0 %v1066
    %2054 = vmatpush1.bf16.msra.mxu0 %v1065
    %2055 = vmatprep.subr.bf16.mxu0 %v1074
    %2056 = vmatpush1.bf16.msra.mxu0 %v1073
    %2057 = vmatprep.subr.bf16.mxu0 %v1082
    %2058 = vmatpush1.bf16.msra.mxu0 %v1081
    %2059 = vmatprep.subr.bf16.mxu0 %v1090
    %2060 = vmatpush1.bf16.msra.mxu0 %v1089
    %2061 = vmatprep.subr.bf16.mxu0 %v1098
    %2062 = vmatpush1.bf16.msra.mxu0 %v1097
    %2063 = vmatprep.subr.bf16.mxu0 %v1106
    %2064 = vmatpush1.bf16.msra.mxu0 %v1105
    %2065 = vmatprep.subr.bf16.mxu0 %v1114
    %2066 = vmatpush1.bf16.msra.mxu0 %v1113
    %2067 = vmatprep.subr.bf16.mxu0 %v1122
    %2068 = vmatpush1.bf16.msra.mxu0 %v1121
    %2069 = vmatprep.subr.bf16.mxu0 %v1130
    %2070 = vmatpush1.bf16.msra.mxu0 %v1129
    %2071 = vmatprep.subr.bf16.mxu0 %v1138
    %2072 = vmatpush1.bf16.msra.mxu0 %v1137
    %2073 = vmatprep.subr.bf16.mxu0 %v1146
    %2074 = vmatpush1.bf16.msra.mxu0 %v1145
    %2075 = vmatprep.subr.bf16.mxu0 %v1154
    %2076 = vmatpush1.bf16.msra.mxu0 %v1153
    %2077 = vmatprep.subr.bf16.mxu0 %v1162
    %2078 = vmatpush1.bf16.msra.mxu0 %v1161
    %2079 = vmatprep.subr.bf16.mxu0 %v1170
    %2080 = vmatpush1.bf16.msra.mxu0 %v1169
    %2081 = vmatprep.mubr.bf16.mxu0 %v1966
    %2082 = vmatmul.mubr.bf16.gmra.mrb[0].mxu0 %v1965
    %v2083 = vpop.f32.mrb[0].mxu0
    %v2084 = vadd.f32 0.0, %v2083
    %v2085 = vpop.f32.mrb[0].mxu0
    %v2086 = vadd.f32 0.0, %v2085
    %v2087 = vpop.f32.mrb[0].mxu0
    %v2088 = vpop.f32.mrb[0].mxu0
    %2089 = vdwg.mxu0
    %2090 = vmatprep.subr.bf16.mxu0 %v1052
    %2091 = vmatpush1.bf16.msra.mxu0 %v1051
    %2092 = vmatprep.subr.bf16.mxu0 %v1060
    %2093 = vmatpush1.bf16.msra.mxu0 %v1059
    %2094 = vmatprep.subr.bf16.mxu0 %v1068
    %2095 = vmatpush1.bf16.msra.mxu0 %v1067
    %2096 = vmatprep.subr.bf16.mxu0 %v1076
    %2097 = vmatpush1.bf16.msra.mxu0 %v1075
    %2098 = vmatprep.subr.bf16.mxu0 %v1084
    %2099 = vmatpush1.bf16.msra.mxu0 %v1083
    %2100 = vmatprep.subr.bf16.mxu0 %v1092
    %2101 = vmatpush1.bf16.msra.mxu0 %v1091
    %2102 = vmatprep.subr.bf16.mxu0 %v1100
    %2103 = vmatpush1.bf16.msra.mxu0 %v1099
    %2104 = vmatprep.subr.bf16.mxu0 %v1108
    %2105 = vmatpush1.bf16.msra.mxu0 %v1107
    %2106 = vmatprep.subr.bf16.mxu0 %v1116
    %2107 = vmatpush1.bf16.msra.mxu0 %v1115
    %2108 = vmatprep.subr.bf16.mxu0 %v1124
    %2109 = vmatpush1.bf16.msra.mxu0 %v1123
    %2110 = vmatprep.subr.bf16.mxu0 %v1132
    %2111 = vmatpush1.bf16.msra.mxu0 %v1131
    %2112 = vmatprep.subr.bf16.mxu0 %v1140
    %2113 = vmatpush1.bf16.msra.mxu0 %v1139
    %2114 = vmatprep.subr.bf16.mxu0 %v1148
    %2115 = vmatpush1.bf16.msra.mxu0 %v1147
    %2116 = vmatprep.subr.bf16.mxu0 %v1156
    %2117 = vmatpush1.bf16.msra.mxu0 %v1155
    %2118 = vmatprep.subr.bf16.mxu0 %v1164
    %2119 = vmatpush1.bf16.msra.mxu0 %v1163
    %2120 = vmatprep.subr.bf16.mxu0 %v1172
    %2121 = vmatpush1.bf16.msra.mxu0 %v1171
    %2122 = vmatprep.mubr.bf16.mxu0 %v1966
    %2123 = vmatmul.mubr.bf16.gmra.mrb[0].mxu0 %v1965
    %v2124 = vpop.f32.mrb[0].mxu0
    %v2125 = vadd.f32 0.0, %v2124
    %v2126 = vpop.f32.mrb[0].mxu0
    %v2127 = vadd.f32 0.0, %v2126
    %v2128 = vpop.f32.mrb[0].mxu0
    %v2129 = vpop.f32.mrb[0].mxu0
    %2130 = vdwg.mxu0
    %v2131 = vadd.f32 %v290, %v2002
    %v2132 = vadd.f32 %v292, %v2004
    %v2133 = vadd.f32 %v363, %v2043
    %v2134 = vadd.f32 %v365, %v2045
    %v2135 = vadd.f32 %v436, %v2084
    %v2136 = vadd.f32 %v438, %v2086
    %v2137 = vadd.f32 %v509, %v2125
    %v2138 = vadd.f32 %v511, %v2127
    %v2139 = vxor.u32 %v2131, 2147483648
    %v2140 = vxor.u32 %v2132, 2147483648
    %v2141 = vmul.f32 %v2139, 1.442695
    %v2142 = vpow.pop %v2141
    %v2143 = vmul.f32 %v2140, 1.442695
    %v2144 = vpow.pop %v2143
    %v2145 = vadd.f32 %v2142, 1.0
    %v2146 = vadd.f32 %v2144, 1.0
    %v2147 = vrcp.pop %v2145
    %v2148 = vmul.f32 1.0, %v2147
    %v2149 = vrcp.pop %v2146
    %v2150 = vmul.f32 1.0, %v2149
    %v2151 = vxor.u32 %v2133, 2147483648
    %v2152 = vxor.u32 %v2134, 2147483648
    %v2153 = vmul.f32 %v2151, 1.442695
    %v2154 = vpow.pop %v2153
    %v2155 = vmul.f32 %v2152, 1.442695
    %v2156 = vpow.pop %v2155
    %v2157 = vadd.f32 %v2154, 1.0
    %v2158 = vadd.f32 %v2156, 1.0
    %v2159 = vrcp.pop %v2157
    %v2160 = vmul.f32 1.0, %v2159
    %v2161 = vrcp.pop %v2158
    %v2162 = vmul.f32 1.0, %v2161
    %v2163 = vtanh.pop %v2135
    %v2164 = vtanh.pop %v2136
    %v2165 = vxor.u32 %v2137, 2147483648
    %v2166 = vxor.u32 %v2138, 2147483648
    %v2167 = vmul.f32 %v2165, 1.442695
    %v2168 = vpow.pop %v2167
    %v2169 = vmul.f32 %v2166, 1.442695
    %v2170 = vpow.pop %v2169
    %v2171 = vadd.f32 %v2168, 1.0
    %v2172 = vadd.f32 %v2170, 1.0
    %v2173 = vrcp.pop %v2171
    %v2174 = vmul.f32 1.0, %v2173
    %v2175 = vrcp.pop %v2172
    %v2176 = vmul.f32 1.0, %v2175
    %v2177 = vmul.f32 %v2160, %v1959
    %v2178 = vmul.f32 %v2162, %v1960
    %v2179 = vmul.f32 %v2148, %v2163
    %v2180 = vmul.f32 %v2150, %v2164
    %v2181 = vadd.f32 %v2177, %v2179
    %v2182 = vadd.f32 %v2178, %v2180
    %v2183 = vtanh.pop %v2181
    %v2184 = vtanh.pop %v2182
    %v2185 = vmul.f32 %v2174, %v2183
    %v2186 = vmul.f32 %v2176, %v2184
    %v2187 = vpack.c.bf16 %v2185, %v2185
    %v2188 = vpack.c.bf16 %v2186, %v2186
    %2189 = vmatprep.subr.bf16.mxu0 %v1046
    %2190 = vmatpush1.bf16.msra.mxu0 %v1045
    %2191 = vmatprep.subr.bf16.mxu0 %v1054
    %2192 = vmatpush1.bf16.msra.mxu0 %v1053
    %2193 = vmatprep.subr.bf16.mxu0 %v1062
    %2194 = vmatpush1.bf16.msra.mxu0 %v1061
    %2195 = vmatprep.subr.bf16.mxu0 %v1070
    %2196 = vmatpush1.bf16.msra.mxu0 %v1069
    %2197 = vmatprep.subr.bf16.mxu0 %v1078
    %2198 = vmatpush1.bf16.msra.mxu0 %v1077
    %2199 = vmatprep.subr.bf16.mxu0 %v1086
    %2200 = vmatpush1.bf16.msra.mxu0 %v1085
    %2201 = vmatprep.subr.bf16.mxu0 %v1094
    %2202 = vmatpush1.bf16.msra.mxu0 %v1093
    %2203 = vmatprep.subr.bf16.mxu0 %v1102
    %2204 = vmatpush1.bf16.msra.mxu0 %v1101
    %2205 = vmatprep.subr.bf16.mxu0 %v1110
    %2206 = vmatpush1.bf16.msra.mxu0 %v1109
    %2207 = vmatprep.subr.bf16.mxu0 %v1118
    %2208 = vmatpush1.bf16.msra.mxu0 %v1117
    %2209 = vmatprep.subr.bf16.mxu0 %v1126
    %2210 = vmatpush1.bf16.msra.mxu0 %v1125
    %2211 = vmatprep.subr.bf16.mxu0 %v1134
    %2212 = vmatpush1.bf16.msra.mxu0 %v1133
    %2213 = vmatprep.subr.bf16.mxu0 %v1142
    %2214 = vmatpush1.bf16.msra.mxu0 %v1141
    %2215 = vmatprep.subr.bf16.mxu0 %v1150
    %2216 = vmatpush1.bf16.msra.mxu0 %v1149
    %2217 = vmatprep.subr.bf16.mxu0 %v1158
    %2218 = vmatpush1.bf16.msra.mxu0 %v1157
    %2219 = vmatprep.subr.bf16.mxu0 %v1166
    %2220 = vmatpush1.bf16.msra.mxu0 %v1165
    %2221 = vmatprep.mubr.bf16.mxu0 %v2188
    %2222 = vmatmul.mubr.bf16.gmra.mrb[0].mxu0 %v2187
    %v2223 = vpop.f32.mrb[0].mxu0
    %v2224 = vadd.f32 0.0, %v2223
    %v2225 = vpop.f32.mrb[0].mxu0
    %v2226 = vadd.f32 0.0, %v2225
    %v2227 = vpop.f32.mrb[0].mxu0
    %v2228 = vpop.f32.mrb[0].mxu0
    %2229 = vdwg.mxu0
    %2230 = vmatprep.subr.bf16.mxu0 %v1048
    %2231 = vmatpush1.bf16.msra.mxu0 %v1047
    %2232 = vmatprep.subr.bf16.mxu0 %v1056
    %2233 = vmatpush1.bf16.msra.mxu0 %v1055
    %2234 = vmatprep.subr.bf16.mxu0 %v1064
    %2235 = vmatpush1.bf16.msra.mxu0 %v1063
    %2236 = vmatprep.subr.bf16.mxu0 %v1072
    %2237 = vmatpush1.bf16.msra.mxu0 %v1071
    %2238 = vmatprep.subr.bf16.mxu0 %v1080
    %2239 = vmatpush1.bf16.msra.mxu0 %v1079
    %2240 = vmatprep.subr.bf16.mxu0 %v1088
    %2241 = vmatpush1.bf16.msra.mxu0 %v1087
    %2242 = vmatprep.subr.bf16.mxu0 %v1096
    %2243 = vmatpush1.bf16.msra.mxu0 %v1095
    %2244 = vmatprep.subr.bf16.mxu0 %v1104
    %2245 = vmatpush1.bf16.msra.mxu0 %v1103
    %2246 = vmatprep.subr.bf16.mxu0 %v1112
    %2247 = vmatpush1.bf16.msra.mxu0 %v1111
    %2248 = vmatprep.subr.bf16.mxu0 %v1120
    %2249 = vmatpush1.bf16.msra.mxu0 %v1119
    %2250 = vmatprep.subr.bf16.mxu0 %v1128
    %2251 = vmatpush1.bf16.msra.mxu0 %v1127
    %2252 = vmatprep.subr.bf16.mxu0 %v1136
    %2253 = vmatpush1.bf16.msra.mxu0 %v1135
    %2254 = vmatprep.subr.bf16.mxu0 %v1144
    %2255 = vmatpush1.bf16.msra.mxu0 %v1143
    %2256 = vmatprep.subr.bf16.mxu0 %v1152
    %2257 = vmatpush1.bf16.msra.mxu0 %v1151
    %2258 = vmatprep.subr.bf16.mxu0 %v1160
    %2259 = vmatpush1.bf16.msra.mxu0 %v1159
    %2260 = vmatprep.subr.bf16.mxu0 %v1168
    %2261 = vmatpush1.bf16.msra.mxu0 %v1167
    %2262 = vmatprep.mubr.bf16.mxu0 %v2188
    %2263 = vmatmul.mubr.bf16.gmra.mrb[0].mxu0 %v2187
    %v2264 = vpop.f32.mrb[0].mxu0
    %v2265 = vadd.f32 0.0, %v2264
    %v2266 = vpop.f32.mrb[0].mxu0
    %v2267 = vadd.f32 0.0, %v2266
    %v2268 = vpop.f32.mrb[0].mxu0
    %v2269 = vpop.f32.mrb[0].mxu0
    %2270 = vdwg.mxu0
    %2271 = vmatprep.subr.bf16.mxu0 %v1050
    %2272 = vmatpush1.bf16.msra.mxu0 %v1049
    %2273 = vmatprep.subr.bf16.mxu0 %v1058
    %2274 = vmatpush1.bf16.msra.mxu0 %v1057
    %2275 = vmatprep.subr.bf16.mxu0 %v1066
    %2276 = vmatpush1.bf16.msra.mxu0 %v1065
    %2277 = vmatprep.subr.bf16.mxu0 %v1074
    %2278 = vmatpush1.bf16.msra.mxu0 %v1073
    %2279 = vmatprep.subr.bf16.mxu0 %v1082
    %2280 = vmatpush1.bf16.msra.mxu0 %v1081
    %2281 = vmatprep.subr.bf16.mxu0 %v1090
    %2282 = vmatpush1.bf16.msra.mxu0 %v1089
    %2283 = vmatprep.subr.bf16.mxu0 %v1098
    %2284 = vmatpush1.bf16.msra.mxu0 %v1097
    %2285 = vmatprep.subr.bf16.mxu0 %v1106
    %2286 = vmatpush1.bf16.msra.mxu0 %v1105
    %2287 = vmatprep.subr.bf16.mxu0 %v1114
    %2288 = vmatpush1.bf16.msra.mxu0 %v1113
    %2289 = vmatprep.subr.bf16.mxu0 %v1122
    %2290 = vmatpush1.bf16.msra.mxu0 %v1121
    %2291 = vmatprep.subr.bf16.mxu0 %v1130
    %2292 = vmatpush1.bf16.msra.mxu0 %v1129
    %2293 = vmatprep.subr.bf16.mxu0 %v1138
    %2294 = vmatpush1.bf16.msra.mxu0 %v1137
    %2295 = vmatprep.subr.bf16.mxu0 %v1146
    %2296 = vmatpush1.bf16.msra.mxu0 %v1145
    %2297 = vmatprep.subr.bf16.mxu0 %v1154
    %2298 = vmatpush1.bf16.msra.mxu0 %v1153
    %2299 = vmatprep.subr.bf16.mxu0 %v1162
    %2300 = vmatpush1.bf16.msra.mxu0 %v1161
    %2301 = vmatprep.subr.bf16.mxu0 %v1170
    %2302 = vmatpush1.bf16.msra.mxu0 %v1169
    %2303 = vmatprep.mubr.bf16.mxu0 %v2188
    %2304 = vmatmul.mubr.bf16.gmra.mrb[0].mxu0 %v2187
    %v2305 = vpop.f32.mrb[0].mxu0
    %v2306 = vadd.f32 0.0, %v2305
    %v2307 = vpop.f32.mrb[0].mxu0
    %v2308 = vadd.f32 0.0, %v2307
    %v2309 = vpop.f32.mrb[0].mxu0
    %v2310 = vpop.f32.mrb[0].mxu0
    %2311 = vdwg.mxu0
    %2312 = vmatprep.subr.bf16.mxu0 %v1052
    %2313 = vmatpush1.bf16.msra.mxu0 %v1051
    %2314 = vmatprep.subr.bf16.mxu0 %v1060
    %2315 = vmatpush1.bf16.msra.mxu0 %v1059
    %2316 = vmatprep.subr.bf16.mxu0 %v1068
    %2317 = vmatpush1.bf16.msra.mxu0 %v1067
    %2318 = vmatprep.subr.bf16.mxu0 %v1076
    %2319 = vmatpush1.bf16.msra.mxu0 %v1075
    %2320 = vmatprep.subr.bf16.mxu0 %v1084
    %2321 = vmatpush1.bf16.msra.mxu0 %v1083
    %2322 = vmatprep.subr.bf16.mxu0 %v1092
    %2323 = vmatpush1.bf16.msra.mxu0 %v1091
    %2324 = vmatprep.subr.bf16.mxu0 %v1100
    %2325 = vmatpush1.bf16.msra.mxu0 %v1099
    %2326 = vmatprep.subr.bf16.mxu0 %v1108
    %2327 = vmatpush1.bf16.msra.mxu0 %v1107
    %2328 = vmatprep.subr.bf16.mxu0 %v1116
    %2329 = vmatpush1.bf16.msra.mxu0 %v1115
    %2330 = vmatprep.subr.bf16.mxu0 %v1124
    %2331 = vmatpush1.bf16.msra.mxu0 %v1123
    %2332 = vmatprep.subr.bf16.mxu0 %v1132
    %2333 = vmatpush1.bf16.msra.mxu0 %v1131
    %2334 = vmatprep.subr.bf16.mxu0 %v1140
    %2335 = vmatpush1.bf16.msra.mxu0 %v1139
    %2336 = vmatprep.subr.bf16.mxu0 %v1148
    %2337 = vmatpush1.bf16.msra.mxu0 %v1147
    %2338 = vmatprep.subr.bf16.mxu0 %v1156
    %2339 = vmatpush1.bf16.msra.mxu0 %v1155
    %2340 = vmatprep.subr.bf16.mxu0 %v1164
    %2341 = vmatpush1.bf16.msra.mxu0 %v1163
    %2342 = vmatprep.subr.bf16.mxu0 %v1172
    %2343 = vmatpush1.bf16.msra.mxu0 %v1171
    %2344 = vmatprep.mubr.bf16.mxu0 %v2188
    %2345 = vmatmul.mubr.bf16.gmra.mrb[0].mxu0 %v2187
    %v2346 = vpop.f32.mrb[0].mxu0
    %v2347 = vadd.f32 0.0, %v2346
    %v2348 = vpop.f32.mrb[0].mxu0
    %v2349 = vadd.f32 0.0, %v2348
    %v2350 = vpop.f32.mrb[0].mxu0
    %v2351 = vpop.f32.mrb[0].mxu0
    %2352 = vdwg.mxu0
    %v2353 = vadd.f32 %v296, %v2224
    %v2354 = vadd.f32 %v298, %v2226
    %v2355 = vadd.f32 %v369, %v2265
    %v2356 = vadd.f32 %v371, %v2267
    %v2357 = vadd.f32 %v442, %v2306
    %v2358 = vadd.f32 %v444, %v2308
    %v2359 = vadd.f32 %v515, %v2347
    %v2360 = vadd.f32 %v517, %v2349
    %v2361 = vxor.u32 %v2353, 2147483648
    %v2362 = vxor.u32 %v2354, 2147483648
    %v2363 = vmul.f32 %v2361, 1.442695
    %v2364 = vpow.pop %v2363
    %v2365 = vmul.f32 %v2362, 1.442695
    %v2366 = vpow.pop %v2365
    %v2367 = vadd.f32 %v2364, 1.0
    %v2368 = vadd.f32 %v2366, 1.0
    %v2369 = vrcp.pop %v2367
    %v2370 = vmul.f32 1.0, %v2369
    %v2371 = vrcp.pop %v2368
    %v2372 = vmul.f32 1.0, %v2371
    %v2373 = vxor.u32 %v2355, 2147483648
    %v2374 = vxor.u32 %v2356, 2147483648
    %v2375 = vmul.f32 %v2373, 1.442695
    %v2376 = vpow.pop %v2375
    %v2377 = vmul.f32 %v2374, 1.442695
    %v2378 = vpow.pop %v2377
    %v2379 = vadd.f32 %v2376, 1.0
    %v2380 = vadd.f32 %v2378, 1.0
    %v2381 = vrcp.pop %v2379
    %v2382 = vmul.f32 1.0, %v2381
    %v2383 = vrcp.pop %v2380
    %v2384 = vmul.f32 1.0, %v2383
    %v2385 = vtanh.pop %v2357
    %v2386 = vtanh.pop %v2358
    %v2387 = vxor.u32 %v2359, 2147483648
    %v2388 = vxor.u32 %v2360, 2147483648
    %v2389 = vmul.f32 %v2387, 1.442695
    %v2390 = vpow.pop %v2389
    %v2391 = vmul.f32 %v2388, 1.442695
    %v2392 = vpow.pop %v2391
    %v2393 = vadd.f32 %v2390, 1.0
    %v2394 = vadd.f32 %v2392, 1.0
    %v2395 = vrcp.pop %v2393
    %v2396 = vmul.f32 1.0, %v2395
    %v2397 = vrcp.pop %v2394
    %v2398 = vmul.f32 1.0, %v2397
    %v2399 = vmul.f32 %v2382, %v2181
    %v2400 = vmul.f32 %v2384, %v2182
    %v2401 = vmul.f32 %v2370, %v2385
    %v2402 = vmul.f32 %v2372, %v2386
    %v2403 = vadd.f32 %v2399, %v2401
    %v2404 = vadd.f32 %v2400, %v2402
    %v2405 = vtanh.pop %v2403
    %v2406 = vtanh.pop %v2404
    %v2407 = vmul.f32 %v2396, %v2405
    %v2408 = vmul.f32 %v2398, %v2406
    %v2409 = vpack.c.bf16 %v2407, %v2407
    %v2410 = vpack.c.bf16 %v2408, %v2408
    %2411 = vmatprep.subr.bf16.mxu0 %v1046
    %2412 = vmatpush1.bf16.msra.mxu0 %v1045
    %2413 = vmatprep.subr.bf16.mxu0 %v1054
    %2414 = vmatpush1.bf16.msra.mxu0 %v1053
    %2415 = vmatprep.subr.bf16.mxu0 %v1062
    %2416 = vmatpush1.bf16.msra.mxu0 %v1061
    %2417 = vmatprep.subr.bf16.mxu0 %v1070
    %2418 = vmatpush1.bf16.msra.mxu0 %v1069
    %2419 = vmatprep.subr.bf16.mxu0 %v1078
    %2420 = vmatpush1.bf16.msra.mxu0 %v1077
    %2421 = vmatprep.subr.bf16.mxu0 %v1086
    %2422 = vmatpush1.bf16.msra.mxu0 %v1085
    %2423 = vmatprep.subr.bf16.mxu0 %v1094
    %2424 = vmatpush1.bf16.msra.mxu0 %v1093
    %2425 = vmatprep.subr.bf16.mxu0 %v1102
    %2426 = vmatpush1.bf16.msra.mxu0 %v1101
    %2427 = vmatprep.subr.bf16.mxu0 %v1110
    %2428 = vmatpush1.bf16.msra.mxu0 %v1109
    %2429 = vmatprep.subr.bf16.mxu0 %v1118
    %2430 = vmatpush1.bf16.msra.mxu0 %v1117
    %2431 = vmatprep.subr.bf16.mxu0 %v1126
    %2432 = vmatpush1.bf16.msra.mxu0 %v1125
    %2433 = vmatprep.subr.bf16.mxu0 %v1134
    %2434 = vmatpush1.bf16.msra.mxu0 %v1133
    %2435 = vmatprep.subr.bf16.mxu0 %v1142
    %2436 = vmatpush1.bf16.msra.mxu0 %v1141
    %2437 = vmatprep.subr.bf16.mxu0 %v1150
    %2438 = vmatpush1.bf16.msra.mxu0 %v1149
    %2439 = vmatprep.subr.bf16.mxu0 %v1158
    %2440 = vmatpush1.bf16.msra.mxu0 %v1157
    %2441 = vmatprep.subr.bf16.mxu0 %v1166
    %2442 = vmatpush1.bf16.msra.mxu0 %v1165
    %2443 = vmatprep.mubr.bf16.mxu0 %v2410
    %2444 = vmatmul.mubr.bf16.gmra.mrb[0].mxu0 %v2409
    %v2445 = vpop.f32.mrb[0].mxu0
    %v2446 = vadd.f32 0.0, %v2445
    %v2447 = vpop.f32.mrb[0].mxu0
    %v2448 = vadd.f32 0.0, %v2447
    %v2449 = vpop.f32.mrb[0].mxu0
    %v2450 = vpop.f32.mrb[0].mxu0
    %2451 = vdwg.mxu0
    %2452 = vmatprep.subr.bf16.mxu0 %v1048
    %2453 = vmatpush1.bf16.msra.mxu0 %v1047
    %2454 = vmatprep.subr.bf16.mxu0 %v1056
    %2455 = vmatpush1.bf16.msra.mxu0 %v1055
    %2456 = vmatprep.subr.bf16.mxu0 %v1064
    %2457 = vmatpush1.bf16.msra.mxu0 %v1063
    %2458 = vmatprep.subr.bf16.mxu0 %v1072
    %2459 = vmatpush1.bf16.msra.mxu0 %v1071
    %2460 = vmatprep.subr.bf16.mxu0 %v1080
    %2461 = vmatpush1.bf16.msra.mxu0 %v1079
    %2462 = vmatprep.subr.bf16.mxu0 %v1088
    %2463 = vmatpush1.bf16.msra.mxu0 %v1087
    %2464 = vmatprep.subr.bf16.mxu0 %v1096
    %2465 = vmatpush1.bf16.msra.mxu0 %v1095
    %2466 = vmatprep.subr.bf16.mxu0 %v1104
    %2467 = vmatpush1.bf16.msra.mxu0 %v1103
    %2468 = vmatprep.subr.bf16.mxu0 %v1112
    %2469 = vmatpush1.bf16.msra.mxu0 %v1111
    %2470 = vmatprep.subr.bf16.mxu0 %v1120
    %2471 = vmatpush1.bf16.msra.mxu0 %v1119
    %2472 = vmatprep.subr.bf16.mxu0 %v1128
    %2473 = vmatpush1.bf16.msra.mxu0 %v1127
    %2474 = vmatprep.subr.bf16.mxu0 %v1136
    %2475 = vmatpush1.bf16.msra.mxu0 %v1135
    %2476 = vmatprep.subr.bf16.mxu0 %v1144
    %2477 = vmatpush1.bf16.msra.mxu0 %v1143
    %2478 = vmatprep.subr.bf16.mxu0 %v1152
    %2479 = vmatpush1.bf16.msra.mxu0 %v1151
    %2480 = vmatprep.subr.bf16.mxu0 %v1160
    %2481 = vmatpush1.bf16.msra.mxu0 %v1159
    %2482 = vmatprep.subr.bf16.mxu0 %v1168
    %2483 = vmatpush1.bf16.msra.mxu0 %v1167
    %2484 = vmatprep.mubr.bf16.mxu0 %v2410
    %2485 = vmatmul.mubr.bf16.gmra.mrb[0].mxu0 %v2409
    %v2486 = vpop.f32.mrb[0].mxu0
    %v2487 = vadd.f32 0.0, %v2486
    %v2488 = vpop.f32.mrb[0].mxu0
    %v2489 = vadd.f32 0.0, %v2488
    %v2490 = vpop.f32.mrb[0].mxu0
    %v2491 = vpop.f32.mrb[0].mxu0
    %2492 = vdwg.mxu0
    %2493 = vmatprep.subr.bf16.mxu0 %v1050
    %2494 = vmatpush1.bf16.msra.mxu0 %v1049
    %2495 = vmatprep.subr.bf16.mxu0 %v1058
    %2496 = vmatpush1.bf16.msra.mxu0 %v1057
    %2497 = vmatprep.subr.bf16.mxu0 %v1066
    %2498 = vmatpush1.bf16.msra.mxu0 %v1065
    %2499 = vmatprep.subr.bf16.mxu0 %v1074
    %2500 = vmatpush1.bf16.msra.mxu0 %v1073
    %2501 = vmatprep.subr.bf16.mxu0 %v1082
    %2502 = vmatpush1.bf16.msra.mxu0 %v1081
    %2503 = vmatprep.subr.bf16.mxu0 %v1090
    %2504 = vmatpush1.bf16.msra.mxu0 %v1089
    %2505 = vmatprep.subr.bf16.mxu0 %v1098
    %2506 = vmatpush1.bf16.msra.mxu0 %v1097
    %2507 = vmatprep.subr.bf16.mxu0 %v1106
    %2508 = vmatpush1.bf16.msra.mxu0 %v1105
    %2509 = vmatprep.subr.bf16.mxu0 %v1114
    %2510 = vmatpush1.bf16.msra.mxu0 %v1113
    %2511 = vmatprep.subr.bf16.mxu0 %v1122
    %2512 = vmatpush1.bf16.msra.mxu0 %v1121
    %2513 = vmatprep.subr.bf16.mxu0 %v1130
    %2514 = vmatpush1.bf16.msra.mxu0 %v1129
    %2515 = vmatprep.subr.bf16.mxu0 %v1138
    %2516 = vmatpush1.bf16.msra.mxu0 %v1137
    %2517 = vmatprep.subr.bf16.mxu0 %v1146
    %2518 = vmatpush1.bf16.msra.mxu0 %v1145
    %2519 = vmatprep.subr.bf16.mxu0 %v1154
    %2520 = vmatpush1.bf16.msra.mxu0 %v1153
    %2521 = vmatprep.subr.bf16.mxu0 %v1162
    %2522 = vmatpush1.bf16.msra.mxu0 %v1161
    %2523 = vmatprep.subr.bf16.mxu0 %v1170
    %2524 = vmatpush1.bf16.msra.mxu0 %v1169
    %2525 = vmatprep.mubr.bf16.mxu0 %v2410
    %2526 = vmatmul.mubr.bf16.gmra.mrb[0].mxu0 %v2409
    %v2527 = vpop.f32.mrb[0].mxu0
    %v2528 = vadd.f32 0.0, %v2527
    %v2529 = vpop.f32.mrb[0].mxu0
    %v2530 = vadd.f32 0.0, %v2529
    %v2531 = vpop.f32.mrb[0].mxu0
    %v2532 = vpop.f32.mrb[0].mxu0
    %2533 = vdwg.mxu0
    %2534 = vmatprep.subr.bf16.mxu0 %v1052
    %2535 = vmatpush1.bf16.msra.mxu0 %v1051
    %2536 = vmatprep.subr.bf16.mxu0 %v1060
    %2537 = vmatpush1.bf16.msra.mxu0 %v1059
    %2538 = vmatprep.subr.bf16.mxu0 %v1068
    %2539 = vmatpush1.bf16.msra.mxu0 %v1067
    %2540 = vmatprep.subr.bf16.mxu0 %v1076
    %2541 = vmatpush1.bf16.msra.mxu0 %v1075
    %2542 = vmatprep.subr.bf16.mxu0 %v1084
    %2543 = vmatpush1.bf16.msra.mxu0 %v1083
    %2544 = vmatprep.subr.bf16.mxu0 %v1092
    %2545 = vmatpush1.bf16.msra.mxu0 %v1091
    %2546 = vmatprep.subr.bf16.mxu0 %v1100
    %2547 = vmatpush1.bf16.msra.mxu0 %v1099
    %2548 = vmatprep.subr.bf16.mxu0 %v1108
    %2549 = vmatpush1.bf16.msra.mxu0 %v1107
    %2550 = vmatprep.subr.bf16.mxu0 %v1116
    %2551 = vmatpush1.bf16.msra.mxu0 %v1115
    %2552 = vmatprep.subr.bf16.mxu0 %v1124
    %2553 = vmatpush1.bf16.msra.mxu0 %v1123
    %2554 = vmatprep.subr.bf16.mxu0 %v1132
    %2555 = vmatpush1.bf16.msra.mxu0 %v1131
    %2556 = vmatprep.subr.bf16.mxu0 %v1140
    %2557 = vmatpush1.bf16.msra.mxu0 %v1139
    %2558 = vmatprep.subr.bf16.mxu0 %v1148
    %2559 = vmatpush1.bf16.msra.mxu0 %v1147
    %2560 = vmatprep.subr.bf16.mxu0 %v1156
    %2561 = vmatpush1.bf16.msra.mxu0 %v1155
    %2562 = vmatprep.subr.bf16.mxu0 %v1164
    %2563 = vmatpush1.bf16.msra.mxu0 %v1163
    %2564 = vmatprep.subr.bf16.mxu0 %v1172
    %2565 = vmatpush1.bf16.msra.mxu0 %v1171
    %2566 = vmatprep.mubr.bf16.mxu0 %v2410
    %2567 = vmatmul.mubr.bf16.gmra.mrb[0].mxu0 %v2409
    %v2568 = vpop.f32.mrb[0].mxu0
    %v2569 = vadd.f32 0.0, %v2568
    %v2570 = vpop.f32.mrb[0].mxu0
    %v2571 = vadd.f32 0.0, %v2570
    %v2572 = vpop.f32.mrb[0].mxu0
    %v2573 = vpop.f32.mrb[0].mxu0
    %2574 = vdwg.mxu0
    %v2575 = vadd.f32 %v300, %v2446
    %v2576 = vadd.f32 %v302, %v2448
    %v2577 = vadd.f32 %v373, %v2487
    %v2578 = vadd.f32 %v375, %v2489
    %v2579 = vadd.f32 %v446, %v2528
    %v2580 = vadd.f32 %v448, %v2530
    %v2581 = vadd.f32 %v519, %v2569
    %v2582 = vadd.f32 %v521, %v2571
    %v2583 = vxor.u32 %v2575, 2147483648
    %v2584 = vxor.u32 %v2576, 2147483648
    %v2585 = vmul.f32 %v2583, 1.442695
    %v2586 = vpow.pop %v2585
    %v2587 = vmul.f32 %v2584, 1.442695
    %v2588 = vpow.pop %v2587
    %v2589 = vadd.f32 %v2586, 1.0
    %v2590 = vadd.f32 %v2588, 1.0
    %v2591 = vrcp.pop %v2589
    %v2592 = vmul.f32 1.0, %v2591
    %v2593 = vrcp.pop %v2590
    %v2594 = vmul.f32 1.0, %v2593
    %v2595 = vxor.u32 %v2577, 2147483648
    %v2596 = vxor.u32 %v2578, 2147483648
    %v2597 = vmul.f32 %v2595, 1.442695
    %v2598 = vpow.pop %v2597
    %v2599 = vmul.f32 %v2596, 1.442695
    %v2600 = vpow.pop %v2599
    %v2601 = vadd.f32 %v2598, 1.0
    %v2602 = vadd.f32 %v2600, 1.0
    %v2603 = vrcp.pop %v2601
    %v2604 = vmul.f32 1.0, %v2603
    %v2605 = vrcp.pop %v2602
    %v2606 = vmul.f32 1.0, %v2605
    %v2607 = vtanh.pop %v2579
    %v2608 = vtanh.pop %v2580
    %v2609 = vxor.u32 %v2581, 2147483648
    %v2610 = vxor.u32 %v2582, 2147483648
    %v2611 = vmul.f32 %v2609, 1.442695
    %v2612 = vpow.pop %v2611
    %v2613 = vmul.f32 %v2610, 1.442695
    %v2614 = vpow.pop %v2613
    %v2615 = vadd.f32 %v2612, 1.0
    %v2616 = vadd.f32 %v2614, 1.0
    %v2617 = vrcp.pop %v2615
    %v2618 = vmul.f32 1.0, %v2617
    %v2619 = vrcp.pop %v2616
    %v2620 = vmul.f32 1.0, %v2619
    %v2621 = vmul.f32 %v2604, %v2403
    %v2622 = vmul.f32 %v2606, %v2404
    %v2623 = vmul.f32 %v2592, %v2607
    %v2624 = vmul.f32 %v2594, %v2608
    %v2625 = vadd.f32 %v2621, %v2623
    %v2626 = vadd.f32 %v2622, %v2624
    %v2627 = vtanh.pop %v2625
    %v2628 = vtanh.pop %v2626
    %v2629 = vmul.f32 %v2618, %v2627
    %v2630 = vmul.f32 %v2620, %v2628
    %v2631 = vpack.c.bf16 %v2629, %v2629
    %v2632 = vpack.c.bf16 %v2630, %v2630
    %2633 = vmatprep.subr.bf16.mxu0 %v1046
    %2634 = vmatpush1.bf16.msra.mxu0 %v1045
    %2635 = vmatprep.subr.bf16.mxu0 %v1054
    %2636 = vmatpush1.bf16.msra.mxu0 %v1053
    %2637 = vmatprep.subr.bf16.mxu0 %v1062
    %2638 = vmatpush1.bf16.msra.mxu0 %v1061
    %2639 = vmatprep.subr.bf16.mxu0 %v1070
    %2640 = vmatpush1.bf16.msra.mxu0 %v1069
    %2641 = vmatprep.subr.bf16.mxu0 %v1078
    %2642 = vmatpush1.bf16.msra.mxu0 %v1077
    %2643 = vmatprep.subr.bf16.mxu0 %v1086
    %2644 = vmatpush1.bf16.msra.mxu0 %v1085
    %2645 = vmatprep.subr.bf16.mxu0 %v1094
    %2646 = vmatpush1.bf16.msra.mxu0 %v1093
    %2647 = vmatprep.subr.bf16.mxu0 %v1102
    %2648 = vmatpush1.bf16.msra.mxu0 %v1101
    %2649 = vmatprep.subr.bf16.mxu0 %v1110
    %2650 = vmatpush1.bf16.msra.mxu0 %v1109
    %2651 = vmatprep.subr.bf16.mxu0 %v1118
    %2652 = vmatpush1.bf16.msra.mxu0 %v1117
    %2653 = vmatprep.subr.bf16.mxu0 %v1126
    %2654 = vmatpush1.bf16.msra.mxu0 %v1125
    %2655 = vmatprep.subr.bf16.mxu0 %v1134
    %2656 = vmatpush1.bf16.msra.mxu0 %v1133
    %2657 = vmatprep.subr.bf16.mxu0 %v1142
    %2658 = vmatpush1.bf16.msra.mxu0 %v1141
    %2659 = vmatprep.subr.bf16.mxu0 %v1150
    %2660 = vmatpush1.bf16.msra.mxu0 %v1149
    %2661 = vmatprep.subr.bf16.mxu0 %v1158
    %2662 = vmatpush1.bf16.msra.mxu0 %v1157
    %2663 = vmatprep.subr.bf16.mxu0 %v1166
    %2664 = vmatpush1.bf16.msra.mxu0 %v1165
    %2665 = vmatprep.mubr.bf16.mxu0 %v2632
    %2666 = vmatmul.mubr.bf16.gmra.mrb[0].mxu0 %v2631
    %v2667 = vpop.f32.mrb[0].mxu0
    %v2668 = vadd.f32 0.0, %v2667
    %v2669 = vpop.f32.mrb[0].mxu0
    %v2670 = vadd.f32 0.0, %v2669
    %v2671 = vpop.f32.mrb[0].mxu0
    %v2672 = vpop.f32.mrb[0].mxu0
    %2673 = vdwg.mxu0
    %2674 = vmatprep.subr.bf16.mxu0 %v1048
    %2675 = vmatpush1.bf16.msra.mxu0 %v1047
    %2676 = vmatprep.subr.bf16.mxu0 %v1056
    %2677 = vmatpush1.bf16.msra.mxu0 %v1055
    %2678 = vmatprep.subr.bf16.mxu0 %v1064
    %2679 = vmatpush1.bf16.msra.mxu0 %v1063
    %2680 = vmatprep.subr.bf16.mxu0 %v1072
    %2681 = vmatpush1.bf16.msra.mxu0 %v1071
    %2682 = vmatprep.subr.bf16.mxu0 %v1080
    %2683 = vmatpush1.bf16.msra.mxu0 %v1079
    %2684 = vmatprep.subr.bf16.mxu0 %v1088
    %2685 = vmatpush1.bf16.msra.mxu0 %v1087
    %2686 = vmatprep.subr.bf16.mxu0 %v1096
    %2687 = vmatpush1.bf16.msra.mxu0 %v1095
    %2688 = vmatprep.subr.bf16.mxu0 %v1104
    %2689 = vmatpush1.bf16.msra.mxu0 %v1103
    %2690 = vmatprep.subr.bf16.mxu0 %v1112
    %2691 = vmatpush1.bf16.msra.mxu0 %v1111
    %2692 = vmatprep.subr.bf16.mxu0 %v1120
    %2693 = vmatpush1.bf16.msra.mxu0 %v1119
    %2694 = vmatprep.subr.bf16.mxu0 %v1128
    %2695 = vmatpush1.bf16.msra.mxu0 %v1127
    %2696 = vmatprep.subr.bf16.mxu0 %v1136
    %2697 = vmatpush1.bf16.msra.mxu0 %v1135
    %2698 = vmatprep.subr.bf16.mxu0 %v1144
    %2699 = vmatpush1.bf16.msra.mxu0 %v1143
    %2700 = vmatprep.subr.bf16.mxu0 %v1152
    %2701 = vmatpush1.bf16.msra.mxu0 %v1151
    %2702 = vmatprep.subr.bf16.mxu0 %v1160
    %2703 = vmatpush1.bf16.msra.mxu0 %v1159
    %2704 = vmatprep.subr.bf16.mxu0 %v1168
    %2705 = vmatpush1.bf16.msra.mxu0 %v1167
    %2706 = vmatprep.mubr.bf16.mxu0 %v2632
    %2707 = vmatmul.mubr.bf16.gmra.mrb[0].mxu0 %v2631
    %v2708 = vpop.f32.mrb[0].mxu0
    %v2709 = vadd.f32 0.0, %v2708
    %v2710 = vpop.f32.mrb[0].mxu0
    %v2711 = vadd.f32 0.0, %v2710
    %v2712 = vpop.f32.mrb[0].mxu0
    %v2713 = vpop.f32.mrb[0].mxu0
    %2714 = vdwg.mxu0
    %2715 = vmatprep.subr.bf16.mxu0 %v1050
    %2716 = vmatpush1.bf16.msra.mxu0 %v1049
    %2717 = vmatprep.subr.bf16.mxu0 %v1058
    %2718 = vmatpush1.bf16.msra.mxu0 %v1057
    %2719 = vmatprep.subr.bf16.mxu0 %v1066
    %2720 = vmatpush1.bf16.msra.mxu0 %v1065
    %2721 = vmatprep.subr.bf16.mxu0 %v1074
    %2722 = vmatpush1.bf16.msra.mxu0 %v1073
    %2723 = vmatprep.subr.bf16.mxu0 %v1082
    %2724 = vmatpush1.bf16.msra.mxu0 %v1081
    %2725 = vmatprep.subr.bf16.mxu0 %v1090
    %2726 = vmatpush1.bf16.msra.mxu0 %v1089
    %2727 = vmatprep.subr.bf16.mxu0 %v1098
    %2728 = vmatpush1.bf16.msra.mxu0 %v1097
    %2729 = vmatprep.subr.bf16.mxu0 %v1106
    %2730 = vmatpush1.bf16.msra.mxu0 %v1105
    %2731 = vmatprep.subr.bf16.mxu0 %v1114
    %2732 = vmatpush1.bf16.msra.mxu0 %v1113
    %2733 = vmatprep.subr.bf16.mxu0 %v1122
    %2734 = vmatpush1.bf16.msra.mxu0 %v1121
    %2735 = vmatprep.subr.bf16.mxu0 %v1130
    %2736 = vmatpush1.bf16.msra.mxu0 %v1129
    %2737 = vmatprep.subr.bf16.mxu0 %v1138
    %2738 = vmatpush1.bf16.msra.mxu0 %v1137
    %2739 = vmatprep.subr.bf16.mxu0 %v1146
    %2740 = vmatpush1.bf16.msra.mxu0 %v1145
    %2741 = vmatprep.subr.bf16.mxu0 %v1154
    %2742 = vmatpush1.bf16.msra.mxu0 %v1153
    %2743 = vmatprep.subr.bf16.mxu0 %v1162
    %2744 = vmatpush1.bf16.msra.mxu0 %v1161
    %2745 = vmatprep.subr.bf16.mxu0 %v1170
    %2746 = vmatpush1.bf16.msra.mxu0 %v1169
    %2747 = vmatprep.mubr.bf16.mxu0 %v2632
    %2748 = vmatmul.mubr.bf16.gmra.mrb[0].mxu0 %v2631
    %v2749 = vpop.f32.mrb[0].mxu0
    %v2750 = vadd.f32 0.0, %v2749
    %v2751 = vpop.f32.mrb[0].mxu0
    %v2752 = vadd.f32 0.0, %v2751
    %v2753 = vpop.f32.mrb[0].mxu0
    %v2754 = vpop.f32.mrb[0].mxu0
    %2755 = vdwg.mxu0
    %2756 = vmatprep.subr.bf16.mxu0 %v1052
    %2757 = vmatpush1.bf16.msra.mxu0 %v1051
    %2758 = vmatprep.subr.bf16.mxu0 %v1060
    %2759 = vmatpush1.bf16.msra.mxu0 %v1059
    %2760 = vmatprep.subr.bf16.mxu0 %v1068
    %2761 = vmatpush1.bf16.msra.mxu0 %v1067
    %2762 = vmatprep.subr.bf16.mxu0 %v1076
    %2763 = vmatpush1.bf16.msra.mxu0 %v1075
    %2764 = vmatprep.subr.bf16.mxu0 %v1084
    %2765 = vmatpush1.bf16.msra.mxu0 %v1083
    %2766 = vmatprep.subr.bf16.mxu0 %v1092
    %2767 = vmatpush1.bf16.msra.mxu0 %v1091
    %2768 = vmatprep.subr.bf16.mxu0 %v1100
    %2769 = vmatpush1.bf16.msra.mxu0 %v1099
    %2770 = vmatprep.subr.bf16.mxu0 %v1108
    %2771 = vmatpush1.bf16.msra.mxu0 %v1107
    %2772 = vmatprep.subr.bf16.mxu0 %v1116
    %2773 = vmatpush1.bf16.msra.mxu0 %v1115
    %2774 = vmatprep.subr.bf16.mxu0 %v1124
    %2775 = vmatpush1.bf16.msra.mxu0 %v1123
    %2776 = vmatprep.subr.bf16.mxu0 %v1132
    %2777 = vmatpush1.bf16.msra.mxu0 %v1131
    %2778 = vmatprep.subr.bf16.mxu0 %v1140
    %2779 = vmatpush1.bf16.msra.mxu0 %v1139
    %2780 = vmatprep.subr.bf16.mxu0 %v1148
    %2781 = vmatpush1.bf16.msra.mxu0 %v1147
    %2782 = vmatprep.subr.bf16.mxu0 %v1156
    %2783 = vmatpush1.bf16.msra.mxu0 %v1155
    %2784 = vmatprep.subr.bf16.mxu0 %v1164
    %2785 = vmatpush1.bf16.msra.mxu0 %v1163
    %2786 = vmatprep.subr.bf16.mxu0 %v1172
    %2787 = vmatpush1.bf16.msra.mxu0 %v1171
    %2788 = vmatprep.mubr.bf16.mxu0 %v2632
    %2789 = vmatmul.mubr.bf16.gmra.mrb[0].mxu0 %v2631
    %v2790 = vpop.f32.mrb[0].mxu0
    %v2791 = vadd.f32 0.0, %v2790
    %v2792 = vpop.f32.mrb[0].mxu0
    %v2793 = vadd.f32 0.0, %v2792
    %v2794 = vpop.f32.mrb[0].mxu0
    %v2795 = vpop.f32.mrb[0].mxu0
    %2796 = vdwg.mxu0
    %v2797 = vadd.f32 %v306, %v2668
    %v2798 = vadd.f32 %v308, %v2670
    %v2799 = vadd.f32 %v379, %v2709
    %v2800 = vadd.f32 %v381, %v2711
    %v2801 = vadd.f32 %v452, %v2750
    %v2802 = vadd.f32 %v454, %v2752
    %v2803 = vadd.f32 %v525, %v2791
    %v2804 = vadd.f32 %v527, %v2793
    %v2805 = vxor.u32 %v2797, 2147483648
    %v2806 = vxor.u32 %v2798, 2147483648
    %v2807 = vmul.f32 %v2805, 1.442695
    %v2808 = vpow.pop %v2807
    %v2809 = vmul.f32 %v2806, 1.442695
    %v2810 = vpow.pop %v2809
    %v2811 = vadd.f32 %v2808, 1.0
    %v2812 = vadd.f32 %v2810, 1.0
    %v2813 = vrcp.pop %v2811
    %v2814 = vmul.f32 1.0, %v2813
    %v2815 = vrcp.pop %v2812
    %v2816 = vmul.f32 1.0, %v2815
    %v2817 = vxor.u32 %v2799, 2147483648
    %v2818 = vxor.u32 %v2800, 2147483648
    %v2819 = vmul.f32 %v2817, 1.442695
    %v2820 = vpow.pop %v2819
    %v2821 = vmul.f32 %v2818, 1.442695
    %v2822 = vpow.pop %v2821
    %v2823 = vadd.f32 %v2820, 1.0
    %v2824 = vadd.f32 %v2822, 1.0
    %v2825 = vrcp.pop %v2823
    %v2826 = vmul.f32 1.0, %v2825
    %v2827 = vrcp.pop %v2824
    %v2828 = vmul.f32 1.0, %v2827
    %v2829 = vtanh.pop %v2801
    %v2830 = vtanh.pop %v2802
    %v2831 = vxor.u32 %v2803, 2147483648
    %v2832 = vxor.u32 %v2804, 2147483648
    %v2833 = vmul.f32 %v2831, 1.442695
    %v2834 = vpow.pop %v2833
    %v2835 = vmul.f32 %v2832, 1.442695
    %v2836 = vpow.pop %v2835
    %v2837 = vadd.f32 %v2834, 1.0
    %v2838 = vadd.f32 %v2836, 1.0
    %v2839 = vrcp.pop %v2837
    %v2840 = vmul.f32 1.0, %v2839
    %v2841 = vrcp.pop %v2838
    %v2842 = vmul.f32 1.0, %v2841
    %v2843 = vmul.f32 %v2826, %v2625
    %v2844 = vmul.f32 %v2828, %v2626
    %v2845 = vmul.f32 %v2814, %v2829
    %v2846 = vmul.f32 %v2816, %v2830
    %v2847 = vadd.f32 %v2843, %v2845
    %v2848 = vadd.f32 %v2844, %v2846
    %v2849 = vtanh.pop %v2847
    %v2850 = vtanh.pop %v2848
    %v2851 = vmul.f32 %v2840, %v2849
    %v2852 = vmul.f32 %v2842, %v2850
    %v2853 = vpack.c.bf16 %v2851, %v2851
    %v2854 = vpack.c.bf16 %v2852, %v2852
    %2855 = vmatprep.subr.bf16.mxu0 %v1046
    %2856 = vmatpush1.bf16.msra.mxu0 %v1045
    %2857 = vmatprep.subr.bf16.mxu0 %v1054
    %2858 = vmatpush1.bf16.msra.mxu0 %v1053
    %2859 = vmatprep.subr.bf16.mxu0 %v1062
    %2860 = vmatpush1.bf16.msra.mxu0 %v1061
    %2861 = vmatprep.subr.bf16.mxu0 %v1070
    %2862 = vmatpush1.bf16.msra.mxu0 %v1069
    %2863 = vmatprep.subr.bf16.mxu0 %v1078
    %2864 = vmatpush1.bf16.msra.mxu0 %v1077
    %2865 = vmatprep.subr.bf16.mxu0 %v1086
    %2866 = vmatpush1.bf16.msra.mxu0 %v1085
    %2867 = vmatprep.subr.bf16.mxu0 %v1094
    %2868 = vmatpush1.bf16.msra.mxu0 %v1093
    %2869 = vmatprep.subr.bf16.mxu0 %v1102
    %2870 = vmatpush1.bf16.msra.mxu0 %v1101
    %2871 = vmatprep.subr.bf16.mxu0 %v1110
    %2872 = vmatpush1.bf16.msra.mxu0 %v1109
    %2873 = vmatprep.subr.bf16.mxu0 %v1118
    %2874 = vmatpush1.bf16.msra.mxu0 %v1117
    %2875 = vmatprep.subr.bf16.mxu0 %v1126
    %2876 = vmatpush1.bf16.msra.mxu0 %v1125
    %2877 = vmatprep.subr.bf16.mxu0 %v1134
    %2878 = vmatpush1.bf16.msra.mxu0 %v1133
    %2879 = vmatprep.subr.bf16.mxu0 %v1142
    %2880 = vmatpush1.bf16.msra.mxu0 %v1141
    %2881 = vmatprep.subr.bf16.mxu0 %v1150
    %2882 = vmatpush1.bf16.msra.mxu0 %v1149
    %2883 = vmatprep.subr.bf16.mxu0 %v1158
    %2884 = vmatpush1.bf16.msra.mxu0 %v1157
    %2885 = vmatprep.subr.bf16.mxu0 %v1166
    %2886 = vmatpush1.bf16.msra.mxu0 %v1165
    %2887 = vmatprep.mubr.bf16.mxu0 %v2854
    %2888 = vmatmul.mubr.bf16.gmra.mrb[0].mxu0 %v2853
    %v2889 = vpop.f32.mrb[0].mxu0
    %v2890 = vadd.f32 0.0, %v2889
    %v2891 = vpop.f32.mrb[0].mxu0
    %v2892 = vadd.f32 0.0, %v2891
    %v2893 = vpop.f32.mrb[0].mxu0
    %v2894 = vpop.f32.mrb[0].mxu0
    %2895 = vdwg.mxu0
    %2896 = vmatprep.subr.bf16.mxu0 %v1048
    %2897 = vmatpush1.bf16.msra.mxu0 %v1047
    %2898 = vmatprep.subr.bf16.mxu0 %v1056
    %2899 = vmatpush1.bf16.msra.mxu0 %v1055
    %2900 = vmatprep.subr.bf16.mxu0 %v1064
    %2901 = vmatpush1.bf16.msra.mxu0 %v1063
    %2902 = vmatprep.subr.bf16.mxu0 %v1072
    %2903 = vmatpush1.bf16.msra.mxu0 %v1071
    %2904 = vmatprep.subr.bf16.mxu0 %v1080
    %2905 = vmatpush1.bf16.msra.mxu0 %v1079
    %2906 = vmatprep.subr.bf16.mxu0 %v1088
    %2907 = vmatpush1.bf16.msra.mxu0 %v1087
    %2908 = vmatprep.subr.bf16.mxu0 %v1096
    %2909 = vmatpush1.bf16.msra.mxu0 %v1095
    %2910 = vmatprep.subr.bf16.mxu0 %v1104
    %2911 = vmatpush1.bf16.msra.mxu0 %v1103
    %2912 = vmatprep.subr.bf16.mxu0 %v1112
    %2913 = vmatpush1.bf16.msra.mxu0 %v1111
    %2914 = vmatprep.subr.bf16.mxu0 %v1120
    %2915 = vmatpush1.bf16.msra.mxu0 %v1119
    %2916 = vmatprep.subr.bf16.mxu0 %v1128
    %2917 = vmatpush1.bf16.msra.mxu0 %v1127
    %2918 = vmatprep.subr.bf16.mxu0 %v1136
    %2919 = vmatpush1.bf16.msra.mxu0 %v1135
    %2920 = vmatprep.subr.bf16.mxu0 %v1144
    %2921 = vmatpush1.bf16.msra.mxu0 %v1143
    %2922 = vmatprep.subr.bf16.mxu0 %v1152
    %2923 = vmatpush1.bf16.msra.mxu0 %v1151
    %2924 = vmatprep.subr.bf16.mxu0 %v1160
    %2925 = vmatpush1.bf16.msra.mxu0 %v1159
    %2926 = vmatprep.subr.bf16.mxu0 %v1168
    %2927 = vmatpush1.bf16.msra.mxu0 %v1167
    %2928 = vmatprep.mubr.bf16.mxu0 %v2854
    %2929 = vmatmul.mubr.bf16.gmra.mrb[0].mxu0 %v2853
    %v2930 = vpop.f32.mrb[0].mxu0
    %v2931 = vadd.f32 0.0, %v2930
    %v2932 = vpop.f32.mrb[0].mxu0
    %v2933 = vadd.f32 0.0, %v2932
    %v2934 = vpop.f32.mrb[0].mxu0
    %v2935 = vpop.f32.mrb[0].mxu0
    %2936 = vdwg.mxu0
    %2937 = vmatprep.subr.bf16.mxu0 %v1050
    %2938 = vmatpush1.bf16.msra.mxu0 %v1049
    %2939 = vmatprep.subr.bf16.mxu0 %v1058
    %2940 = vmatpush1.bf16.msra.mxu0 %v1057
    %2941 = vmatprep.subr.bf16.mxu0 %v1066
    %2942 = vmatpush1.bf16.msra.mxu0 %v1065
    %2943 = vmatprep.subr.bf16.mxu0 %v1074
    %2944 = vmatpush1.bf16.msra.mxu0 %v1073
    %2945 = vmatprep.subr.bf16.mxu0 %v1082
    %2946 = vmatpush1.bf16.msra.mxu0 %v1081
    %2947 = vmatprep.subr.bf16.mxu0 %v1090
    %2948 = vmatpush1.bf16.msra.mxu0 %v1089
    %2949 = vmatprep.subr.bf16.mxu0 %v1098
    %2950 = vmatpush1.bf16.msra.mxu0 %v1097
    %2951 = vmatprep.subr.bf16.mxu0 %v1106
    %2952 = vmatpush1.bf16.msra.mxu0 %v1105
    %2953 = vmatprep.subr.bf16.mxu0 %v1114
    %2954 = vmatpush1.bf16.msra.mxu0 %v1113
    %2955 = vmatprep.subr.bf16.mxu0 %v1122
    %2956 = vmatpush1.bf16.msra.mxu0 %v1121
    %2957 = vmatprep.subr.bf16.mxu0 %v1130
    %2958 = vmatpush1.bf16.msra.mxu0 %v1129
    %2959 = vmatprep.subr.bf16.mxu0 %v1138
    %2960 = vmatpush1.bf16.msra.mxu0 %v1137
    %2961 = vmatprep.subr.bf16.mxu0 %v1146
    %2962 = vmatpush1.bf16.msra.mxu0 %v1145
    %2963 = vmatprep.subr.bf16.mxu0 %v1154
    %2964 = vmatpush1.bf16.msra.mxu0 %v1153
    %2965 = vmatprep.subr.bf16.mxu0 %v1162
    %2966 = vmatpush1.bf16.msra.mxu0 %v1161
    %2967 = vmatprep.subr.bf16.mxu0 %v1170
    %2968 = vmatpush1.bf16.msra.mxu0 %v1169
    %2969 = vmatprep.mubr.bf16.mxu0 %v2854
    %2970 = vmatmul.mubr.bf16.gmra.mrb[0].mxu0 %v2853
    %v2971 = vpop.f32.mrb[0].mxu0
    %v2972 = vadd.f32 0.0, %v2971
    %v2973 = vpop.f32.mrb[0].mxu0
    %v2974 = vadd.f32 0.0, %v2973
    %v2975 = vpop.f32.mrb[0].mxu0
    %v2976 = vpop.f32.mrb[0].mxu0
    %2977 = vdwg.mxu0
    %2978 = vmatprep.subr.bf16.mxu0 %v1052
    %2979 = vmatpush1.bf16.msra.mxu0 %v1051
    %2980 = vmatprep.subr.bf16.mxu0 %v1060
    %2981 = vmatpush1.bf16.msra.mxu0 %v1059
    %2982 = vmatprep.subr.bf16.mxu0 %v1068
    %2983 = vmatpush1.bf16.msra.mxu0 %v1067
    %2984 = vmatprep.subr.bf16.mxu0 %v1076
    %2985 = vmatpush1.bf16.msra.mxu0 %v1075
    %2986 = vmatprep.subr.bf16.mxu0 %v1084
    %2987 = vmatpush1.bf16.msra.mxu0 %v1083
    %2988 = vmatprep.subr.bf16.mxu0 %v1092
    %2989 = vmatpush1.bf16.msra.mxu0 %v1091
    %2990 = vmatprep.subr.bf16.mxu0 %v1100
    %2991 = vmatpush1.bf16.msra.mxu0 %v1099
    %2992 = vmatprep.subr.bf16.mxu0 %v1108
    %2993 = vmatpush1.bf16.msra.mxu0 %v1107
    %2994 = vmatprep.subr.bf16.mxu0 %v1116
    %2995 = vmatpush1.bf16.msra.mxu0 %v1115
    %2996 = vmatprep.subr.bf16.mxu0 %v1124
    %2997 = vmatpush1.bf16.msra.mxu0 %v1123
    %2998 = vmatprep.subr.bf16.mxu0 %v1132
    %2999 = vmatpush1.bf16.msra.mxu0 %v1131
    %3000 = vmatprep.subr.bf16.mxu0 %v1140
    %3001 = vmatpush1.bf16.msra.mxu0 %v1139
    %3002 = vmatprep.subr.bf16.mxu0 %v1148
    %3003 = vmatpush1.bf16.msra.mxu0 %v1147
    %3004 = vmatprep.subr.bf16.mxu0 %v1156
    %3005 = vmatpush1.bf16.msra.mxu0 %v1155
    %3006 = vmatprep.subr.bf16.mxu0 %v1164
    %3007 = vmatpush1.bf16.msra.mxu0 %v1163
    %3008 = vmatprep.subr.bf16.mxu0 %v1172
    %3009 = vmatpush1.bf16.msra.mxu0 %v1171
    %3010 = vmatprep.mubr.bf16.mxu0 %v2854
    %3011 = vmatmul.mubr.bf16.gmra.mrb[0].mxu0 %v2853
    %v3012 = vpop.f32.mrb[0].mxu0
    %v3013 = vadd.f32 0.0, %v3012
    %v3014 = vpop.f32.mrb[0].mxu0
    %v3015 = vadd.f32 0.0, %v3014
    %v3016 = vpop.f32.mrb[0].mxu0
    %v3017 = vpop.f32.mrb[0].mxu0
    %3018 = vdwg.mxu0
    %v3019 = vadd.f32 %v310, %v2890
    %v3020 = vadd.f32 %v312, %v2892
    %v3021 = vadd.f32 %v383, %v2931
    %v3022 = vadd.f32 %v385, %v2933
    %v3023 = vadd.f32 %v456, %v2972
    %v3024 = vadd.f32 %v458, %v2974
    %v3025 = vadd.f32 %v529, %v3013
    %v3026 = vadd.f32 %v531, %v3015
    %v3027 = vxor.u32 %v3019, 2147483648
    %v3028 = vxor.u32 %v3020, 2147483648
    %v3029 = vmul.f32 %v3027, 1.442695
    %v3030 = vpow.pop %v3029
    %v3031 = vmul.f32 %v3028, 1.442695
    %v3032 = vpow.pop %v3031
    %v3033 = vadd.f32 %v3030, 1.0
    %v3034 = vadd.f32 %v3032, 1.0
    %v3035 = vrcp.pop %v3033
    %v3036 = vmul.f32 1.0, %v3035
    %v3037 = vrcp.pop %v3034
    %v3038 = vmul.f32 1.0, %v3037
    %v3039 = vxor.u32 %v3021, 2147483648
    %v3040 = vxor.u32 %v3022, 2147483648
    %v3041 = vmul.f32 %v3039, 1.442695
    %v3042 = vpow.pop %v3041
    %v3043 = vmul.f32 %v3040, 1.442695
    %v3044 = vpow.pop %v3043
    %v3045 = vadd.f32 %v3042, 1.0
    %v3046 = vadd.f32 %v3044, 1.0
    %v3047 = vrcp.pop %v3045
    %v3048 = vmul.f32 1.0, %v3047
    %v3049 = vrcp.pop %v3046
    %v3050 = vmul.f32 1.0, %v3049
    %v3051 = vtanh.pop %v3023
    %v3052 = vtanh.pop %v3024
    %v3053 = vxor.u32 %v3025, 2147483648
    %v3054 = vxor.u32 %v3026, 2147483648
    %v3055 = vmul.f32 %v3053, 1.442695
    %v3056 = vpow.pop %v3055
    %v3057 = vmul.f32 %v3054, 1.442695
    %v3058 = vpow.pop %v3057
    %v3059 = vadd.f32 %v3056, 1.0
    %v3060 = vadd.f32 %v3058, 1.0
    %v3061 = vrcp.pop %v3059
    %v3062 = vmul.f32 1.0, %v3061
    %v3063 = vrcp.pop %v3060
    %v3064 = vmul.f32 1.0, %v3063
    %v3065 = vmul.f32 %v3048, %v2847
    %v3066 = vmul.f32 %v3050, %v2848
    %v3067 = vmul.f32 %v3036, %v3051
    %v3068 = vmul.f32 %v3038, %v3052
    %v3069 = vadd.f32 %v3065, %v3067
    %v3070 = vadd.f32 %v3066, %v3068
    %v3071 = vtanh.pop %v3069
    %v3072 = vtanh.pop %v3070
    %v3073 = vmul.f32 %v3062, %v3071
    %v3074 = vmul.f32 %v3064, %v3072
    %v3075 = vpack.c.bf16 %v3073, %v3073
    %v3076 = vpack.c.bf16 %v3074, %v3074
    %v3077 = vld [vmem:[%s4] sm:$0xff]
    %v3078 = vld [vmem:[%s4 + $0x8] sm:$0xff]
    %v3079 = vld [vmem:[%s4 + $0x10] sm:$0xff]
    %v3080 = vld [vmem:[%s4 + $0x18] sm:$0xff]
    %v3081 = vld [vmem:[%s4 + $0x20] sm:$0xff]
    %v3082 = vld [vmem:[%s4 + $0x28] sm:$0xff]
    %v3083 = vld [vmem:[%s4 + $0x30] sm:$0xff]
    %v3084 = vld [vmem:[%s4 + $0x38] sm:$0xff]
    %v3085 = vld [vmem:[%s4 + $0x40] sm:$0xff]
    %v3086 = vld [vmem:[%s4 + $0x48] sm:$0xff]
    %v3087 = vld [vmem:[%s4 + $0x50] sm:$0xff]
    %v3088 = vld [vmem:[%s4 + $0x58] sm:$0xff]
    %v3089 = vld [vmem:[%s4 + $0x60] sm:$0xff]
    %v3090 = vld [vmem:[%s4 + $0x68] sm:$0xff]
    %v3091 = vld [vmem:[%s4 + $0x70] sm:$0xff]
    %v3092 = vld [vmem:[%s4 + $0x78] sm:$0xff]
    %v3093 = vld [vmem:[%s4 + $0x80] sm:$0xff]
    %v3094 = vld [vmem:[%s4 + $0x88] sm:$0xff]
    %v3095 = vld [vmem:[%s4 + $0x90] sm:$0xff]
    %v3096 = vld [vmem:[%s4 + $0x98] sm:$0xff]
    %v3097 = vld [vmem:[%s4 + $0xa0] sm:$0xff]
    %v3098 = vld [vmem:[%s4 + $0xa8] sm:$0xff]
    %v3099 = vld [vmem:[%s4 + $0xb0] sm:$0xff]
    %v3100 = vld [vmem:[%s4 + $0xb8] sm:$0xff]
    %v3101 = vld [vmem:[%s4 + $0xc0] sm:$0xff]
    %v3102 = vld [vmem:[%s4 + $0xc8] sm:$0xff]
    %v3103 = vld [vmem:[%s4 + $0xd0] sm:$0xff]
    %v3104 = vld [vmem:[%s4 + $0xd8] sm:$0xff]
    %v3105 = vld [vmem:[%s4 + $0xe0] sm:$0xff]
    %v3106 = vld [vmem:[%s4 + $0xe8] sm:$0xff]
    %v3107 = vld [vmem:[%s4 + $0xf0] sm:$0xff]
    %v3108 = vld [vmem:[%s4 + $0xf8] sm:$0xff]
    %v3109 = vld [vmem:[%s5] sm:$0x3]
    %v3111 = vlaneseq
    %v3112 = vshrl.u32 %v3111, 7
    %v3113 = vsub.s32 0, %v3112
    %v3114 = vrot.slane %v3109, %v3113
    %v3115 = vlaneseq
    %v3116 = vshrl.u32 %v3115, 7
    %v3117 = vsub.s32 1, %v3116
    %v3118 = vrot.slane %v3109, %v3117
    %v3153 = vunpack.c.l.b16 %v3077
    %v3154 = vunpack.c.h.b16 %v3077
    %v3155 = vunpack.c.l.b16 %v3078
    %v3156 = vunpack.c.h.b16 %v3078
    %v3157 = vunpack.c.l.b16 %v3079
    %v3158 = vunpack.c.h.b16 %v3079
    %v3159 = vunpack.c.l.b16 %v3080
    %v3160 = vunpack.c.h.b16 %v3080
    %v3161 = vunpack.c.l.b16 %v3081
    %v3162 = vunpack.c.h.b16 %v3081
    %v3163 = vunpack.c.l.b16 %v3082
    %v3164 = vunpack.c.h.b16 %v3082
    %v3165 = vunpack.c.l.b16 %v3083
    %v3166 = vunpack.c.h.b16 %v3083
    %v3167 = vunpack.c.l.b16 %v3084
    %v3168 = vunpack.c.h.b16 %v3084
    %v3169 = vunpack.c.l.b16 %v3085
    %v3170 = vunpack.c.h.b16 %v3085
    %v3171 = vunpack.c.l.b16 %v3086
    %v3172 = vunpack.c.h.b16 %v3086
    %v3173 = vunpack.c.l.b16 %v3087
    %v3174 = vunpack.c.h.b16 %v3087
    %v3175 = vunpack.c.l.b16 %v3088
    %v3176 = vunpack.c.h.b16 %v3088
    %v3177 = vunpack.c.l.b16 %v3089
    %v3178 = vunpack.c.h.b16 %v3089
    %v3179 = vunpack.c.l.b16 %v3090
    %v3180 = vunpack.c.h.b16 %v3090
    %v3181 = vunpack.c.l.b16 %v3091
    %v3182 = vunpack.c.h.b16 %v3091
    %v3183 = vunpack.c.l.b16 %v3092
    %v3184 = vunpack.c.h.b16 %v3092
    %v3185 = vunpack.c.l.b16 %v3093
    %v3186 = vunpack.c.h.b16 %v3093
    %v3187 = vunpack.c.l.b16 %v3094
    %v3188 = vunpack.c.h.b16 %v3094
    %v3189 = vunpack.c.l.b16 %v3095
    %v3190 = vunpack.c.h.b16 %v3095
    %v3191 = vunpack.c.l.b16 %v3096
    %v3192 = vunpack.c.h.b16 %v3096
    %v3193 = vunpack.c.l.b16 %v3097
    %v3194 = vunpack.c.h.b16 %v3097
    %v3195 = vunpack.c.l.b16 %v3098
    %v3196 = vunpack.c.h.b16 %v3098
    %v3197 = vunpack.c.l.b16 %v3099
    %v3198 = vunpack.c.h.b16 %v3099
    %v3199 = vunpack.c.l.b16 %v3100
    %v3200 = vunpack.c.h.b16 %v3100
    %v3201 = vunpack.c.l.b16 %v3101
    %v3202 = vunpack.c.h.b16 %v3101
    %v3203 = vunpack.c.l.b16 %v3102
    %v3204 = vunpack.c.h.b16 %v3102
    %v3205 = vunpack.c.l.b16 %v3103
    %v3206 = vunpack.c.h.b16 %v3103
    %v3207 = vunpack.c.l.b16 %v3104
    %v3208 = vunpack.c.h.b16 %v3104
    %v3209 = vunpack.c.l.b16 %v3105
    %v3210 = vunpack.c.h.b16 %v3105
    %v3211 = vunpack.c.l.b16 %v3106
    %v3212 = vunpack.c.h.b16 %v3106
    %v3213 = vunpack.c.l.b16 %v3107
    %v3214 = vunpack.c.h.b16 %v3107
    %v3215 = vunpack.c.l.b16 %v3108
    %v3216 = vunpack.c.h.b16 %v3108
    %v3217 = vpack.c.b16 %v3155, %v3153
    %v3218 = vpack.c.b16 %v3156, %v3154
    %v3219 = vpack.c.b16 %v3159, %v3157
    %v3220 = vpack.c.b16 %v3160, %v3158
    %v3221 = vpack.c.b16 %v3163, %v3161
    %v3222 = vpack.c.b16 %v3164, %v3162
    %v3223 = vpack.c.b16 %v3167, %v3165
    %v3224 = vpack.c.b16 %v3168, %v3166
    %v3225 = vpack.c.b16 %v3171, %v3169
    %v3226 = vpack.c.b16 %v3172, %v3170
    %v3227 = vpack.c.b16 %v3175, %v3173
    %v3228 = vpack.c.b16 %v3176, %v3174
    %v3229 = vpack.c.b16 %v3179, %v3177
    %v3230 = vpack.c.b16 %v3180, %v3178
    %v3231 = vpack.c.b16 %v3183, %v3181
    %v3232 = vpack.c.b16 %v3184, %v3182
    %v3233 = vpack.c.b16 %v3187, %v3185
    %v3234 = vpack.c.b16 %v3188, %v3186
    %v3235 = vpack.c.b16 %v3191, %v3189
    %v3236 = vpack.c.b16 %v3192, %v3190
    %v3237 = vpack.c.b16 %v3195, %v3193
    %v3238 = vpack.c.b16 %v3196, %v3194
    %v3239 = vpack.c.b16 %v3199, %v3197
    %v3240 = vpack.c.b16 %v3200, %v3198
    %v3241 = vpack.c.b16 %v3203, %v3201
    %v3242 = vpack.c.b16 %v3204, %v3202
    %v3243 = vpack.c.b16 %v3207, %v3205
    %v3244 = vpack.c.b16 %v3208, %v3206
    %v3245 = vpack.c.b16 %v3211, %v3209
    %v3246 = vpack.c.b16 %v3212, %v3210
    %v3247 = vpack.c.b16 %v3215, %v3213
    %v3248 = vpack.c.b16 %v3216, %v3214
    %3281 = vmatprep.subr.bf16.mxu0 %v3218
    %3282 = vmatpush1.bf16.msra.mxu0 %v3217
    %3283 = vmatprep.subr.bf16.mxu0 %v3220
    %3284 = vmatpush1.bf16.msra.mxu0 %v3219
    %3285 = vmatprep.subr.bf16.mxu0 %v3222
    %3286 = vmatpush1.bf16.msra.mxu0 %v3221
    %3287 = vmatprep.subr.bf16.mxu0 %v3224
    %3288 = vmatpush1.bf16.msra.mxu0 %v3223
    %3289 = vmatprep.subr.bf16.mxu0 %v3226
    %3290 = vmatpush1.bf16.msra.mxu0 %v3225
    %3291 = vmatprep.subr.bf16.mxu0 %v3228
    %3292 = vmatpush1.bf16.msra.mxu0 %v3227
    %3293 = vmatprep.subr.bf16.mxu0 %v3230
    %3294 = vmatpush1.bf16.msra.mxu0 %v3229
    %3295 = vmatprep.subr.bf16.mxu0 %v3232
    %3296 = vmatpush1.bf16.msra.mxu0 %v3231
    %3297 = vmatprep.subr.bf16.mxu0 %v3234
    %3298 = vmatpush1.bf16.msra.mxu0 %v3233
    %3299 = vmatprep.subr.bf16.mxu0 %v3236
    %3300 = vmatpush1.bf16.msra.mxu0 %v3235
    %3301 = vmatprep.subr.bf16.mxu0 %v3238
    %3302 = vmatpush1.bf16.msra.mxu0 %v3237
    %3303 = vmatprep.subr.bf16.mxu0 %v3240
    %3304 = vmatpush1.bf16.msra.mxu0 %v3239
    %3305 = vmatprep.subr.bf16.mxu0 %v3242
    %3306 = vmatpush1.bf16.msra.mxu0 %v3241
    %3307 = vmatprep.subr.bf16.mxu0 %v3244
    %3308 = vmatpush1.bf16.msra.mxu0 %v3243
    %3309 = vmatprep.subr.bf16.mxu0 %v3246
    %3310 = vmatpush1.bf16.msra.mxu0 %v3245
    %3311 = vmatprep.subr.bf16.mxu0 %v3248
    %3312 = vmatpush1.bf16.msra.mxu0 %v3247
    %3313 = vmatprep.mubr.bf16.mxu0 %v3076
    %3314 = vmatmul.mubr.bf16.gmra.mrb[0].mxu0 %v3075
    %v3315 = vpop.f32.mrb[0].mxu0
    %v3316 = vadd.f32 %v3114, %v3315
    %v3317 = vpop.f32.mrb[0].mxu0
    %v3318 = vadd.f32 %v3118, %v3317
    %v3319 = vpop.f32.mrb[0].mxu0
    %v3320 = vpop.f32.mrb[0].mxu0
    %3321 = vdwg.mxu0
    %v3322 = vmax.f32 %v3316, 0.0
    %v3323 = vmax.f32 %v3318, 0.0
    %v3324 = vpack.c.bf16 %v3322, %v3322
    %v3325 = vpack.c.bf16 %v3323, %v3323
    %v3326 = vld [vmem:[#allocation8] sm:$0xff]
    %v3327 = vld [vmem:[#allocation8 + $0x8] sm:$0xff]
    %v3328 = vld [vmem:[#allocation8 + $0x10] sm:$0xff]
    %v3329 = vld [vmem:[#allocation8 + $0x18] sm:$0xff]
    %v3330 = vld [vmem:[#allocation8 + $0x20] sm:$0xff]
    %v3331 = vld [vmem:[#allocation8 + $0x28] sm:$0xff]
    %v3332 = vld [vmem:[#allocation8 + $0x30] sm:$0xff]
    %v3333 = vld [vmem:[#allocation8 + $0x38] sm:$0xff]
    %v3334 = vld [vmem:[#allocation8 + $0x40] sm:$0xff]
    %v3335 = vld [vmem:[#allocation8 + $0x48] sm:$0xff]
    %v3336 = vld [vmem:[#allocation8 + $0x50] sm:$0xff]
    %v3337 = vld [vmem:[#allocation8 + $0x58] sm:$0xff]
    %v3338 = vld [vmem:[#allocation8 + $0x60] sm:$0xff]
    %v3339 = vld [vmem:[#allocation8 + $0x68] sm:$0xff]
    %v3340 = vld [vmem:[#allocation8 + $0x70] sm:$0xff]
    %v3341 = vld [vmem:[#allocation8 + $0x78] sm:$0xff]
    %v3342 = vld [vmem:[#allocation8 + $0x80] sm:$0xff]
    %v3343 = vld [vmem:[#allocation8 + $0x88] sm:$0xff]
    %v3344 = vld [vmem:[#allocation8 + $0x90] sm:$0xff]
    %v3345 = vld [vmem:[#allocation8 + $0x98] sm:$0xff]
    %v3346 = vld [vmem:[#allocation8 + $0xa0] sm:$0xff]
    %v3347 = vld [vmem:[#allocation8 + $0xa8] sm:$0xff]
    %v3348 = vld [vmem:[#allocation8 + $0xb0] sm:$0xff]
    %v3349 = vld [vmem:[#allocation8 + $0xb8] sm:$0xff]
    %v3350 = vld [vmem:[#allocation8 + $0xc0] sm:$0xff]
    %v3351 = vld [vmem:[#allocation8 + $0xc8] sm:$0xff]
    %v3352 = vld [vmem:[#allocation8 + $0xd0] sm:$0xff]
    %v3353 = vld [vmem:[#allocation8 + $0xd8] sm:$0xff]
    %v3354 = vld [vmem:[#allocation8 + $0xe0] sm:$0xff]
    %v3355 = vld [vmem:[#allocation8 + $0xe8] sm:$0xff]
    %v3356 = vld [vmem:[#allocation8 + $0xf0] sm:$0xff]
    %v3357 = vld [vmem:[#allocation8 + $0xf8] sm:$0xff]
    %v3358 = vld [vmem:[#allocation10] sm:$0x3]
    %v3360 = vlaneseq
    %v3361 = vshrl.u32 %v3360, 7
    %v3362 = vsub.s32 0, %v3361
    %v3363 = vrot.slane %v3358, %v3362
    %v3364 = vlaneseq
    %v3365 = vshrl.u32 %v3364, 7
    %v3366 = vsub.s32 1, %v3365
    %v3367 = vrot.slane %v3358, %v3366
    %v3402 = vunpack.c.l.b16 %v3326
    %v3403 = vunpack.c.h.b16 %v3326
    %v3404 = vunpack.c.l.b16 %v3327
    %v3405 = vunpack.c.h.b16 %v3327
    %v3406 = vunpack.c.l.b16 %v3328
    %v3407 = vunpack.c.h.b16 %v3328
    %v3408 = vunpack.c.l.b16 %v3329
    %v3409 = vunpack.c.h.b16 %v3329
    %v3410 = vunpack.c.l.b16 %v3330
    %v3411 = vunpack.c.h.b16 %v3330
    %v3412 = vunpack.c.l.b16 %v3331
    %v3413 = vunpack.c.h.b16 %v3331
    %v3414 = vunpack.c.l.b16 %v3332
    %v3415 = vunpack.c.h.b16 %v3332
    %v3416 = vunpack.c.l.b16 %v3333
    %v3417 = vunpack.c.h.b16 %v3333
    %v3418 = vunpack.c.l.b16 %v3334
    %v3419 = vunpack.c.h.b16 %v3334
    %v3420 = vunpack.c.l.b16 %v3335
    %v3421 = vunpack.c.h.b16 %v3335
    %v3422 = vunpack.c.l.b16 %v3336
    %v3423 = vunpack.c.h.b16 %v3336
    %v3424 = vunpack.c.l.b16 %v3337
    %v3425 = vunpack.c.h.b16 %v3337
    %v3426 = vunpack.c.l.b16 %v3338
    %v3427 = vunpack.c.h.b16 %v3338
    %v3428 = vunpack.c.l.b16 %v3339
    %v3429 = vunpack.c.h.b16 %v3339
    %v3430 = vunpack.c.l.b16 %v3340
    %v3431 = vunpack.c.h.b16 %v3340
    %v3432 = vunpack.c.l.b16 %v3341
    %v3433 = vunpack.c.h.b16 %v3341
    %v3434 = vunpack.c.l.b16 %v3342
    %v3435 = vunpack.c.h.b16 %v3342
    %v3436 = vunpack.c.l.b16 %v3343
    %v3437 = vunpack.c.h.b16 %v3343
    %v3438 = vunpack.c.l.b16 %v3344
    %v3439 = vunpack.c.h.b16 %v3344
    %v3440 = vunpack.c.l.b16 %v3345
    %v3441 = vunpack.c.h.b16 %v3345
    %v3442 = vunpack.c.l.b16 %v3346
    %v3443 = vunpack.c.h.b16 %v3346
    %v3444 = vunpack.c.l.b16 %v3347
    %v3445 = vunpack.c.h.b16 %v3347
    %v3446 = vunpack.c.l.b16 %v3348
    %v3447 = vunpack.c.h.b16 %v3348
    %v3448 = vunpack.c.l.b16 %v3349
    %v3449 = vunpack.c.h.b16 %v3349
    %v3450 = vunpack.c.l.b16 %v3350
    %v3451 = vunpack.c.h.b16 %v3350
    %v3452 = vunpack.c.l.b16 %v3351
    %v3453 = vunpack.c.h.b16 %v3351
    %v3454 = vunpack.c.l.b16 %v3352
    %v3455 = vunpack.c.h.b16 %v3352
    %v3456 = vunpack.c.l.b16 %v3353
    %v3457 = vunpack.c.h.b16 %v3353
    %v3458 = vunpack.c.l.b16 %v3354
    %v3459 = vunpack.c.h.b16 %v3354
    %v3460 = vunpack.c.l.b16 %v3355
    %v3461 = vunpack.c.h.b16 %v3355
    %v3462 = vunpack.c.l.b16 %v3356
    %v3463 = vunpack.c.h.b16 %v3356
    %v3464 = vunpack.c.l.b16 %v3357
    %v3465 = vunpack.c.h.b16 %v3357
    %v3466 = vpack.c.b16 %v3404, %v3402
    %v3467 = vpack.c.b16 %v3405, %v3403
    %v3468 = vpack.c.b16 %v3408, %v3406
    %v3469 = vpack.c.b16 %v3409, %v3407
    %v3470 = vpack.c.b16 %v3412, %v3410
    %v3471 = vpack.c.b16 %v3413, %v3411
    %v3472 = vpack.c.b16 %v3416, %v3414
    %v3473 = vpack.c.b16 %v3417, %v3415
    %v3474 = vpack.c.b16 %v3420, %v3418
    %v3475 = vpack.c.b16 %v3421, %v3419
    %v3476 = vpack.c.b16 %v3424, %v3422
    %v3477 = vpack.c.b16 %v3425, %v3423
    %v3478 = vpack.c.b16 %v3428, %v3426
    %v3479 = vpack.c.b16 %v3429, %v3427
    %v3480 = vpack.c.b16 %v3432, %v3430
    %v3481 = vpack.c.b16 %v3433, %v3431
    %v3482 = vpack.c.b16 %v3436, %v3434
    %v3483 = vpack.c.b16 %v3437, %v3435
    %v3484 = vpack.c.b16 %v3440, %v3438
    %v3485 = vpack.c.b16 %v3441, %v3439
    %v3486 = vpack.c.b16 %v3444, %v3442
    %v3487 = vpack.c.b16 %v3445, %v3443
    %v3488 = vpack.c.b16 %v3448, %v3446
    %v3489 = vpack.c.b16 %v3449, %v3447
    %v3490 = vpack.c.b16 %v3452, %v3450
    %v3491 = vpack.c.b16 %v3453, %v3451
    %v3492 = vpack.c.b16 %v3456, %v3454
    %v3493 = vpack.c.b16 %v3457, %v3455
    %v3494 = vpack.c.b16 %v3460, %v3458
    %v3495 = vpack.c.b16 %v3461, %v3459
    %v3496 = vpack.c.b16 %v3464, %v3462
    %v3497 = vpack.c.b16 %v3465, %v3463
    %3530 = vmatprep.subr.bf16.mxu0 %v3467
    %3531 = vmatpush1.bf16.msra.mxu0 %v3466
    %3532 = vmatprep.subr.bf16.mxu0 %v3469
    %3533 = vmatpush1.bf16.msra.mxu0 %v3468
    %3534 = vmatprep.subr.bf16.mxu0 %v3471
    %3535 = vmatpush1.bf16.msra.mxu0 %v3470
    %3536 = vmatprep.subr.bf16.mxu0 %v3473
    %3537 = vmatpush1.bf16.msra.mxu0 %v3472
    %3538 = vmatprep.subr.bf16.mxu0 %v3475
    %3539 = vmatpush1.bf16.msra.mxu0 %v3474
    %3540 = vmatprep.subr.bf16.mxu0 %v3477
    %3541 = vmatpush1.bf16.msra.mxu0 %v3476
    %3542 = vmatprep.subr.bf16.mxu0 %v3479
    %3543 = vmatpush1.bf16.msra.mxu0 %v3478
    %3544 = vmatprep.subr.bf16.mxu0 %v3481
    %3545 = vmatpush1.bf16.msra.mxu0 %v3480
    %3546 = vmatprep.subr.bf16.mxu0 %v3483
    %3547 = vmatpush1.bf16.msra.mxu0 %v3482
    %3548 = vmatprep.subr.bf16.mxu0 %v3485
    %3549 = vmatpush1.bf16.msra.mxu0 %v3484
    %3550 = vmatprep.subr.bf16.mxu0 %v3487
    %3551 = vmatpush1.bf16.msra.mxu0 %v3486
    %3552 = vmatprep.subr.bf16.mxu0 %v3489
    %3553 = vmatpush1.bf16.msra.mxu0 %v3488
    %3554 = vmatprep.subr.bf16.mxu0 %v3491
    %3555 = vmatpush1.bf16.msra.mxu0 %v3490
    %3556 = vmatprep.subr.bf16.mxu0 %v3493
    %3557 = vmatpush1.bf16.msra.mxu0 %v3492
    %3558 = vmatprep.subr.bf16.mxu0 %v3495
    %3559 = vmatpush1.bf16.msra.mxu0 %v3494
    %3560 = vmatprep.subr.bf16.mxu0 %v3497
    %3561 = vmatpush1.bf16.msra.mxu0 %v3496
    %3562 = vmatprep.mubr.bf16.mxu0 %v3325
    %3563 = vmatmul.mubr.bf16.gmra.mrb[0].mxu0 %v3324
    %v3564 = vpop.f32.mrb[0].mxu0
    %v3565 = vadd.f32 %v3363, %v3564
    %v3566 = vpop.f32.mrb[0].mxu0
    %v3567 = vadd.f32 %v3367, %v3566
    %v3568 = vpop.f32.mrb[0].mxu0
    %v3569 = vpop.f32.mrb[0].mxu0
    %3570 = vdwg.mxu0
    %v3571 = vmax.f32 %v3565, 0.0
    %v3572 = vmax.f32 %v3567, 0.0
    %v3573 = vpack.c.bf16 %v3571, %v3571
    %v3574 = vpack.c.bf16 %v3572, %v3572
    %v3575 = vld [vmem:[%s8] sm:$0xf]
    %v3576 = vld [vmem:[%s8 + $0x4] sm:$0xf]
    %v3577 = vld [vmem:[%s8 + $0x8] sm:$0xf]
    %v3578 = vld [vmem:[%s8 + $0xc] sm:$0xf]
    %v3579 = vld [vmem:[%s8 + $0x10] sm:$0xf]
    %v3580 = vld [vmem:[%s8 + $0x14] sm:$0xf]
    %v3581 = vld [vmem:[%s8 + $0x18] sm:$0xf]
    %v3582 = vld [vmem:[%s8 + $0x1c] sm:$0xf]
    %v3583 = vld [vmem:[%s8 + $0x20] sm:$0xf]
    %v3584 = vld [vmem:[%s8 + $0x24] sm:$0xf]
    %v3585 = vld [vmem:[%s8 + $0x28] sm:$0xf]
    %v3586 = vld [vmem:[%s8 + $0x2c] sm:$0xf]
    %v3587 = vld [vmem:[%s8 + $0x30] sm:$0xf]
    %v3588 = vld [vmem:[%s8 + $0x34] sm:$0xf]
    %v3589 = vld [vmem:[%s8 + $0x38] sm:$0xf]
    %v3590 = vld [vmem:[%s8 + $0x3c] sm:$0xf]
    %v3591 = vld [vmem:[%s8 + $0x40] sm:$0xf]
    %v3592 = vld [vmem:[%s8 + $0x44] sm:$0xf]
    %v3593 = vld [vmem:[%s8 + $0x48] sm:$0xf]
    %v3594 = vld [vmem:[%s8 + $0x4c] sm:$0xf]
    %v3595 = vld [vmem:[%s8 + $0x50] sm:$0xf]
    %v3596 = vld [vmem:[%s8 + $0x54] sm:$0xf]
    %v3597 = vld [vmem:[%s8 + $0x58] sm:$0xf]
    %v3598 = vld [vmem:[%s8 + $0x5c] sm:$0xf]
    %v3599 = vld [vmem:[%s8 + $0x60] sm:$0xf]
    %v3600 = vld [vmem:[%s8 + $0x64] sm:$0xf]
    %v3601 = vld [vmem:[%s8 + $0x68] sm:$0xf]
    %v3602 = vld [vmem:[%s8 + $0x6c] sm:$0xf]
    %v3603 = vld [vmem:[%s8 + $0x70] sm:$0xf]
    %v3604 = vld [vmem:[%s8 + $0x74] sm:$0xf]
    %v3605 = vld [vmem:[%s8 + $0x78] sm:$0xf]
    %v3606 = vld [vmem:[%s8 + $0x7c] sm:$0xf]
    %v3607 = vld [vmem:[%s9] sm:$0x1]
    %v3609 = vlaneseq
    %v3610 = vshrl.u32 %v3609, 7
    %v3611 = vsub.s32 0, %v3610
    %v3612 = vrot.slane %v3607, %v3611
    %v3646 = vunpack.c.l.b16 %v3575
    %v3647 = vunpack.c.l.b16 %v3576
    %v3648 = vunpack.c.l.b16 %v3577
    %v3649 = vunpack.c.l.b16 %v3578
    %v3650 = vunpack.c.l.b16 %v3579
    %v3651 = vunpack.c.l.b16 %v3580
    %v3652 = vunpack.c.l.b16 %v3581
    %v3653 = vunpack.c.l.b16 %v3582
    %v3654 = vunpack.c.l.b16 %v3583
    %v3655 = vunpack.c.l.b16 %v3584
    %v3656 = vunpack.c.l.b16 %v3585
    %v3657 = vunpack.c.l.b16 %v3586
    %v3658 = vunpack.c.l.b16 %v3587
    %v3659 = vunpack.c.l.b16 %v3588
    %v3660 = vunpack.c.l.b16 %v3589
    %v3661 = vunpack.c.l.b16 %v3590
    %v3662 = vunpack.c.l.b16 %v3591
    %v3663 = vunpack.c.l.b16 %v3592
    %v3664 = vunpack.c.l.b16 %v3593
    %v3665 = vunpack.c.l.b16 %v3594
    %v3666 = vunpack.c.l.b16 %v3595
    %v3667 = vunpack.c.l.b16 %v3596
    %v3668 = vunpack.c.l.b16 %v3597
    %v3669 = vunpack.c.l.b16 %v3598
    %v3670 = vunpack.c.l.b16 %v3599
    %v3671 = vunpack.c.l.b16 %v3600
    %v3672 = vunpack.c.l.b16 %v3601
    %v3673 = vunpack.c.l.b16 %v3602
    %v3674 = vunpack.c.l.b16 %v3603
    %v3675 = vunpack.c.l.b16 %v3604
    %v3676 = vunpack.c.l.b16 %v3605
    %v3677 = vunpack.c.l.b16 %v3606
    %v3678 = vpack.c.b16 %v3647, %v3646
    %v3679 = vpack.c.b16 %v3649, %v3648
    %v3680 = vpack.c.b16 %v3651, %v3650
    %v3681 = vpack.c.b16 %v3653, %v3652
    %v3682 = vpack.c.b16 %v3655, %v3654
    %v3683 = vpack.c.b16 %v3657, %v3656
    %v3684 = vpack.c.b16 %v3659, %v3658
    %v3685 = vpack.c.b16 %v3661, %v3660
    %v3686 = vpack.c.b16 %v3663, %v3662
    %v3687 = vpack.c.b16 %v3665, %v3664
    %v3688 = vpack.c.b16 %v3667, %v3666
    %v3689 = vpack.c.b16 %v3669, %v3668
    %v3690 = vpack.c.b16 %v3671, %v3670
    %v3691 = vpack.c.b16 %v3673, %v3672
    %v3692 = vpack.c.b16 %v3675, %v3674
    %v3693 = vpack.c.b16 %v3677, %v3676
    %3710 = vmatprep.subr.bf16.mxu0 0
    %3711 = vmatpush1.bf16.msra.mxu0 %v3678
    %3712 = vmatprep.subr.bf16.mxu0 0
    %3713 = vmatpush1.bf16.msra.mxu0 %v3679
    %3714 = vmatprep.subr.bf16.mxu0 0
    %3715 = vmatpush1.bf16.msra.mxu0 %v3680
    %3716 = vmatprep.subr.bf16.mxu0 0
    %3717 = vmatpush1.bf16.msra.mxu0 %v3681
    %3718 = vmatprep.subr.bf16.mxu0 0
    %3719 = vmatpush1.bf16.msra.mxu0 %v3682
    %3720 = vmatprep.subr.bf16.mxu0 0
    %3721 = vmatpush1.bf16.msra.mxu0 %v3683
    %3722 = vmatprep.subr.bf16.mxu0 0
    %3723 = vmatpush1.bf16.msra.mxu0 %v3684
    %3724 = vmatprep.subr.bf16.mxu0 0
    %3725 = vmatpush1.bf16.msra.mxu0 %v3685
    %3726 = vmatprep.subr.bf16.mxu0 0
    %3727 = vmatpush1.bf16.msra.mxu0 %v3686
    %3728 = vmatprep.subr.bf16.mxu0 0
    %3729 = vmatpush1.bf16.msra.mxu0 %v3687
    %3730 = vmatprep.subr.bf16.mxu0 0
    %3731 = vmatpush1.bf16.msra.mxu0 %v3688
    %3732 = vmatprep.subr.bf16.mxu0 0
    %3733 = vmatpush1.bf16.msra.mxu0 %v3689
    %3734 = vmatprep.subr.bf16.mxu0 0
    %3735 = vmatpush1.bf16.msra.mxu0 %v3690
    %3736 = vmatprep.subr.bf16.mxu0 0
    %3737 = vmatpush1.bf16.msra.mxu0 %v3691
    %3738 = vmatprep.subr.bf16.mxu0 0
    %3739 = vmatpush1.bf16.msra.mxu0 %v3692
    %3740 = vmatprep.subr.bf16.mxu0 0
    %3741 = vmatpush1.bf16.msra.mxu0 %v3693
    %3742 = vmatprep.mubr.bf16.mxu0 %v3574
    %3743 = vmatmul.mubr.bf16.gmra.mrb[0].mxu0 %v3573
    %v3744 = vpop.f32.mrb[0].mxu0
    %v3745 = vadd.f32 %v3612, %v3744
    %v3746 = vpop.f32.mrb[0].mxu0
    %v3747 = vpop.f32.mrb[0].mxu0
    %v3748 = vpop.f32.mrb[0].mxu0
    %3749 = vdwg.mxu0
    %v3750 = vld [vmem:[%s10] sm:$0xf]
    %v3751 = vld [vmem:[%s10 + $0x4] sm:$0xf]
    %v3752 = vld [vmem:[%s10 + $0x8] sm:$0xf]
    %v3753 = vld [vmem:[%s10 + $0xc] sm:$0xf]
    %v3754 = vld [vmem:[%s10 + $0x10] sm:$0xf]
    %v3755 = vld [vmem:[%s10 + $0x14] sm:$0xf]
    %v3756 = vld [vmem:[%s10 + $0x18] sm:$0xf]
    %v3757 = vld [vmem:[%s10 + $0x1c] sm:$0xf]
    %v3758 = vld [vmem:[%s10 + $0x20] sm:$0xf]
    %v3759 = vld [vmem:[%s10 + $0x24] sm:$0xf]
    %v3760 = vld [vmem:[%s10 + $0x28] sm:$0xf]
    %v3761 = vld [vmem:[%s10 + $0x2c] sm:$0xf]
    %v3762 = vld [vmem:[%s10 + $0x30] sm:$0xf]
    %v3763 = vld [vmem:[%s10 + $0x34] sm:$0xf]
    %v3764 = vld [vmem:[%s10 + $0x38] sm:$0xf]
    %v3765 = vld [vmem:[%s10 + $0x3c] sm:$0xf]
    %v3766 = vld [vmem:[%s10 + $0x40] sm:$0xf]
    %v3767 = vld [vmem:[%s10 + $0x44] sm:$0xf]
    %v3768 = vld [vmem:[%s10 + $0x48] sm:$0xf]
    %v3769 = vld [vmem:[%s10 + $0x4c] sm:$0xf]
    %v3770 = vld [vmem:[%s10 + $0x50] sm:$0xf]
    %v3771 = vld [vmem:[%s10 + $0x54] sm:$0xf]
    %v3772 = vld [vmem:[%s10 + $0x58] sm:$0xf]
    %v3773 = vld [vmem:[%s10 + $0x5c] sm:$0xf]
    %v3774 = vld [vmem:[%s10 + $0x60] sm:$0xf]
    %v3775 = vld [vmem:[%s10 + $0x64] sm:$0xf]
    %v3776 = vld [vmem:[%s10 + $0x68] sm:$0xf]
    %v3777 = vld [vmem:[%s10 + $0x6c] sm:$0xf]
    %v3778 = vld [vmem:[%s10 + $0x70] sm:$0xf]
    %v3779 = vld [vmem:[%s10 + $0x74] sm:$0xf]
    %v3780 = vld [vmem:[%s10 + $0x78] sm:$0xf]
    %v3781 = vld [vmem:[%s10 + $0x7c] sm:$0xf]
    %v3782 = vld [vmem:[%s11] sm:$0x1]
    %v3784 = vlaneseq
    %v3785 = vshrl.u32 %v3784, 7
    %v3786 = vsub.s32 0, %v3785
    %v3787 = vrot.slane %v3782, %v3786
    %v3821 = vunpack.c.l.b16 %v3750
    %v3822 = vunpack.c.l.b16 %v3751
    %v3823 = vunpack.c.l.b16 %v3752
    %v3824 = vunpack.c.l.b16 %v3753
    %v3825 = vunpack.c.l.b16 %v3754
    %v3826 = vunpack.c.l.b16 %v3755
    %v3827 = vunpack.c.l.b16 %v3756
    %v3828 = vunpack.c.l.b16 %v3757
    %v3829 = vunpack.c.l.b16 %v3758
    %v3830 = vunpack.c.l.b16 %v3759
    %v3831 = vunpack.c.l.b16 %v3760
    %v3832 = vunpack.c.l.b16 %v3761
    %v3833 = vunpack.c.l.b16 %v3762
    %v3834 = vunpack.c.l.b16 %v3763
    %v3835 = vunpack.c.l.b16 %v3764
    %v3836 = vunpack.c.l.b16 %v3765
    %v3837 = vunpack.c.l.b16 %v3766
    %v3838 = vunpack.c.l.b16 %v3767
    %v3839 = vunpack.c.l.b16 %v3768
    %v3840 = vunpack.c.l.b16 %v3769
    %v3841 = vunpack.c.l.b16 %v3770
    %v3842 = vunpack.c.l.b16 %v3771
    %v3843 = vunpack.c.l.b16 %v3772
    %v3844 = vunpack.c.l.b16 %v3773
    %v3845 = vunpack.c.l.b16 %v3774
    %v3846 = vunpack.c.l.b16 %v3775
    %v3847 = vunpack.c.l.b16 %v3776
    %v3848 = vunpack.c.l.b16 %v3777
    %v3849 = vunpack.c.l.b16 %v3778
    %v3850 = vunpack.c.l.b16 %v3779
    %v3851 = vunpack.c.l.b16 %v3780
    %v3852 = vunpack.c.l.b16 %v3781
    %v3853 = vpack.c.b16 %v3822, %v3821
    %v3854 = vpack.c.b16 %v3824, %v3823
    %v3855 = vpack.c.b16 %v3826, %v3825
    %v3856 = vpack.c.b16 %v3828, %v3827
    %v3857 = vpack.c.b16 %v3830, %v3829
    %v3858 = vpack.c.b16 %v3832, %v3831
    %v3859 = vpack.c.b16 %v3834, %v3833
    %v3860 = vpack.c.b16 %v3836, %v3835
    %v3861 = vpack.c.b16 %v3838, %v3837
    %v3862 = vpack.c.b16 %v3840, %v3839
    %v3863 = vpack.c.b16 %v3842, %v3841
    %v3864 = vpack.c.b16 %v3844, %v3843
    %v3865 = vpack.c.b16 %v3846, %v3845
    %v3866 = vpack.c.b16 %v3848, %v3847
    %v3867 = vpack.c.b16 %v3850, %v3849
    %v3868 = vpack.c.b16 %v3852, %v3851
    %3885 = vmatprep.subr.bf16.mxu0 0
    %3886 = vmatpush1.bf16.msra.mxu0 %v3853
    %3887 = vmatprep.subr.bf16.mxu0 0
    %3888 = vmatpush1.bf16.msra.mxu0 %v3854
    %3889 = vmatprep.subr.bf16.mxu0 0
    %3890 = vmatpush1.bf16.msra.mxu0 %v3855
    %3891 = vmatprep.subr.bf16.mxu0 0
    %3892 = vmatpush1.bf16.msra.mxu0 %v3856
    %3893 = vmatprep.subr.bf16.mxu0 0
    %3894 = vmatpush1.bf16.msra.mxu0 %v3857
    %3895 = vmatprep.subr.bf16.mxu0 0
    %3896 = vmatpush1.bf16.msra.mxu0 %v3858
    %3897 = vmatprep.subr.bf16.mxu0 0
    %3898 = vmatpush1.bf16.msra.mxu0 %v3859
    %3899 = vmatprep.subr.bf16.mxu0 0
    %3900 = vmatpush1.bf16.msra.mxu0 %v3860
    %3901 = vmatprep.subr.bf16.mxu0 0
    %3902 = vmatpush1.bf16.msra.mxu0 %v3861
    %3903 = vmatprep.subr.bf16.mxu0 0
    %3904 = vmatpush1.bf16.msra.mxu0 %v3862
    %3905 = vmatprep.subr.bf16.mxu0 0
    %3906 = vmatpush1.bf16.msra.mxu0 %v3863
    %3907 = vmatprep.subr.bf16.mxu0 0
    %3908 = vmatpush1.bf16.msra.mxu0 %v3864
    %3909 = vmatprep.subr.bf16.mxu0 0
    %3910 = vmatpush1.bf16.msra.mxu0 %v3865
    %3911 = vmatprep.subr.bf16.mxu0 0
    %3912 = vmatpush1.bf16.msra.mxu0 %v3866
    %3913 = vmatprep.subr.bf16.mxu0 0
    %3914 = vmatpush1.bf16.msra.mxu0 %v3867
    %3915 = vmatprep.subr.bf16.mxu0 0
    %3916 = vmatpush1.bf16.msra.mxu0 %v3868
    %3917 = vmatprep.mubr.bf16.mxu0 %v3574
    %3918 = vmatmul.mubr.bf16.gmra.mrb[0].mxu0 %v3573
    %v3919 = vpop.f32.mrb[0].mxu0
    %v3920 = vadd.f32 %v3787, %v3919
    %v3921 = vpop.f32.mrb[0].mxu0
    %v3922 = vpop.f32.mrb[0].mxu0
    %v3923 = vpop.f32.mrb[0].mxu0
    %3924 = vdwg.mxu0
    %v3925 = vmax.f32 %v3920, -20.0
    %v3926 = vmin.f32 %v3925, 2.0
    %v3927 = vmul.f32 %v3926, 1.442695
    %v3928 = vpow.pop %v3927
    %v3929 = vld [vmem:[%s12] sm:$0xff]
    %v3930 = vmul.f32 %v3928, %v3929
    %v3931 = vadd.f32 %v3745, %v3930
    %v3932 = vtanh.pop %v3931
    %v3933 = vmul.f32 %v3929, -0.5
    %v3934 = vmul.f32 %v3933, %v3929
    %v3935 = vsub.f32 %v3934, %v3926
    %v3936 = vsub.f32 %v3935, 0.9189385
    %v3937 = vsub.f32 0.6931472, %v3931
    %v3938 = vmul.f32 %v3931, -2.0
    %v3939 = vmax.f32 %v3938, 0.0
    %vm3940 = vcmp.ne.f32.partialorder %v3938, %v3938
    %v3941 = vadd.f32 %v3938, 0.0
    %v3942 = vand.u32 2147483647, %v3938
    %v3943 = vsub.f32 0.0, %v3942
    %v3944 = vmul.f32 %v3943, 1.442695
    %v3945 = vpow.pop %v3944
    %v3946 = vadd.f32 %v3945, 1.0
    %v3947 = vlog2.pop %v3946
    %v3948 = vmul.f32 %v3947, 0.6931472
    %v3949 = vmul.f32 -0.5, %v3945
    %v3950 = vadd.f32 %v3949, 1.0
    %v3951 = vmul.f32 %v3950, %v3945
    %v3952 = vand.u32 2147483647, %v3945
    %vm3953 = vcmp.lt.f32.partialorder %v3952, 0.0004427343
    %v3954 = vsel %vm3953, %v3951, %v3948
    %v3955 = vadd.f32 %v3939, %v3954
    %v3956 = vsel %vm3940, %v3941, %v3955
    %v3957 = vsub.f32 %v3937, %v3956
    %v3958 = vmul.f32 %v3957, 2.0
    %v3959 = vsub.f32 %v3936, %v3958
    %vm3960 = vcmask 31744
    %v3961 = vsel %vm3960, %v3959, 0.0
    %3962 = vadd.xlane.f32.xlu0 %v3961
    %v3963 = vpop.xlane.xlu0 %3962
    %v3964 = vsel %vm3960, %v3932, %v3963
    %vm3965 = vcmask 39936
    %v3966 = vsel %vm3965, %v3964, 0.0
    %3967 = vst [vmem:[#allocation11] sm:$0xff] %v3966
    // Predicated region
    $region74: #{tpu_custom_call.1} parent=1 // pred_check
      _
    $region75: #{tpu_custom_call.1} parent=1 // pred_check_branch
      %3969 = sbr.rel (0) target = $region77
    $region76: #{tpu_custom_call.1} parent=1 // pred_region
      %s3971 = ssub.s32 128, 128
      %3972 = vsyncadd [#allocation4], %s3971
      %s3974 = sshll.u32 [#allocation11], 4
      %s3975 = int_to_ptr.vmem [resolvable:$true] %s3974
      %3977 = dma.vmem_to_hbm [thread:$0]  %s3975, 128, %s13, [#allocation4]
    $region77: #{tpu_custom_call.1} parent=1 // pred_fallthru
      _
    // Predicated region
    $region78: #{tpu_custom_call.1} parent=1 // pred_check
      _
    $region79: #{tpu_custom_call.1} parent=1 // pred_check_branch
      %3979 = sbr.rel (0) target = $region81
    $region80: #{tpu_custom_call.1} parent=1 // pred_region
      %3980 = dma.done [#allocation4], 128
    $region81: #{tpu_custom_call.1} parent=1 // pred_fallthru
      _
    %3981 = vsyncpa [#allocation3], 1
    %3982 = vsyncpa [#allocation6], 1
    %3983 = vsyncpa [#allocation9], 1
    %3984 = vsyncpa [#allocation4], 1

</llo_original>
